<compile_context>
chip_gen: v5e
topology: v5e:2x2
jax: 0.10.0
libtpu: 0.0.40
codegen_flags: <defaults>
</compile_context>

<pallas_src>
import functools

import numpy as np
import jax
import jax.numpy as jnp
from jax import lax
from jax.experimental import pallas as pl
from jax.experimental.pallas import tpu as pltpu

_EPS = 1e-5  # nn.BatchNorm2d default eps


# ----------------------- generation-aware tuning knobs ----------------------- #

def _vmem_budget_bytes():
    cap = 128 * 1024 * 1024
    try:
        info = pltpu.get_tpu_info()
        cap = int(getattr(info, "vmem_capacity_bytes", cap))
    except Exception:
        pass
    # ~3/4 of physical VMEM: 96 MiB on v5e/v6e (128 MiB), 48 MiB on v7x (64 MiB).
    return max(32 * 1024 * 1024, (cap * 3) // 4)


_VMEM_LIMIT = _vmem_budget_bytes()
# bigger row tiles on 128 MiB chips, smaller on v7x
_TILE_S = 2048 if _VMEM_LIMIT >= 72 * 1024 * 1024 else 1024


def _pick_tile(m, cap, min_steps=1):
    ts = min(cap, m)
    if min_steps > 1 and -(-m // ts) < min_steps:
        ts = -(-m // min_steps)
        ts = max(8, ((ts + 7) // 8) * 8)          # keep the sublane dim a multiple of 8
    return min(ts, m)


# ------------------------------- Pallas kernels ------------------------------ #

def _ab_se_kernel(*refs, stride, h_out, w_out, has_se):
    # Fused: 1x1 a-conv + BN + ReLU  ->  grouped 3x3 b-conv (9 accumulating tap matmuls
    # against block-diagonal per-tap weights) + BN + ReLU  ->  SE squeeze/excite/gate.
    (x_ref, mask_ref, aw_ref, asc_ref, ash_ref,
     bw_ref, bsc_ref, bsh_ref) = refs[:8]
    if has_se:
        sw1_ref, sb1_ref, sw2_ref, sb2_ref = refs[8:12]
        xb_ref = refs[12]
    else:
        xb_ref = refs[8]

    P, Hh, Wh, cin = x_ref.shape
    w_b = aw_ref.shape[1]
    m = h_out * w_out

    # f.a : 1x1 conv on the zero-padded (parity-split) raw input; the halo mask zeroes
    # the pad ring AFTER BN+ReLU so the 3x3 conv sees exactly zero padding of xa.
    xf = x_ref[...].reshape(P * Hh * Wh, cin).astype(jnp.bfloat16)
    xa = jnp.dot(xf, aw_ref[...], preferred_element_type=jnp.float32)
    xa = jnp.maximum(xa * asc_ref[...] + ash_ref[...], 0.0) * mask_ref[...]
    xa = xa.astype(jnp.bfloat16).reshape(P, Hh, Wh, w_b)

    # f.b : grouped 3x3 as 9 accumulating matmuls (no (M, 9C) im2col tensor).
    acc = None
    for ky in range(3):
        for kx in range(3):
            if stride == 1:
                tap = xa[0, ky:ky + h_out, kx:kx + w_out, :]
            else:  # stride 2: parity planes make every tap slice contiguous
                par = 2 * (ky % 2) + (kx % 2)
                tap = xa[par, ky // 2:ky // 2 + h_out, kx // 2:kx // 2 + w_out, :]
            d = jnp.dot(tap.reshape(m, w_b), bw_ref[ky * 3 + kx],
                        preferred_element_type=jnp.float32)
            acc = d if acc is None else acc + d
    y = jnp.maximum(acc * bsc_ref[...] + bsh_ref[...], 0.0)           # (m, w_b) f32

    if has_se:
        # f.se : squeeze (pre-gate mean) -> FC -> ReLU -> FC -> sigmoid -> gate multiply,
        # all in the epilogue; xb written to HBM is already gated.
        s = jnp.mean(y, axis=0, keepdims=True)                        # (1, w_b)
        h1 = jnp.maximum(
            jnp.dot(s, sw1_ref[...], preferred_element_type=jnp.float32) + sb1_ref[...],
            0.0)
        g = jnp.dot(h1, sw2_ref[...], preferred_element_type=jnp.float32) + sb2_ref[...]
        y = y * jax.nn.sigmoid(g)

    xb_ref[0] = y.astype(xb_ref.dtype)


def _c_kernel(*refs, proj):
    # 1x1 c-conv + BN fused with the (projected or identity) skip, residual add, ReLU.
    xb_ref = refs[0]
    wc_ref, csc_ref, csh_ref = refs[1:4]
    if proj:
        xs_ref, wp_ref, psc_ref, psh_ref, o_ref = refs[4:9]
    else:
        skip_ref, o_ref = refs[4:6]

    y = jnp.dot(xb_ref[0], wc_ref[...], preferred_element_type=jnp.float32)
    y = y * csc_ref[...] + csh_ref[...]
    if proj:
        sk = jnp.dot(xs_ref[0].astype(jnp.bfloat16), wp_ref[...],
                     preferred_element_type=jnp.float32)
        y = y + (sk * psc_ref[...] + psh_ref[...])
    else:
        y = y + skip_ref[0]
    o_ref[0] = jnp.maximum(y, 0.0).astype(o_ref.dtype)


# ------------------------------ kernel wrappers ------------------------------ #

def ab_se_fused(x_sp, mask, prep, *, n, stride, h_out, w_out):
    P = 4 if stride == 2 else 1
    _, Hh, Wh, cin = x_sp.shape
    w_b = prep['w_b']
    has_se = prep['w_se'] > 0
    m = h_out * w_out

    in_specs = [
        pl.BlockSpec((P, Hh, Wh, cin), lambda i: (i, 0, 0, 0)),
        pl.BlockSpec(mask.shape, lambda i: (0, 0)),
        pl.BlockSpec(prep['a_w'].shape, lambda i: (0, 0)),
        pl.BlockSpec((1, w_b), lambda i: (0, 0)),
        pl.BlockSpec((1, w_b), lambda i: (0, 0)),
        pl.BlockSpec(prep['b_w'].shape, lambda i: (0, 0, 0)),
        pl.BlockSpec((1, w_b), lambda i: (0, 0)),
        pl.BlockSpec((1, w_b), lambda i: (0, 0)),
    ]
    args = [x_sp, mask, prep['a_w'], prep['a_scale'], prep['a_shift'],
            prep['b_w'], prep['b_scale'], prep['b_shift']]
    if has_se:
        in_specs += [pl.BlockSpec(prep['se_w1'].shape, lambda i: (0, 0)),
                     pl.BlockSpec(prep['se_b1'].shape, lambda i: (0, 0)),
                     pl.BlockSpec(prep['se_w2'].shape, lambda i: (0, 0)),
                     pl.BlockSpec(prep['se_b2'].shape, lambda i: (0, 0))]
        args += [prep['se_w1'], prep['se_b1'], prep['se_w2'], prep['se_b2']]

    return pl.pallas_call(
        functools.partial(_ab_se_kernel, stride=stride, h_out=h_out,
                          w_out=w_out, has_se=has_se),
        out_shape=jax.ShapeDtypeStruct((n, m, w_b), jnp.bfloat16),
        grid=(n,),
        in_specs=in_specs,
        out_specs=pl.BlockSpec((1, m, w_b), lambda i: (i, 0, 0)),
        compiler_params=pltpu.CompilerParams(
            dimension_semantics=("parallel",),
            vmem_limit_bytes=_VMEM_LIMIT),
    )(*args)


def c_conv(xb, prep, *, xs=None, skip=None, out_dtype):
    n, hw, cb = xb.shape
    w_out = prep['c_w'].shape[1]
    proj = xs is not None
    ts = _pick_tile(hw, _TILE_S, min_steps=2 if n == 1 else 1)
    nj = pl.cdiv(hw, ts)

    in_specs = [pl.BlockSpec((1, ts, cb), lambda i, j: (i, j, 0)),
                pl.BlockSpec((cb, w_out), lambda i, j: (0, 0)),
                pl.BlockSpec((1, w_out), lambda i, j: (0, 0)),
                pl.BlockSpec((1, w_out), lambda i, j: (0, 0))]
    args = [xb, prep['c_w'], prep['c_scale'], prep['c_shift']]
    if proj:
        cin = xs.shape[-1]
        in_specs += [pl.BlockSpec((1, ts, cin), lambda i, j: (i, j, 0)),
                     pl.BlockSpec((cin, w_out), lambda i, j: (0, 0)),
                     pl.BlockSpec((1, w_out), lambda i, j: (0, 0)),
                     pl.BlockSpec((1, w_out), lambda i, j: (0, 0))]
        args += [xs, prep['proj_w'], prep['proj_scale'], prep['proj_shift']]
    else:
        in_specs.append(pl.BlockSpec((1, ts, w_out), lambda i, j: (i, j, 0)))
        args.append(skip)

    return pl.pallas_call(
        functools.partial(_c_kernel, proj=proj),
        out_shape=jax.ShapeDtypeStruct((n, hw, w_out), out_dtype),
        grid=(n, nj),
        in_specs=in_specs,
        out_specs=pl.BlockSpec((1, ts, w_out), lambda i, j: (i, j, 0)),
        compiler_params=pltpu.CompilerParams(
            dimension_semantics=("parallel", "parallel"),
            vmem_limit_bytes=_VMEM_LIMIT),
    )(*args)


# ------------------------------ params / folding ----------------------------- #

def init_params(key, w_in, w_out, stride, bm, gw, se_r):
    w_b = int(round(w_out * bm))
    num_gs = w_b // gw
    w_se = int(round(w_in * se_r)) if se_r else 0
    keys = jax.random.split(key, 12)

    def conv_w(k, shape):
        return 0.1 * jax.random.normal(k, shape, jnp.float32)

    def bn_p(k, c):
        k1, k2, k3, k4 = jax.random.split(k, 4)
        return dict(
            gamma=1.0 + 0.1 * jax.random.normal(k1, (c,), jnp.float32),
            beta=0.1 * jax.random.normal(k2, (c,), jnp.float32),
            mean=0.1 * jax.random.normal(k3, (c,), jnp.float32),
            var=0.5 + 0.1 * jnp.abs(jax.random.normal(k4, (c,), jnp.float32)),
        )

    p = dict(w_in=w_in, w_out=w_out, stride=stride, w_b=w_b, num_gs=num_gs,
             w_se=w_se, proj_block=(w_in != w_out or stride != 1))
    p['a_w'] = conv_w(keys[0], (w_b, w_in, 1, 1))               # torch OIHW
    p['a_bn'] = bn_p(keys[1], w_b)
    p['b_w'] = conv_w(keys[2], (w_b, w_b // num_gs, 3, 3))      # grouped
    p['b_bn'] = bn_p(keys[3], w_b)
    if w_se:
        p['se_w1'] = conv_w(keys[4], (w_se, w_b, 1, 1))
        p['se_b1'] = 0.1 * jax.random.normal(keys[5], (w_se,), jnp.float32)
        p['se_w2'] = conv_w(keys[6], (w_b, w_se, 1, 1))
        p['se_b2'] = 0.1 * jax.random.normal(keys[7], (w_b,), jnp.float32)
    p['c_w'] = conv_w(keys[8], (w_out, w_b, 1, 1))
    p['c_bn'] = bn_p(keys[9], w_out)
    if p['proj_block']:
        p['proj_w'] = conv_w(keys[10], (w_out, w_in, 1, 1))
        p['proj_bn'] = bn_p(keys[11], w_out)
    return p


def _fold_bn(bn):
    scale = bn['gamma'] / jnp.sqrt(bn['var'] + _EPS)
    shift = bn['beta'] - bn['mean'] * scale
    return scale[None, :].astype(jnp.float32), shift[None, :].astype(jnp.float32)


def _blockdiag_3x3(w_torch, num_gs):
    # (Cout, Cin/g, 3, 3) grouped torch weight -> (9, Cin, Cout) block-diagonal per tap.
    w = np.asarray(w_torch)
    cout = w.shape[0]
    cg = cout // num_gs
    W = np.zeros((9, cout, cout), np.float32)
    for g in range(num_gs):
        wg = w[g * cg:(g + 1) * cg]
        for ky in range(3):
            for kx in range(3):
                W[ky * 3 + kx, g * cg:(g + 1) * cg, g * cg:(g + 1) * cg] = wg[:, :, ky, kx].T
    return jnp.asarray(W)


def prepare_params(p):
    # One-time (non-traced) weight prep: bf16 matmul weights, BN kept as f32 scale/shift
    # applied in the epilogue (not folded into bf16 weights -> no quantization of scale*W).
    prep = dict(stride=p['stride'], w_b=p['w_b'], w_out=p['w_out'], w_in=p['w_in'],
                w_se=p['w_se'], proj_block=p['proj_block'])
    prep['a_w'] = jnp.transpose(p['a_w'][:, :, 0, 0]).astype(jnp.bfloat16)
    prep['a_scale'], prep['a_shift'] = _fold_bn(p['a_bn'])
    prep['b_w'] = _blockdiag_3x3(p['b_w'], p['num_gs']).astype(jnp.bfloat16)   # (9, C, C)
    prep['b_scale'], prep['b_shift'] = _fold_bn(p['b_bn'])
    prep['c_w'] = jnp.transpose(p['c_w'][:, :, 0, 0]).astype(jnp.bfloat16)
    prep['c_scale'], prep['c_shift'] = _fold_bn(p['c_bn'])
    if p['proj_block']:
        prep['proj_w'] = jnp.transpose(p['proj_w'][:, :, 0, 0]).astype(jnp.bfloat16)
        prep['proj_scale'], prep['proj_shift'] = _fold_bn(p['proj_bn'])
    if p['w_se']:
        prep['se_w1'] = jnp.transpose(p['se_w1'][:, :, 0, 0]).astype(jnp.float32)
        prep['se_b1'] = p['se_b1'][None, :]
        prep['se_w2'] = jnp.transpose(p['se_w2'][:, :, 0, 0]).astype(jnp.float32)
        prep['se_b2'] = p['se_b2'][None, :]
    return prep


def _halo_mask(stride, H, W, P, Hh, Wh):
    # 1.0 on pixels that came from the original image, 0.0 on the zero-pad halo
    # (and on the extra even-size padding rows/cols of the stride-2 parity split).
    m = np.zeros((P, Hh, Wh), np.float32)
    for par in range(P):
        pr, pc = (par // 2, par % 2) if stride == 2 else (0, 0)
        a = np.arange(Hh) * stride + pr
        b = np.arange(Wh) * stride + pc
        valid = ((a >= 1) & (a <= H))[:, None] & ((b >= 1) & (b <= W))[None, :]
        m[par] = valid.astype(np.float32)
    return jnp.asarray(m.reshape(P * Hh * Wh, 1))


# ---------------------------------- forward ---------------------------------- #

def res_bottleneck_block(x_nchw, prep, *, out_dtype=jnp.bfloat16):
    N, C, H, W = x_nchw.shape
    s, w_out = prep['stride'], prep['w_out']
    h_out = (H + 2 - 3) // s + 1
    w_sp = (W + 2 - 3) // s + 1

    # NCHW -> NHWC at the demo boundary; bf16 casts happen inside the kernels.
    x = jnp.transpose(x_nchw, (0, 2, 3, 1))

    # The only XLA layout glue on the activation path: zero-pad the *raw* (narrow)
    # input once and, for stride 2, split it into 4 parity planes so every in-kernel
    # tap slice is contiguous.
    xp = jnp.pad(x, ((0, 0), (1, 1), (1, 1), (0, 0)))
    if s == 1:
        P, Hh, Wh = 1, H + 2, W + 2
        x_sp = xp
    else:
        P = 4
        hp, wp = H + 2, W + 2
        ph, pw = (-hp) % 2, (-wp) % 2
        if ph or pw:
            xp = jnp.pad(xp, ((0, 0), (0, ph), (0, pw), (0, 0)))
        hp, wp = hp + ph, wp + pw
        Hh, Wh = hp // 2, wp // 2
        x_sp = xp.reshape(N, Hh, 2, Wh, 2, C).transpose(0, 2, 4, 1, 3, 5)
        x_sp = x_sp.reshape(N * 4, Hh, Wh, C)
    mask = _halo_mask(s, H, W, P, Hh, Wh)

    # Fused a-conv + grouped 3x3 + SE (squeeze/excite/gate), one image per grid step.
    xb = ab_se_fused(x_sp, mask, prep, n=N, stride=s, h_out=h_out, w_out=w_sp)

    # c-conv + BN fused with (projected / identity) skip, residual add, ReLU.
    if prep['proj_block']:
        xs = x[:, ::s, ::s, :].reshape(N, h_out * w_sp, C)
        out = c_conv(xb, prep, xs=xs, out_dtype=out_dtype)
    else:
        skip = x.reshape(N, H * W, C)
        out = c_conv(xb, prep, skip=skip, out_dtype=out_dtype)

    out = out.reshape(N, h_out, w_sp, w_out)
    return jnp.transpose(out, (0, 3, 1, 2))


# ------------------------------ pure-JAX reference ---------------------------- #

def ref_forward(x, p):
    def conv(x, w, stride=1, pad=0, groups=1):
        return lax.conv_general_dilated(
            x, w, (stride, stride), [(pad, pad), (pad, pad)],
            dimension_numbers=('NCHW', 'OIHW', 'NCHW'),
            feature_group_count=groups)

    def bn(x, b):
        sc = b['gamma'] / jnp.sqrt(b['var'] + _EPS)
        sh = b['beta'] - b['mean'] * sc
        return x * sc[None, :, None, None] + sh[None, :, None, None]

    a = jax.nn.relu(bn(conv(x, p['a_w']), p['a_bn']))
    b_ = jax.nn.relu(bn(conv(a, p['b_w'], stride=p['stride'], pad=1,
                             groups=p['num_gs']), p['b_bn']))
    if p['w_se']:
        s = jnp.mean(b_, axis=(2, 3), keepdims=True)
        h = jax.nn.relu(conv(s, p['se_w1']) + p['se_b1'][None, :, None, None])
        g = jax.nn.sigmoid(conv(h, p['se_w2']) + p['se_b2'][None, :, None, None])
        b_ = b_ * g
    c = bn(conv(b_, p['c_w']), p['c_bn'])
    skip = bn(conv(x, p['proj_w'], stride=p['stride']), p['proj_bn']) if p['proj_block'] else x
    return jax.nn.relu(skip + c)


# ------------------------------------ main ------------------------------------ #

if __name__ == "__main__":
    key = jax.random.PRNGKey(0)
    configs = [
        # (name,                 N, w_in, H,  W,  w_out, stride, bm,  gw, se_r)
        ("proj+se, stride2",     2, 32,   16, 16, 128,   2,      1.0, 16, 0.25),
        ("identity+se, stride1", 2, 64,   16, 16, 64,    1,      1.0, 16, 0.25),
        ("proj, no-se, stride1", 2, 32,   12, 12, 96,    1,      1.0, 16, None),
    ]
    ok = True
    for name, N, w_in, H, W, w_out, stride, bm, gw, se_r in configs:
        key, kx, kp = jax.random.split(key, 3)
        x = jax.random.normal(kx, (N, w_in, H, W), jnp.float32)
        params = init_params(kp, w_in, w_out, stride, bm, gw, se_r)
        prep = prepare_params(params)

        fwd = jax.jit(functools.partial(res_bottleneck_block, prep=prep))
        out = jax.block_until_ready(fwd(x)).astype(jnp.float32)
        ref = jax.block_until_ready(ref_forward(x, params))

        h_o = (H + 2 - 3) // stride + 1
        w_o = (W + 2 - 3) // stride + 1
        assert out.shape == ref.shape == (N, w_out, h_o, w_o), (name, out.shape, ref.shape)
        err = float(jnp.max(jnp.abs(out - ref)))
        # bf16 MXU operands / bf16 block output vs the f32 lax.conv reference.
        if not bool(jnp.allclose(out, ref, atol=6e-2, rtol=6e-2)):
            ok = False
            print(f"FAIL {name}: max abs err = {err:.4f}")
    if ok:
        print("KERNEL_OK")
</pallas_src>

<mosaic_0001>
module attributes {stable_mosaic.version = 11 : i64} {
  func.func @_ab_se_kernel(%arg0: i32, %arg1: memref<4x9x9x32xf32, #tpu.memory_space<vmem>>, %arg2: memref<324x1xf32, #tpu.memory_space<vmem>>, %arg3: memref<32x128xbf16, #tpu.memory_space<vmem>>, %arg4: memref<1x128xf32, #tpu.memory_space<vmem>>, %arg5: memref<1x128xf32, #tpu.memory_space<vmem>>, %arg6: memref<9x128x128xbf16, #tpu.memory_space<vmem>>, %arg7: memref<1x128xf32, #tpu.memory_space<vmem>>, %arg8: memref<1x128xf32, #tpu.memory_space<vmem>>, %arg9: memref<128x8xf32, #tpu.memory_space<vmem>>, %arg10: memref<1x8xf32, #tpu.memory_space<vmem>>, %arg11: memref<8x128xf32, #tpu.memory_space<vmem>>, %arg12: memref<1x128xf32, #tpu.memory_space<vmem>>, %arg13: memref<1x64x128xbf16, #tpu.memory_space<vmem>>) attributes {dimension_semantics = [#tpu.dimension_semantics<parallel>], iteration_bounds = array<i64: 2>, scalar_prefetch = 0 : i64, scratch_operands = 0 : i64, tpu.core_type = #tpu.core_type<tc>, window_params = [{transform_indices = @transform_0, window_bounds = array<i64: 4, 9, 9, 32>}, {pipeline_mode = #tpu.pipeline_mode<synchronous>, transform_indices = @transform_1, window_bounds = array<i64: 324, 1>}, {pipeline_mode = #tpu.pipeline_mode<synchronous>, transform_indices = @transform_2, window_bounds = array<i64: 32, 128>}, {pipeline_mode = #tpu.pipeline_mode<synchronous>, transform_indices = @transform_3, window_bounds = array<i64: 1, 128>}, {pipeline_mode = #tpu.pipeline_mode<synchronous>, transform_indices = @transform_4, window_bounds = array<i64: 1, 128>}, {pipeline_mode = #tpu.pipeline_mode<synchronous>, transform_indices = @transform_5, window_bounds = array<i64: 9, 128, 128>}, {pipeline_mode = #tpu.pipeline_mode<synchronous>, transform_indices = @transform_6, window_bounds = array<i64: 1, 128>}, {pipeline_mode = #tpu.pipeline_mode<synchronous>, transform_indices = @transform_7, window_bounds = array<i64: 1, 128>}, {pipeline_mode = #tpu.pipeline_mode<synchronous>, transform_indices = @transform_8, window_bounds = array<i64: 128, 8>}, {pipeline_mode = #tpu.pipeline_mode<synchronous>, transform_indices = @transform_9, window_bounds = array<i64: 1, 8>}, {pipeline_mode = #tpu.pipeline_mode<synchronous>, transform_indices = @transform_10, window_bounds = array<i64: 8, 128>}, {pipeline_mode = #tpu.pipeline_mode<synchronous>, transform_indices = @transform_11, window_bounds = array<i64: 1, 128>}, {transform_indices = @transform_12, window_bounds = array<i64: 1, 64, 128>}]} {
    %c0 = arith.constant 0 : index
    %c0_0 = arith.constant 0 : index
    %c0_1 = arith.constant 0 : index
    %c0_2 = arith.constant 0 : index
    %0 = vector.load %arg1[%c0, %c0_0, %c0_1, %c0_2] : memref<4x9x9x32xf32, #tpu.memory_space<vmem>>, vector<4x9x9x32xf32>
    %1 = vector.shape_cast %0 : vector<4x9x9x32xf32> to vector<324x32xf32>
    %2 = arith.truncf %1 : vector<324x32xf32> to vector<324x32xbf16>
    %c0_3 = arith.constant 0 : index
    %c0_4 = arith.constant 0 : index
    %3 = vector.load %arg3[%c0_3, %c0_4] : memref<32x128xbf16, #tpu.memory_space<vmem>>, vector<32x128xbf16>
    %cst = arith.constant dense<0.000000e+00> : vector<324x128xf32>
    %4 = tpu.matmul %2, %3, %cst {dimension_numbers = #tpu.dot_dimension_numbers<[1], [0], [0], [1], [0, 0, 1, 1], [], []>} : vector<324x32xbf16>, vector<32x128xbf16>, vector<324x128xf32> -> vector<324x128xf32>
    %c0_5 = arith.constant 0 : index
    %c0_6 = arith.constant 0 : index
    %5 = vector.load %arg4[%c0_5, %c0_6] : memref<1x128xf32, #tpu.memory_space<vmem>>, vector<1x128xf32>
    %6 = vector.broadcast %5 : vector<1x128xf32> to vector<324x128xf32>
    %7 = arith.mulf %4, %6 : vector<324x128xf32>
    %c0_7 = arith.constant 0 : index
    %c0_8 = arith.constant 0 : index
    %8 = vector.load %arg5[%c0_7, %c0_8] : memref<1x128xf32, #tpu.memory_space<vmem>>, vector<1x128xf32>
    %9 = vector.broadcast %8 : vector<1x128xf32> to vector<324x128xf32>
    %10 = arith.addf %7, %9 : vector<324x128xf32>
    %cst_9 = arith.constant 0.000000e+00 : f32
    %11 = vector.broadcast %cst_9 : f32 to vector<324x128xf32>
    %12 = arith.maximumf %10, %11 : vector<324x128xf32>
    %c0_10 = arith.constant 0 : index
    %c0_11 = arith.constant 0 : index
    %13 = vector.load %arg2[%c0_10, %c0_11] : memref<324x1xf32, #tpu.memory_space<vmem>>, vector<324x1xf32>
    %14 = vector.broadcast %13 : vector<324x1xf32> to vector<324x128xf32>
    %15 = arith.mulf %12, %14 : vector<324x128xf32>
    %16 = arith.truncf %15 : vector<324x128xf32> to vector<324x128xbf16>
    %17 = vector.shape_cast %16 : vector<324x128xbf16> to vector<4x9x9x128xbf16>
    %18 = vector.extract_strided_slice %17 {offsets = [0, 0, 0, 0], sizes = [1, 8, 8, 128], strides = [1, 1, 1, 1]} : vector<4x9x9x128xbf16> to vector<1x8x8x128xbf16>
    %19 = vector.shape_cast %18 : vector<1x8x8x128xbf16> to vector<8x8x128xbf16>
    %20 = vector.shape_cast %19 : vector<8x8x128xbf16> to vector<64x128xbf16>
    %c0_12 = arith.constant 0 : index
    %c0_13 = arith.constant 0 : index
    %c0_14 = arith.constant 0 : index
    %21 = vector.load %arg6[%c0_12, %c0_13, %c0_14] : memref<9x128x128xbf16, #tpu.memory_space<vmem>>, vector<1x128x128xbf16>
    %22 = vector.shape_cast %21 : vector<1x128x128xbf16> to vector<128x128xbf16>
    %cst_15 = arith.constant dense<0.000000e+00> : vector<64x128xf32>
    %23 = tpu.matmul %20, %22, %cst_15 {dimension_numbers = #tpu.dot_dimension_numbers<[1], [0], [0], [1], [0, 0, 1, 1], [], []>} : vector<64x128xbf16>, vector<128x128xbf16>, vector<64x128xf32> -> vector<64x128xf32>
    %24 = vector.extract_strided_slice %17 {offsets = [1, 0, 0, 0], sizes = [1, 8, 8, 128], strides = [1, 1, 1, 1]} : vector<4x9x9x128xbf16> to vector<1x8x8x128xbf16>
    %25 = vector.shape_cast %24 : vector<1x8x8x128xbf16> to vector<8x8x128xbf16>
    %26 = vector.shape_cast %25 : vector<8x8x128xbf16> to vector<64x128xbf16>
    %c1 = arith.constant 1 : index
    %c0_16 = arith.constant 0 : index
    %c0_17 = arith.constant 0 : index
    %27 = vector.load %arg6[%c1, %c0_16, %c0_17] : memref<9x128x128xbf16, #tpu.memory_space<vmem>>, vector<1x128x128xbf16>
    %28 = vector.shape_cast %27 : vector<1x128x128xbf16> to vector<128x128xbf16>
    %cst_18 = arith.constant dense<0.000000e+00> : vector<64x128xf32>
    %29 = tpu.matmul %26, %28, %cst_18 {dimension_numbers = #tpu.dot_dimension_numbers<[1], [0], [0], [1], [0, 0, 1, 1], [], []>} : vector<64x128xbf16>, vector<128x128xbf16>, vector<64x128xf32> -> vector<64x128xf32>
    %30 = arith.addf %23, %29 : vector<64x128xf32>
    %31 = vector.extract_strided_slice %17 {offsets = [0, 0, 1, 0], sizes = [1, 8, 8, 128], strides = [1, 1, 1, 1]} : vector<4x9x9x128xbf16> to vector<1x8x8x128xbf16>
    %32 = vector.shape_cast %31 : vector<1x8x8x128xbf16> to vector<8x8x128xbf16>
    %33 = vector.shape_cast %32 : vector<8x8x128xbf16> to vector<64x128xbf16>
    %c2 = arith.constant 2 : index
    %c0_19 = arith.constant 0 : index
    %c0_20 = arith.constant 0 : index
    %34 = vector.load %arg6[%c2, %c0_19, %c0_20] : memref<9x128x128xbf16, #tpu.memory_space<vmem>>, vector<1x128x128xbf16>
    %35 = vector.shape_cast %34 : vector<1x128x128xbf16> to vector<128x128xbf16>
    %cst_21 = arith.constant dense<0.000000e+00> : vector<64x128xf32>
    %36 = tpu.matmul %33, %35, %cst_21 {dimension_numbers = #tpu.dot_dimension_numbers<[1], [0], [0], [1], [0, 0, 1, 1], [], []>} : vector<64x128xbf16>, vector<128x128xbf16>, vector<64x128xf32> -> vector<64x128xf32>
    %37 = arith.addf %30, %36 : vector<64x128xf32>
    %38 = vector.extract_strided_slice %17 {offsets = [2, 0, 0, 0], sizes = [1, 8, 8, 128], strides = [1, 1, 1, 1]} : vector<4x9x9x128xbf16> to vector<1x8x8x128xbf16>
    %39 = vector.shape_cast %38 : vector<1x8x8x128xbf16> to vector<8x8x128xbf16>
    %40 = vector.shape_cast %39 : vector<8x8x128xbf16> to vector<64x128xbf16>
    %c3 = arith.constant 3 : index
    %c0_22 = arith.constant 0 : index
    %c0_23 = arith.constant 0 : index
    %41 = vector.load %arg6[%c3, %c0_22, %c0_23] : memref<9x128x128xbf16, #tpu.memory_space<vmem>>, vector<1x128x128xbf16>
    %42 = vector.shape_cast %41 : vector<1x128x128xbf16> to vector<128x128xbf16>
    %cst_24 = arith.constant dense<0.000000e+00> : vector<64x128xf32>
    %43 = tpu.matmul %40, %42, %cst_24 {dimension_numbers = #tpu.dot_dimension_numbers<[1], [0], [0], [1], [0, 0, 1, 1], [], []>} : vector<64x128xbf16>, vector<128x128xbf16>, vector<64x128xf32> -> vector<64x128xf32>
    %44 = arith.addf %37, %43 : vector<64x128xf32>
    %45 = vector.extract_strided_slice %17 {offsets = [3, 0, 0, 0], sizes = [1, 8, 8, 128], strides = [1, 1, 1, 1]} : vector<4x9x9x128xbf16> to vector<1x8x8x128xbf16>
    %46 = vector.shape_cast %45 : vector<1x8x8x128xbf16> to vector<8x8x128xbf16>
    %47 = vector.shape_cast %46 : vector<8x8x128xbf16> to vector<64x128xbf16>
    %c4 = arith.constant 4 : index
    %c0_25 = arith.constant 0 : index
    %c0_26 = arith.constant 0 : index
    %48 = vector.load %arg6[%c4, %c0_25, %c0_26] : memref<9x128x128xbf16, #tpu.memory_space<vmem>>, vector<1x128x128xbf16>
    %49 = vector.shape_cast %48 : vector<1x128x128xbf16> to vector<128x128xbf16>
    %cst_27 = arith.constant dense<0.000000e+00> : vector<64x128xf32>
    %50 = tpu.matmul %47, %49, %cst_27 {dimension_numbers = #tpu.dot_dimension_numbers<[1], [0], [0], [1], [0, 0, 1, 1], [], []>} : vector<64x128xbf16>, vector<128x128xbf16>, vector<64x128xf32> -> vector<64x128xf32>
    %51 = arith.addf %44, %50 : vector<64x128xf32>
    %52 = vector.extract_strided_slice %17 {offsets = [2, 0, 1, 0], sizes = [1, 8, 8, 128], strides = [1, 1, 1, 1]} : vector<4x9x9x128xbf16> to vector<1x8x8x128xbf16>
    %53 = vector.shape_cast %52 : vector<1x8x8x128xbf16> to vector<8x8x128xbf16>
    %54 = vector.shape_cast %53 : vector<8x8x128xbf16> to vector<64x128xbf16>
    %c5 = arith.constant 5 : index
    %c0_28 = arith.constant 0 : index
    %c0_29 = arith.constant 0 : index
    %55 = vector.load %arg6[%c5, %c0_28, %c0_29] : memref<9x128x128xbf16, #tpu.memory_space<vmem>>, vector<1x128x128xbf16>
    %56 = vector.shape_cast %55 : vector<1x128x128xbf16> to vector<128x128xbf16>
    %cst_30 = arith.constant dense<0.000000e+00> : vector<64x128xf32>
    %57 = tpu.matmul %54, %56, %cst_30 {dimension_numbers = #tpu.dot_dimension_numbers<[1], [0], [0], [1], [0, 0, 1, 1], [], []>} : vector<64x128xbf16>, vector<128x128xbf16>, vector<64x128xf32> -> vector<64x128xf32>
    %58 = arith.addf %51, %57 : vector<64x128xf32>
    %59 = vector.extract_strided_slice %17 {offsets = [0, 1, 0, 0], sizes = [1, 8, 8, 128], strides = [1, 1, 1, 1]} : vector<4x9x9x128xbf16> to vector<1x8x8x128xbf16>
    %60 = vector.shape_cast %59 : vector<1x8x8x128xbf16> to vector<8x8x128xbf16>
    %61 = vector.shape_cast %60 : vector<8x8x128xbf16> to vector<64x128xbf16>
    %c6 = arith.constant 6 : index
    %c0_31 = arith.constant 0 : index
    %c0_32 = arith.constant 0 : index
    %62 = vector.load %arg6[%c6, %c0_31, %c0_32] : memref<9x128x128xbf16, #tpu.memory_space<vmem>>, vector<1x128x128xbf16>
    %63 = vector.shape_cast %62 : vector<1x128x128xbf16> to vector<128x128xbf16>
    %cst_33 = arith.constant dense<0.000000e+00> : vector<64x128xf32>
    %64 = tpu.matmul %61, %63, %cst_33 {dimension_numbers = #tpu.dot_dimension_numbers<[1], [0], [0], [1], [0, 0, 1, 1], [], []>} : vector<64x128xbf16>, vector<128x128xbf16>, vector<64x128xf32> -> vector<64x128xf32>
    %65 = arith.addf %58, %64 : vector<64x128xf32>
    %66 = vector.extract_strided_slice %17 {offsets = [1, 1, 0, 0], sizes = [1, 8, 8, 128], strides = [1, 1, 1, 1]} : vector<4x9x9x128xbf16> to vector<1x8x8x128xbf16>
    %67 = vector.shape_cast %66 : vector<1x8x8x128xbf16> to vector<8x8x128xbf16>
    %68 = vector.shape_cast %67 : vector<8x8x128xbf16> to vector<64x128xbf16>
    %c7 = arith.constant 7 : index
    %c0_34 = arith.constant 0 : index
    %c0_35 = arith.constant 0 : index
    %69 = vector.load %arg6[%c7, %c0_34, %c0_35] : memref<9x128x128xbf16, #tpu.memory_space<vmem>>, vector<1x128x128xbf16>
    %70 = vector.shape_cast %69 : vector<1x128x128xbf16> to vector<128x128xbf16>
    %cst_36 = arith.constant dense<0.000000e+00> : vector<64x128xf32>
    %71 = tpu.matmul %68, %70, %cst_36 {dimension_numbers = #tpu.dot_dimension_numbers<[1], [0], [0], [1], [0, 0, 1, 1], [], []>} : vector<64x128xbf16>, vector<128x128xbf16>, vector<64x128xf32> -> vector<64x128xf32>
    %72 = arith.addf %65, %71 : vector<64x128xf32>
    %73 = vector.extract_strided_slice %17 {offsets = [0, 1, 1, 0], sizes = [1, 8, 8, 128], strides = [1, 1, 1, 1]} : vector<4x9x9x128xbf16> to vector<1x8x8x128xbf16>
    %74 = vector.shape_cast %73 : vector<1x8x8x128xbf16> to vector<8x8x128xbf16>
    %75 = vector.shape_cast %74 : vector<8x8x128xbf16> to vector<64x128xbf16>
    %c8 = arith.constant 8 : index
    %c0_37 = arith.constant 0 : index
    %c0_38 = arith.constant 0 : index
    %76 = vector.load %arg6[%c8, %c0_37, %c0_38] : memref<9x128x128xbf16, #tpu.memory_space<vmem>>, vector<1x128x128xbf16>
    %77 = vector.shape_cast %76 : vector<1x128x128xbf16> to vector<128x128xbf16>
    %cst_39 = arith.constant dense<0.000000e+00> : vector<64x128xf32>
    %78 = tpu.matmul %75, %77, %cst_39 {dimension_numbers = #tpu.dot_dimension_numbers<[1], [0], [0], [1], [0, 0, 1, 1], [], []>} : vector<64x128xbf16>, vector<128x128xbf16>, vector<64x128xf32> -> vector<64x128xf32>
    %79 = arith.addf %72, %78 : vector<64x128xf32>
    %c0_40 = arith.constant 0 : index
    %c0_41 = arith.constant 0 : index
    %80 = vector.load %arg7[%c0_40, %c0_41] : memref<1x128xf32, #tpu.memory_space<vmem>>, vector<1x128xf32>
    %81 = vector.broadcast %80 : vector<1x128xf32> to vector<64x128xf32>
    %82 = arith.mulf %79, %81 : vector<64x128xf32>
    %c0_42 = arith.constant 0 : index
    %c0_43 = arith.constant 0 : index
    %83 = vector.load %arg8[%c0_42, %c0_43] : memref<1x128xf32, #tpu.memory_space<vmem>>, vector<1x128xf32>
    %84 = vector.broadcast %83 : vector<1x128xf32> to vector<64x128xf32>
    %85 = arith.addf %82, %84 : vector<64x128xf32>
    %cst_44 = arith.constant 0.000000e+00 : f32
    %86 = vector.broadcast %cst_44 : f32 to vector<64x128xf32>
    %87 = arith.maximumf %85, %86 : vector<64x128xf32>
    %cst_45 = arith.constant dense<0.000000e+00> : vector<128xf32>
    %88 = vector.multi_reduction <add>, %87, %cst_45 [0] : vector<64x128xf32> to vector<128xf32>
    %89 = vector.shape_cast %88 : vector<128xf32> to vector<1x128xf32>
    %cst_46 = arith.constant 6.400000e+01 : f32
    %90 = vector.broadcast %cst_46 : f32 to vector<1x128xf32>
    %91 = arith.divf %89, %90 : vector<1x128xf32>
    %c0_47 = arith.constant 0 : index
    %c0_48 = arith.constant 0 : index
    %92 = vector.load %arg9[%c0_47, %c0_48] : memref<128x8xf32, #tpu.memory_space<vmem>>, vector<128x8xf32>
    %cst_49 = arith.constant dense<0.000000e+00> : vector<1x8xf32>
    %93 = tpu.matmul %91, %92, %cst_49 {dimension_numbers = #tpu.dot_dimension_numbers<[1], [0], [0], [1], [0, 0, 1, 1], [], []>} : vector<1x128xf32>, vector<128x8xf32>, vector<1x8xf32> -> vector<1x8xf32>
    %c0_50 = arith.constant 0 : index
    %c0_51 = arith.constant 0 : index
    %94 = vector.load %arg10[%c0_50, %c0_51] : memref<1x8xf32, #tpu.memory_space<vmem>>, vector<1x8xf32>
    %95 = arith.addf %93, %94 : vector<1x8xf32>
    %cst_52 = arith.constant 0.000000e+00 : f32
    %96 = vector.broadcast %cst_52 : f32 to vector<1x8xf32>
    %97 = arith.maximumf %95, %96 : vector<1x8xf32>
    %c0_53 = arith.constant 0 : index
    %c0_54 = arith.constant 0 : index
    %98 = vector.load %arg11[%c0_53, %c0_54] : memref<8x128xf32, #tpu.memory_space<vmem>>, vector<8x128xf32>
    %cst_55 = arith.constant dense<0.000000e+00> : vector<1x128xf32>
    %99 = tpu.matmul %97, %98, %cst_55 {dimension_numbers = #tpu.dot_dimension_numbers<[1], [0], [0], [1], [0, 0, 1, 1], [], []>} : vector<1x8xf32>, vector<8x128xf32>, vector<1x128xf32> -> vector<1x128xf32>
    %c0_56 = arith.constant 0 : index
    %c0_57 = arith.constant 0 : index
    %100 = vector.load %arg12[%c0_56, %c0_57] : memref<1x128xf32, #tpu.memory_space<vmem>>, vector<1x128xf32>
    %101 = arith.addf %99, %100 : vector<1x128xf32>
    %102 = arith.negf %101 : vector<1x128xf32>
    %103 = math.exp %102 : vector<1x128xf32>
    %cst_58 = arith.constant 1.000000e+00 : f32
    %104 = vector.broadcast %cst_58 : f32 to vector<1x128xf32>
    %105 = arith.addf %104, %103 : vector<1x128xf32>
    %106 = arith.divf %104, %105 : vector<1x128xf32>
    %107 = vector.broadcast %106 : vector<1x128xf32> to vector<64x128xf32>
    %108 = arith.mulf %87, %107 : vector<64x128xf32>
    %109 = arith.truncf %108 : vector<64x128xf32> to vector<64x128xbf16>
    %c0_59 = arith.constant 0 : index
    %c0_60 = arith.constant 0 : index
    %c0_61 = arith.constant 0 : index
    %110 = vector.load %arg13[%c0_59, %c0_60, %c0_61] : memref<1x64x128xbf16, #tpu.memory_space<vmem>>, vector<1x64x128xbf16>
    %111 = vector.shape_cast %110 : vector<1x64x128xbf16> to vector<64x128xbf16>
    %112 = vector.shape_cast %109 : vector<64x128xbf16> to vector<1x64x128xbf16>
    tpu.vector_store %arg13[%c0_59, %c0_60, %c0_61], %112 {strides = array<i32>} : memref<1x64x128xbf16, #tpu.memory_space<vmem>>, vector<1x64x128xbf16>,
    return
  }
  func.func @transform_0(%arg0: i32) -> (i32, i32, i32, i32) {
    %c0_i32 = arith.constant 0 : i32
    %c0_i32_0 = arith.constant 0 : i32
    %c0_i32_1 = arith.constant 0 : i32
    %c0_i32_2 = arith.constant 0 : i32
    return %arg0, %c0_i32, %c0_i32_0, %c0_i32_1 : i32, i32, i32, i32
  }
  func.func @transform_1(%arg0: i32) -> (i32, i32) {
    %c0_i32 = arith.constant 0 : i32
    %c0_i32_0 = arith.constant 0 : i32
    %c0_i32_1 = arith.constant 0 : i32
    return %c0_i32, %c0_i32_0 : i32, i32
  }
  func.func @transform_2(%arg0: i32) -> (i32, i32) {
    %c0_i32 = arith.constant 0 : i32
    %c0_i32_0 = arith.constant 0 : i32
    %c0_i32_1 = arith.constant 0 : i32
    return %c0_i32, %c0_i32_0 : i32, i32
  }
  func.func @transform_3(%arg0: i32) -> (i32, i32) {
    %c0_i32 = arith.constant 0 : i32
    %c0_i32_0 = arith.constant 0 : i32
    %c0_i32_1 = arith.constant 0 : i32
    return %c0_i32, %c0_i32_0 : i32, i32
  }
  func.func @transform_4(%arg0: i32) -> (i32, i32) {
    %c0_i32 = arith.constant 0 : i32
    %c0_i32_0 = arith.constant 0 : i32
    %c0_i32_1 = arith.constant 0 : i32
    return %c0_i32, %c0_i32_0 : i32, i32
  }
  func.func @transform_5(%arg0: i32) -> (i32, i32, i32) {
    %c0_i32 = arith.constant 0 : i32
    %c0_i32_0 = arith.constant 0 : i32
    %c0_i32_1 = arith.constant 0 : i32
    %c0_i32_2 = arith.constant 0 : i32
    return %c0_i32, %c0_i32_0, %c0_i32_1 : i32, i32, i32
  }
  func.func @transform_6(%arg0: i32) -> (i32, i32) {
    %c0_i32 = arith.constant 0 : i32
    %c0_i32_0 = arith.constant 0 : i32
    %c0_i32_1 = arith.constant 0 : i32
    return %c0_i32, %c0_i32_0 : i32, i32
  }
  func.func @transform_7(%arg0: i32) -> (i32, i32) {
    %c0_i32 = arith.constant 0 : i32
    %c0_i32_0 = arith.constant 0 : i32
    %c0_i32_1 = arith.constant 0 : i32
    return %c0_i32, %c0_i32_0 : i32, i32
  }
  func.func @transform_8(%arg0: i32) -> (i32, i32) {
    %c0_i32 = arith.constant 0 : i32
    %c0_i32_0 = arith.constant 0 : i32
    %c0_i32_1 = arith.constant 0 : i32
    return %c0_i32, %c0_i32_0 : i32, i32
  }
  func.func @transform_9(%arg0: i32) -> (i32, i32) {
    %c0_i32 = arith.constant 0 : i32
    %c0_i32_0 = arith.constant 0 : i32
    %c0_i32_1 = arith.constant 0 : i32
    return %c0_i32, %c0_i32_0 : i32, i32
  }
  func.func @transform_10(%arg0: i32) -> (i32, i32) {
    %c0_i32 = arith.constant 0 : i32
    %c0_i32_0 = arith.constant 0 : i32
    %c0_i32_1 = arith.constant 0 : i32
    return %c0_i32, %c0_i32_0 : i32, i32
  }
  func.func @transform_11(%arg0: i32) -> (i32, i32) {
    %c0_i32 = arith.constant 0 : i32
    %c0_i32_0 = arith.constant 0 : i32
    %c0_i32_1 = arith.constant 0 : i32
    return %c0_i32, %c0_i32_0 : i32, i32
  }
  func.func @transform_12(%arg0: i32) -> (i32, i32, i32) {
    %c0_i32 = arith.constant 0 : i32
    %c0_i32_0 = arith.constant 0 : i32
    %c0_i32_1 = arith.constant 0 : i32
    return %arg0, %c0_i32, %c0_i32_0 : i32, i32, i32
  }
}

module attributes {stable_mosaic.version = 11 : i64} {
  func.func @_c_kernel(%arg0: i32, %arg1: i32, %arg2: memref<1x64x128xbf16, #tpu.memory_space<vmem>>, %arg3: memref<128x128xbf16, #tpu.memory_space<vmem>>, %arg4: memref<1x128xf32, #tpu.memory_space<vmem>>, %arg5: memref<1x128xf32, #tpu.memory_space<vmem>>, %arg6: memref<1x64x32xf32, #tpu.memory_space<vmem>>, %arg7: memref<32x128xbf16, #tpu.memory_space<vmem>>, %arg8: memref<1x128xf32, #tpu.memory_space<vmem>>, %arg9: memref<1x128xf32, #tpu.memory_space<vmem>>, %arg10: memref<1x64x128xbf16, #tpu.memory_space<vmem>>) attributes {dimension_semantics = [#tpu.dimension_semantics<parallel>, #tpu.dimension_semantics<parallel>], iteration_bounds = array<i64: 2, 1>, scalar_prefetch = 0 : i64, scratch_operands = 0 : i64, tpu.core_type = #tpu.core_type<tc>, window_params = [{transform_indices = @transform_0, window_bounds = array<i64: 1, 64, 128>}, {pipeline_mode = #tpu.pipeline_mode<synchronous>, transform_indices = @transform_1, window_bounds = array<i64: 128, 128>}, {pipeline_mode = #tpu.pipeline_mode<synchronous>, transform_indices = @transform_2, window_bounds = array<i64: 1, 128>}, {pipeline_mode = #tpu.pipeline_mode<synchronous>, transform_indices = @transform_3, window_bounds = array<i64: 1, 128>}, {transform_indices = @transform_4, window_bounds = array<i64: 1, 64, 32>}, {pipeline_mode = #tpu.pipeline_mode<synchronous>, transform_indices = @transform_5, window_bounds = array<i64: 32, 128>}, {pipeline_mode = #tpu.pipeline_mode<synchronous>, transform_indices = @transform_6, window_bounds = array<i64: 1, 128>}, {pipeline_mode = #tpu.pipeline_mode<synchronous>, transform_indices = @transform_7, window_bounds = array<i64: 1, 128>}, {transform_indices = @transform_8, window_bounds = array<i64: 1, 64, 128>}]} {
    %c0 = arith.constant 0 : index
    %c0_0 = arith.constant 0 : index
    %c0_1 = arith.constant 0 : index
    %0 = vector.load %arg2[%c0, %c0_0, %c0_1] : memref<1x64x128xbf16, #tpu.memory_space<vmem>>, vector<1x64x128xbf16>
    %1 = vector.shape_cast %0 : vector<1x64x128xbf16> to vector<64x128xbf16>
    %c0_2 = arith.constant 0 : index
    %c0_3 = arith.constant 0 : index
    %2 = vector.load %arg3[%c0_2, %c0_3] : memref<128x128xbf16, #tpu.memory_space<vmem>>, vector<128x128xbf16>
    %cst = arith.constant dense<0.000000e+00> : vector<64x128xf32>
    %3 = tpu.matmul %1, %2, %cst {dimension_numbers = #tpu.dot_dimension_numbers<[1], [0], [0], [1], [0, 0, 1, 1], [], []>} : vector<64x128xbf16>, vector<128x128xbf16>, vector<64x128xf32> -> vector<64x128xf32>
    %c0_4 = arith.constant 0 : index
    %c0_5 = arith.constant 0 : index
    %4 = vector.load %arg4[%c0_4, %c0_5] : memref<1x128xf32, #tpu.memory_space<vmem>>, vector<1x128xf32>
    %5 = vector.broadcast %4 : vector<1x128xf32> to vector<64x128xf32>
    %6 = arith.mulf %3, %5 : vector<64x128xf32>
    %c0_6 = arith.constant 0 : index
    %c0_7 = arith.constant 0 : index
    %7 = vector.load %arg5[%c0_6, %c0_7] : memref<1x128xf32, #tpu.memory_space<vmem>>, vector<1x128xf32>
    %8 = vector.broadcast %7 : vector<1x128xf32> to vector<64x128xf32>
    %9 = arith.addf %6, %8 : vector<64x128xf32>
    %c0_8 = arith.constant 0 : index
    %c0_9 = arith.constant 0 : index
    %c0_10 = arith.constant 0 : index
    %10 = vector.load %arg6[%c0_8, %c0_9, %c0_10] : memref<1x64x32xf32, #tpu.memory_space<vmem>>, vector<1x64x32xf32>
    %11 = vector.shape_cast %10 : vector<1x64x32xf32> to vector<64x32xf32>
    %12 = arith.truncf %11 : vector<64x32xf32> to vector<64x32xbf16>
    %c0_11 = arith.constant 0 : index
    %c0_12 = arith.constant 0 : index
    %13 = vector.load %arg7[%c0_11, %c0_12] : memref<32x128xbf16, #tpu.memory_space<vmem>>, vector<32x128xbf16>
    %cst_13 = arith.constant dense<0.000000e+00> : vector<64x128xf32>
    %14 = tpu.matmul %12, %13, %cst_13 {dimension_numbers = #tpu.dot_dimension_numbers<[1], [0], [0], [1], [0, 0, 1, 1], [], []>} : vector<64x32xbf16>, vector<32x128xbf16>, vector<64x128xf32> -> vector<64x128xf32>
    %c0_14 = arith.constant 0 : index
    %c0_15 = arith.constant 0 : index
    %15 = vector.load %arg8[%c0_14, %c0_15] : memref<1x128xf32, #tpu.memory_space<vmem>>, vector<1x128xf32>
    %16 = vector.broadcast %15 : vector<1x128xf32> to vector<64x128xf32>
    %17 = arith.mulf %14, %16 : vector<64x128xf32>
    %c0_16 = arith.constant 0 : index
    %c0_17 = arith.constant 0 : index
    %18 = vector.load %arg9[%c0_16, %c0_17] : memref<1x128xf32, #tpu.memory_space<vmem>>, vector<1x128xf32>
    %19 = vector.broadcast %18 : vector<1x128xf32> to vector<64x128xf32>
    %20 = arith.addf %17, %19 : vector<64x128xf32>
    %21 = arith.addf %9, %20 : vector<64x128xf32>
    %cst_18 = arith.constant 0.000000e+00 : f32
    %22 = vector.broadcast %cst_18 : f32 to vector<64x128xf32>
    %23 = arith.maximumf %21, %22 : vector<64x128xf32>
    %24 = arith.truncf %23 : vector<64x128xf32> to vector<64x128xbf16>
    %c0_19 = arith.constant 0 : index
    %c0_20 = arith.constant 0 : index
    %c0_21 = arith.constant 0 : index
    %25 = vector.load %arg10[%c0_19, %c0_20, %c0_21] : memref<1x64x128xbf16, #tpu.memory_space<vmem>>, vector<1x64x128xbf16>
    %26 = vector.shape_cast %25 : vector<1x64x128xbf16> to vector<64x128xbf16>
    %27 = vector.shape_cast %24 : vector<64x128xbf16> to vector<1x64x128xbf16>
    tpu.vector_store %arg10[%c0_19, %c0_20, %c0_21], %27 {strides = array<i32>} : memref<1x64x128xbf16, #tpu.memory_space<vmem>>, vector<1x64x128xbf16>,
    return
  }
  func.func @transform_0(%arg0: i32, %arg1: i32) -> (i32, i32, i32) {
    %c0_i32 = arith.constant 0 : i32
    %c0_i32_0 = arith.constant 0 : i32
    return %arg0, %arg1, %c0_i32 : i32, i32, i32
  }
  func.func @transform_1(%arg0: i32, %arg1: i32) -> (i32, i32) {
    %c0_i32 = arith.constant 0 : i32
    %c0_i32_0 = arith.constant 0 : i32
    %c0_i32_1 = arith.constant 0 : i32
    return %c0_i32, %c0_i32_0 : i32, i32
  }
  func.func @transform_2(%arg0: i32, %arg1: i32) -> (i32, i32) {
    %c0_i32 = arith.constant 0 : i32
    %c0_i32_0 = arith.constant 0 : i32
    %c0_i32_1 = arith.constant 0 : i32
    return %c0_i32, %c0_i32_0 : i32, i32
  }
  func.func @transform_3(%arg0: i32, %arg1: i32) -> (i32, i32) {
    %c0_i32 = arith.constant 0 : i32
    %c0_i32_0 = arith.constant 0 : i32
    %c0_i32_1 = arith.constant 0 : i32
    return %c0_i32, %c0_i32_0 : i32, i32
  }
  func.func @transform_4(%arg0: i32, %arg1: i32) -> (i32, i32, i32) {
    %c0_i32 = arith.constant 0 : i32
    %c0_i32_0 = arith.constant 0 : i32
    return %arg0, %arg1, %c0_i32 : i32, i32, i32
  }
  func.func @transform_5(%arg0: i32, %arg1: i32) -> (i32, i32) {
    %c0_i32 = arith.constant 0 : i32
    %c0_i32_0 = arith.constant 0 : i32
    %c0_i32_1 = arith.constant 0 : i32
    return %c0_i32, %c0_i32_0 : i32, i32
  }
  func.func @transform_6(%arg0: i32, %arg1: i32) -> (i32, i32) {
    %c0_i32 = arith.constant 0 : i32
    %c0_i32_0 = arith.constant 0 : i32
    %c0_i32_1 = arith.constant 0 : i32
    return %c0_i32, %c0_i32_0 : i32, i32
  }
  func.func @transform_7(%arg0: i32, %arg1: i32) -> (i32, i32) {
    %c0_i32 = arith.constant 0 : i32
    %c0_i32_0 = arith.constant 0 : i32
    %c0_i32_1 = arith.constant 0 : i32
    return %c0_i32, %c0_i32_0 : i32, i32
  }
  func.func @transform_8(%arg0: i32, %arg1: i32) -> (i32, i32, i32) {
    %c0_i32 = arith.constant 0 : i32
    %c0_i32_0 = arith.constant 0 : i32
    return %arg0, %arg1, %c0_i32 : i32, i32, i32
  }
}

</mosaic_0001>

<llo_original>
// kernel: res_bottleneck_block.3
$region0: #{res_bottleneck_block.3}
  #allocation0 [shape = 'u32[]', space=smem, size = 0x4, offset = 0x4, fixed_abs, tag = 'smem constant byte address 0x4 - core index']
  #allocation1 [shape = 'u32[72,128]{1,0:T(1,128)}', space=vmem, size = 0x9000, scoped, tag = 'internal scratch']
  %s0 = inlined_call_operand.vmem [shape: bf16[2,64,128], index: 0, kind: input, shape index: {}]
  %s1 = inlined_call_operand.vmem [shape: bf16[128,128], index: 1, kind: input, shape index: {}]
  %s2 = inlined_call_operand.vmem [shape: f32[1,128], index: 2, kind: input, shape index: {}]
  %s3 = inlined_call_operand.vmem [shape: f32[1,128], index: 3, kind: input, shape index: {}]
  %s4 = inlined_call_operand.vmem [shape: f32[2,64,32], index: 4, kind: input, shape index: {}]
  %s5 = inlined_call_operand.vmem [shape: bf16[32,128], index: 5, kind: input, shape index: {}]
  %s6 = inlined_call_operand.vmem [shape: f32[1,128], index: 6, kind: input, shape index: {}]
  %s7 = inlined_call_operand.vmem [shape: f32[1,128], index: 7, kind: input, shape index: {}]
  %s8 = inlined_call_operand.hbm [shape: bf16[2,64,128], index: 8, kind: output, shape index: {}]
  %s9 = sld [smem:[#allocation0]]
  $region65: #{res_bottleneck_block.3} parent=0
    _
  %s11 = ssub.s32 1, %s9
  %s12 = scalar_select 0, %s11, %s9
  $region1: #{res_bottleneck_block.3} parent=0
    #allocation2 [shape = 'u8[32768]{0}', space=vmem, size = 0x8000, scoped, tag = 'output window, operand 0']
    #allocation3 [shape = 's32[2]{0}', space=sflag, size = 0x8, scoped, tag = 'scoped memory for res_bottleneck_block.3']
    %13 = vsyncpa [#allocation3], 0
    %s14 = scalar_lea.sflag [#allocation3], 1
    %15 = vsyncpa %s14, 0
    loop: start=0, step=1, limit=4
    $region2: #{res_bottleneck_block.3} parent=1 // loop_pre_header
      _
    $region3: #{res_bottleneck_block.3} parent=1 // loop_header
      %s17 = sphi 0, %s21
      %p18 = scmp.ge.s32.totalorder %s17, 4
      %s24 = sphi 0, %s36
      %s25 = sphi 0, %s32
      %s26 = sphi 0, %s24
      %s27 = sphi 0, %s25
      %s28 = sphi 0, %s26
      %s29 = sphi 0, %s27
      %s41 = sphi 0, %s43
      %s44 = sphi 0, %s41
      %s45 = sphi 0, %s44
      %s61 = sphi 0, %s45
      %s65 = sphi 0, %s65
      %s67 = sphi 0, %s65
      %s68 = sphi 0, %s67
      %s82 = sphi 0, %s68
      %s86 = sphi 0, %s86
      %s88 = sphi 0, %s86
      %s89 = sphi 0, %s88
      %s103 = sphi 0, %s89
      %s107 = sphi 0, %s107
      %s109 = sphi 0, %s107
      %s110 = sphi 0, %s109
      %s124 = sphi 0, %s110
      %s132 = sphi 0, %s134
      %s135 = sphi 0, %s132
      %s136 = sphi 0, %s135
      %s152 = sphi 0, %s136
      %s156 = sphi 0, %s156
      %s158 = sphi 0, %s156
      %s159 = sphi 0, %s158
      %s173 = sphi 0, %s159
      %s177 = sphi 0, %s177
      %s179 = sphi 0, %s177
      %s180 = sphi 0, %s179
      %s194 = sphi 0, %s180
      %s198 = sphi 0, %s198
      %s200 = sphi 0, %s198
      %s201 = sphi 0, %s200
      %s215 = sphi 0, %s201
      %s223 = sphi 0, %s225
      %s226 = sphi 0, %s223
      %s227 = sphi 0, %s226
      %s243 = sphi 0, %s227
    $region4: #{res_bottleneck_block.3} parent=1 // loop_header_branch
      %20 = sbr.rel (%p18) target = $region8
    $region5: #{res_bottleneck_block.3} parent=1 // loop_body
      %s22 = ssub.s32 %s17, 1
      %s23 = ssub.s32 %s17, 2
      %s30 = sadd.s32 1, %s25
      %p31 = scmp.ge.s32.totalorder %s30, 1
      %s32 = scalar_select %p31, 0, %s30
      %s33 = sadd.s32 1, %s24
      %s34 = scalar_select %p31, %s33, %s24
      %p35 = scmp.ge.s32.totalorder %s34, 2
      %s36 = scalar_select %p35, 0, %s34
      %s37 = ssub.s32 %s24, %s36
      %s38 = ssub.s32 %s25, %s32
      %s39 = sor.u32 %s37, %s38
      %p40 = scmp.eq.s32.totalorder %s39, 0
      %s42 = sadd.s32 %s41, 1
      %s43 = scalar_select %p40, %s41, %s42
      %p46 = pneg %p40
      %p47 = scmp.eq.s32.totalorder %s17, 1
      %p48 = por %p46, %p47
      %p49 = scmp.ne.s32.totalorder %s41, %s44
      %p50 = scmp.eq.s32.totalorder %s17, 0
      %p51 = por %p49, %p50
      %p52 = scmp.ne.s32.totalorder %s41, %s44
      %p53 = scmp.eq.s32.totalorder %s22, 1
      %p54 = por %p52, %p53
      %p55 = scmp.ne.s32.totalorder %s44, %s45
      %p56 = scmp.eq.s32.totalorder %s22, 0
      %p57 = por %p55, %p56
      %p58 = scmp.ne.s32.totalorder %s44, %s45
      %p59 = scmp.eq.s32.totalorder %s23, 1
      %p60 = por %p58, %p59
      %p62 = scmp.ne.s32.totalorder %s45, %s61
      %p63 = scmp.eq.s32.totalorder %s23, 0
      %p64 = por %p62, %p63
      %s66 = sadd.s32 %s65, 1
      %p69 = scmp.eq.s32.totalorder %s17, 1
      %p70 = scmp.ne.s32.totalorder %s65, %s67
      %p71 = scmp.eq.s32.totalorder %s17, 0
      %p72 = por %p70, %p71
      %p73 = scmp.ne.s32.totalorder %s65, %s67
      %p74 = scmp.eq.s32.totalorder %s22, 1
      %p75 = por %p73, %p74
      %p76 = scmp.ne.s32.totalorder %s67, %s68
      %p77 = scmp.eq.s32.totalorder %s22, 0
      %p78 = por %p76, %p77
      %p79 = scmp.ne.s32.totalorder %s67, %s68
      %p80 = scmp.eq.s32.totalorder %s23, 1
      %p81 = por %p79, %p80
      %p83 = scmp.ne.s32.totalorder %s68, %s82
      %p84 = scmp.eq.s32.totalorder %s23, 0
      %p85 = por %p83, %p84
      %s87 = sadd.s32 %s86, 1
      %p90 = scmp.eq.s32.totalorder %s17, 1
      %p91 = scmp.ne.s32.totalorder %s86, %s88
      %p92 = scmp.eq.s32.totalorder %s17, 0
      %p93 = por %p91, %p92
      %p94 = scmp.ne.s32.totalorder %s86, %s88
      %p95 = scmp.eq.s32.totalorder %s22, 1
      %p96 = por %p94, %p95
      %p97 = scmp.ne.s32.totalorder %s88, %s89
      %p98 = scmp.eq.s32.totalorder %s22, 0
      %p99 = por %p97, %p98
      %p100 = scmp.ne.s32.totalorder %s88, %s89
      %p101 = scmp.eq.s32.totalorder %s23, 1
      %p102 = por %p100, %p101
      %p104 = scmp.ne.s32.totalorder %s89, %s103
      %p105 = scmp.eq.s32.totalorder %s23, 0
      %p106 = por %p104, %p105
      %s108 = sadd.s32 %s107, 1
      %p111 = scmp.eq.s32.totalorder %s17, 1
      %p112 = scmp.ne.s32.totalorder %s107, %s109
      %p113 = scmp.eq.s32.totalorder %s17, 0
      %p114 = por %p112, %p113
      %p115 = scmp.ne.s32.totalorder %s107, %s109
      %p116 = scmp.eq.s32.totalorder %s22, 1
      %p117 = por %p115, %p116
      %p118 = scmp.ne.s32.totalorder %s109, %s110
      %p119 = scmp.eq.s32.totalorder %s22, 0
      %p120 = por %p118, %p119
      %p121 = scmp.ne.s32.totalorder %s109, %s110
      %p122 = scmp.eq.s32.totalorder %s23, 1
      %p123 = por %p121, %p122
      %p125 = scmp.ne.s32.totalorder %s110, %s124
      %p126 = scmp.eq.s32.totalorder %s23, 0
      %p127 = por %p125, %p126
      %s128 = ssub.s32 %s24, %s36
      %s129 = ssub.s32 %s25, %s32
      %s130 = sor.u32 %s128, %s129
      %p131 = scmp.eq.s32.totalorder %s130, 0
      %s133 = sadd.s32 %s132, 1
      %s134 = scalar_select %p131, %s132, %s133
      %p137 = pneg %p131
      %p138 = scmp.eq.s32.totalorder %s17, 1
      %p139 = por %p137, %p138
      %p140 = scmp.ne.s32.totalorder %s132, %s135
      %p141 = scmp.eq.s32.totalorder %s17, 0
      %p142 = por %p140, %p141
      %p143 = scmp.ne.s32.totalorder %s132, %s135
      %p144 = scmp.eq.s32.totalorder %s22, 1
      %p145 = por %p143, %p144
      %p146 = scmp.ne.s32.totalorder %s135, %s136
      %p147 = scmp.eq.s32.totalorder %s22, 0
      %p148 = por %p146, %p147
      %p149 = scmp.ne.s32.totalorder %s135, %s136
      %p150 = scmp.eq.s32.totalorder %s23, 1
      %p151 = por %p149, %p150
      %p153 = scmp.ne.s32.totalorder %s136, %s152
      %p154 = scmp.eq.s32.totalorder %s23, 0
      %p155 = por %p153, %p154
      %s157 = sadd.s32 %s156, 1
      %p160 = scmp.eq.s32.totalorder %s17, 1
      %p161 = scmp.ne.s32.totalorder %s156, %s158
      %p162 = scmp.eq.s32.totalorder %s17, 0
      %p163 = por %p161, %p162
      %p164 = scmp.ne.s32.totalorder %s156, %s158
      %p165 = scmp.eq.s32.totalorder %s22, 1
      %p166 = por %p164, %p165
      %p167 = scmp.ne.s32.totalorder %s158, %s159
      %p168 = scmp.eq.s32.totalorder %s22, 0
      %p169 = por %p167, %p168
      %p170 = scmp.ne.s32.totalorder %s158, %s159
      %p171 = scmp.eq.s32.totalorder %s23, 1
      %p172 = por %p170, %p171
      %p174 = scmp.ne.s32.totalorder %s159, %s173
      %p175 = scmp.eq.s32.totalorder %s23, 0
      %p176 = por %p174, %p175
      %s178 = sadd.s32 %s177, 1
      %p181 = scmp.eq.s32.totalorder %s17, 1
      %p182 = scmp.ne.s32.totalorder %s177, %s179
      %p183 = scmp.eq.s32.totalorder %s17, 0
      %p184 = por %p182, %p183
      %p185 = scmp.ne.s32.totalorder %s177, %s179
      %p186 = scmp.eq.s32.totalorder %s22, 1
      %p187 = por %p185, %p186
      %p188 = scmp.ne.s32.totalorder %s179, %s180
      %p189 = scmp.eq.s32.totalorder %s22, 0
      %p190 = por %p188, %p189
      %p191 = scmp.ne.s32.totalorder %s179, %s180
      %p192 = scmp.eq.s32.totalorder %s23, 1
      %p193 = por %p191, %p192
      %p195 = scmp.ne.s32.totalorder %s180, %s194
      %p196 = scmp.eq.s32.totalorder %s23, 0
      %p197 = por %p195, %p196
      %s199 = sadd.s32 %s198, 1
      %p202 = scmp.eq.s32.totalorder %s17, 1
      %p203 = scmp.ne.s32.totalorder %s198, %s200
      %p204 = scmp.eq.s32.totalorder %s17, 0
      %p205 = por %p203, %p204
      %p206 = scmp.ne.s32.totalorder %s198, %s200
      %p207 = scmp.eq.s32.totalorder %s22, 1
      %p208 = por %p206, %p207
      %p209 = scmp.ne.s32.totalorder %s200, %s201
      %p210 = scmp.eq.s32.totalorder %s22, 0
      %p211 = por %p209, %p210
      %p212 = scmp.ne.s32.totalorder %s200, %s201
      %p213 = scmp.eq.s32.totalorder %s23, 1
      %p214 = por %p212, %p213
      %p216 = scmp.ne.s32.totalorder %s201, %s215
      %p217 = scmp.eq.s32.totalorder %s23, 0
      %p218 = por %p216, %p217
      %s219 = ssub.s32 %s24, %s36
      %s220 = ssub.s32 %s25, %s32
      %s221 = sor.u32 %s219, %s220
      %p222 = scmp.eq.s32.totalorder %s221, 0
      %s224 = sadd.s32 %s223, 1
      %s225 = scalar_select %p222, %s223, %s224
      %p228 = pneg %p222
      %p229 = scmp.eq.s32.totalorder %s17, 1
      %p230 = por %p228, %p229
      %p231 = scmp.ne.s32.totalorder %s223, %s226
      %p232 = scmp.eq.s32.totalorder %s17, 0
      %p233 = por %p231, %p232
      %p234 = scmp.ne.s32.totalorder %s223, %s226
      %p235 = scmp.eq.s32.totalorder %s22, 1
      %p236 = por %p234, %p235
      %p237 = scmp.ne.s32.totalorder %s226, %s227
      %p238 = scmp.eq.s32.totalorder %s22, 0
      %p239 = por %p237, %p238
      %p240 = scmp.ne.s32.totalorder %s226, %s227
      %p241 = scmp.eq.s32.totalorder %s23, 1
      %p242 = por %p240, %p241
      %p244 = scmp.ne.s32.totalorder %s227, %s243
      %p245 = scmp.eq.s32.totalorder %s23, 0
      %p246 = por %p244, %p245
      %p247 = scmp.le.s32.totalorder 1, %s17
      %p248 = scmp.lt.s32.totalorder %s17, 3
      %p249 = pnand %p247, %p248
      %p250 = pneg %p249
      // Predicated region
      $region9: #{res_bottleneck_block.3} parent=5 // pred_check
        _
      $region10: #{res_bottleneck_block.3} parent=5 // pred_check_branch
        %252 = sbr.rel (%p249) target = $region12
      $region11: #{res_bottleneck_block.3} parent=5 // pred_region
        %s253 = ssub.s32 %s17, 1
        // Predicated region
        $region13: #{res_bottleneck_block.3} parent=11 // pred_check
          %p254 = pneg %p78
        $region14: #{res_bottleneck_block.3} parent=11 // pred_check_branch
          %256 = sbr.rel (%p254) target = $region16
        $region15: #{res_bottleneck_block.3} parent=11 // pred_region
          _
        $region16: #{res_bottleneck_block.3} parent=11 // pred_fallthru
          _
        // Predicated region
        $region17: #{res_bottleneck_block.3} parent=11 // pred_check
          %p257 = pneg %p99
        $region18: #{res_bottleneck_block.3} parent=11 // pred_check_branch
          %259 = sbr.rel (%p257) target = $region20
        $region19: #{res_bottleneck_block.3} parent=11 // pred_region
          _
        $region20: #{res_bottleneck_block.3} parent=11 // pred_fallthru
          _
        // Predicated region
        $region21: #{res_bottleneck_block.3} parent=11 // pred_check
          %p260 = pneg %p120
        $region22: #{res_bottleneck_block.3} parent=11 // pred_check_branch
          %262 = sbr.rel (%p260) target = $region24
        $region23: #{res_bottleneck_block.3} parent=11 // pred_region
          _
        $region24: #{res_bottleneck_block.3} parent=11 // pred_fallthru
          _
        // Predicated region
        $region25: #{res_bottleneck_block.3} parent=11 // pred_check
          %p263 = pneg %p169
        $region26: #{res_bottleneck_block.3} parent=11 // pred_check_branch
          %265 = sbr.rel (%p263) target = $region28
        $region27: #{res_bottleneck_block.3} parent=11 // pred_region
          _
        $region28: #{res_bottleneck_block.3} parent=11 // pred_fallthru
          _
        // Predicated region
        $region29: #{res_bottleneck_block.3} parent=11 // pred_check
          %p266 = pneg %p190
        $region30: #{res_bottleneck_block.3} parent=11 // pred_check_branch
          %268 = sbr.rel (%p266) target = $region32
        $region31: #{res_bottleneck_block.3} parent=11 // pred_region
          _
        $region32: #{res_bottleneck_block.3} parent=11 // pred_fallthru
          _
        // Predicated region
        $region33: #{res_bottleneck_block.3} parent=11 // pred_check
          %p269 = pneg %p211
        $region34: #{res_bottleneck_block.3} parent=11 // pred_check_branch
          %271 = sbr.rel (%p269) target = $region36
        $region35: #{res_bottleneck_block.3} parent=11 // pred_region
          _
        $region36: #{res_bottleneck_block.3} parent=11 // pred_fallthru
          _
      $region12: #{res_bottleneck_block.3} parent=5 // pred_fallthru
        _
      %p272 = scmp.lt.s32.totalorder %s17, 2
      // Predicated region
      $region37: #{res_bottleneck_block.3} parent=5 // pred_check
        %p273 = pneg %p272
      $region38: #{res_bottleneck_block.3} parent=5 // pred_check_branch
        %275 = sbr.rel (%p273) target = $region40
      $region39: #{res_bottleneck_block.3} parent=5 // pred_region
        // Predicated region
        $region41: #{res_bottleneck_block.3} parent=39 // pred_check
          %p276 = pneg %p51
        $region42: #{res_bottleneck_block.3} parent=39 // pred_check_branch
          %278 = sbr.rel (%p276) target = $region44
        $region43: #{res_bottleneck_block.3} parent=39 // pred_region
          %s279 = smul.u32 8, %s25
          %p280 = scmp.lt.s32.totalorder %s24, 1
          %s281 = scalar_select %p280, %s24, 1
          %p282 = scmp.lt.s32.totalorder %s279, 7
          %s283 = scalar_select %p282, %s279, 7
          %s284 = smul.addr %s281, 8
          %s285 = sadd.s32 %s283, %s284
          %s286 = smul.addr %s285, 4
          %s287 = scalar_lea.vmem %s0, %s286
          %s288 = smul.u32 8, %s25
        $region44: #{res_bottleneck_block.3} parent=39 // pred_fallthru
          _
        // Predicated region
        $region45: #{res_bottleneck_block.3} parent=39 // pred_check
          %p289 = pneg %p142
        $region46: #{res_bottleneck_block.3} parent=39 // pred_check_branch
          %291 = sbr.rel (%p289) target = $region48
        $region47: #{res_bottleneck_block.3} parent=39 // pred_region
          %s292 = smul.u32 8, %s25
          %p293 = scmp.lt.s32.totalorder %s24, 1
          %s294 = scalar_select %p293, %s24, 1
          %p295 = scmp.lt.s32.totalorder %s292, 7
          %s296 = scalar_select %p295, %s292, 7
          %s297 = smul.addr %s294, 8
          %s298 = sadd.s32 %s296, %s297
          %s299 = smul.addr %s298, 8
          %s300 = scalar_lea.vmem %s4, %s299
          %s301 = smul.u32 8, %s25
        $region48: #{res_bottleneck_block.3} parent=39 // pred_fallthru
          _
      $region40: #{res_bottleneck_block.3} parent=5 // pred_fallthru
        _
      %p302 = scmp.le.s32.totalorder 1, %s17
      %p303 = scmp.lt.s32.totalorder %s17, 3
      %p304 = pnand %p302, %p303
      %p305 = pneg %p304
      // Predicated region
      $region49: #{res_bottleneck_block.3} parent=5 // pred_check
        _
      $region50: #{res_bottleneck_block.3} parent=5 // pred_check_branch
        %307 = sbr.rel (%p304) target = $region52
      $region51: #{res_bottleneck_block.3} parent=5 // pred_region
        %s308 = ssub.s32 %s17, 1
        %s309 = smul.u32 8, %s27
        %p310 = scmp.lt.s32.totalorder %s26, 1
        %s311 = scalar_select %p310, %s26, 1
        %p312 = scmp.lt.s32.totalorder %s309, 7
        %s313 = scalar_select %p312, %s309, 7
        %s314 = smul.addr %s311, 8
        %s315 = sadd.s32 %s313, %s314
        %s316 = smul.addr %s315, 4
        %s317 = scalar_lea.vmem %s0, %s316
        %p318 = pneg %p57
        %p319 = pneg %p54
        %p320 = pneg %p78
        %p321 = pneg %p75
        %p322 = pneg %p99
        %p323 = pneg %p96
        %p324 = pneg %p120
        %p325 = pneg %p117
        %s326 = smul.u32 8, %s27
        %p327 = scmp.lt.s32.totalorder %s26, 1
        %s328 = scalar_select %p327, %s26, 1
        %p329 = scmp.lt.s32.totalorder %s326, 7
        %s330 = scalar_select %p329, %s326, 7
        %s331 = smul.addr %s328, 8
        %s332 = sadd.s32 %s330, %s331
        %s333 = smul.addr %s332, 8
        %s334 = scalar_lea.vmem %s4, %s333
        %p335 = pneg %p148
        %p336 = pneg %p145
        %p337 = pneg %p169
        %p338 = pneg %p166
        %p339 = pneg %p190
        %p340 = pneg %p187
        %p341 = pneg %p211
        %p342 = pneg %p208
        %p343 = pneg %p239
        %p344 = pneg %p236
        %s345 = sand.u32 %s226, 1
        %s346 = scalar_lea.sflag [#allocation3], %s345
        %s347 = sand.u32 %s226, 1
        %s348 = smul.addr %s347, 32
        %s349 = scalar_lea.vmem [#allocation2], %s348
        %s350 = smul.u32 8, %s27
        %p351 = scmp.lt.s32.totalorder %s26, 1
        %s352 = scalar_select %p351, %s26, 1
        %p353 = scmp.lt.s32.totalorder %s350, 7
        %s354 = scalar_select %p353, %s350, 7
        %s355 = smul.addr %s352, 8
        %s356 = sadd.s32 %s354, %s355
        %s357 = smul.addr %s356, 4
        %s358 = scalar_lea.vmem %s0, %s357
        %s359 = smul.u32 8, %s27
        %s360 = smul.u32 8, %s27
        %p361 = scmp.lt.s32.totalorder %s26, 1
        %s362 = scalar_select %p361, %s26, 1
        %p363 = scmp.lt.s32.totalorder %s360, 7
        %s364 = scalar_select %p363, %s360, 7
        %s365 = smul.addr %s362, 8
        %s366 = sadd.s32 %s364, %s365
        %s367 = smul.addr %s366, 8
        %s368 = scalar_lea.vmem %s4, %s367
        %s369 = smul.u32 8, %s27
        %s370 = smul.u32 8, %s27
        %v372 = vld [vmem:[%s358] sm:$0xf]
        %v373 = vld [vmem:[%s358 + $0x4] sm:$0xf]
        %v374 = vld [vmem:[%s358 + $0x8] sm:$0xf]
        %v375 = vld [vmem:[%s358 + $0xc] sm:$0xf]
        %v376 = vld [vmem:[%s358 + $0x10] sm:$0xf]
        %v377 = vld [vmem:[%s358 + $0x14] sm:$0xf]
        %v378 = vld [vmem:[%s358 + $0x18] sm:$0xf]
        %v379 = vld [vmem:[%s358 + $0x1c] sm:$0xf]
        %v380 = vld [vmem:[%s1] sm:$0xf]
        %v381 = vld [vmem:[%s1 + $0x4] sm:$0xf]
        %v382 = vld [vmem:[%s1 + $0x8] sm:$0xf]
        %v383 = vld [vmem:[%s1 + $0xc] sm:$0xf]
        %v384 = vld [vmem:[%s1 + $0x10] sm:$0xf]
        %v385 = vld [vmem:[%s1 + $0x14] sm:$0xf]
        %v386 = vld [vmem:[%s1 + $0x18] sm:$0xf]
        %v387 = vld [vmem:[%s1 + $0x1c] sm:$0xf]
        %v388 = vld [vmem:[%s1 + $0x20] sm:$0xf]
        %v389 = vld [vmem:[%s1 + $0x24] sm:$0xf]
        %v390 = vld [vmem:[%s1 + $0x28] sm:$0xf]
        %v391 = vld [vmem:[%s1 + $0x2c] sm:$0xf]
        %v392 = vld [vmem:[%s1 + $0x30] sm:$0xf]
        %v393 = vld [vmem:[%s1 + $0x34] sm:$0xf]
        %v394 = vld [vmem:[%s1 + $0x38] sm:$0xf]
        %v395 = vld [vmem:[%s1 + $0x3c] sm:$0xf]
        %v404 = vunpack.c.l.b16 %v372
        %v405 = vunpack.c.l.b16 %v373
        %v406 = vunpack.c.l.b16 %v374
        %v407 = vunpack.c.l.b16 %v375
        %v408 = vunpack.c.l.b16 %v376
        %v409 = vunpack.c.l.b16 %v377
        %v410 = vunpack.c.l.b16 %v378
        %v411 = vunpack.c.l.b16 %v379
        %v412 = vpack.c.b16 %v405, %v404
        %v413 = vpack.c.b16 %v407, %v406
        %v414 = vpack.c.b16 %v409, %v408
        %v415 = vpack.c.b16 %v411, %v410
        %v436 = vunpack.c.l.b16 %v380
        %v437 = vunpack.c.l.b16 %v381
        %v438 = vunpack.c.l.b16 %v382
        %v439 = vunpack.c.l.b16 %v383
        %v440 = vunpack.c.l.b16 %v384
        %v441 = vunpack.c.l.b16 %v385
        %v442 = vunpack.c.l.b16 %v386
        %v443 = vunpack.c.l.b16 %v387
        %v444 = vunpack.c.l.b16 %v388
        %v445 = vunpack.c.l.b16 %v389
        %v446 = vunpack.c.l.b16 %v390
        %v447 = vunpack.c.l.b16 %v391
        %v448 = vunpack.c.l.b16 %v392
        %v449 = vunpack.c.l.b16 %v393
        %v450 = vunpack.c.l.b16 %v394
        %v451 = vunpack.c.l.b16 %v395
        %v452 = vpack.c.b16 %v437, %v436
        %v453 = vpack.c.b16 %v439, %v438
        %v454 = vpack.c.b16 %v441, %v440
        %v455 = vpack.c.b16 %v443, %v442
        %v456 = vpack.c.b16 %v445, %v444
        %v457 = vpack.c.b16 %v447, %v446
        %v458 = vpack.c.b16 %v449, %v448
        %v459 = vpack.c.b16 %v451, %v450
        %468 = vmatpush.bf16.msra.mxu0 %v459
        %469 = vmatpush.bf16.msra.mxu0 %v458
        %470 = vmatpush.bf16.msra.mxu0 %v457
        %471 = vmatpush.bf16.msra.mxu0 %v456
        %472 = vmatpush.bf16.msra.mxu0 %v455
        %473 = vmatpush.bf16.msra.mxu0 %v454
        %474 = vmatpush.bf16.msra.mxu0 %v453
        %475 = vmatpush.bf16.msra.mxu0 %v452
        %476 = vmatmul.bf16.gmra.mxu0 %v412
        %v477 = vpop.f32.mrf.mxu0
        %v478 = vadd.f32 0.0, %v477
        %v479 = vpop.f32.mrf.mxu0
        %v480 = vadd.f32 0.0, %v479
        %481 = vmatmul.bf16.gmra.mxu0 %v413
        %v482 = vpop.f32.mrf.mxu0
        %v483 = vadd.f32 0.0, %v482
        %v484 = vpop.f32.mrf.mxu0
        %v485 = vadd.f32 0.0, %v484
        %486 = vmatmul.bf16.gmra.mxu0 %v414
        %v487 = vpop.f32.mrf.mxu0
        %v488 = vadd.f32 0.0, %v487
        %v489 = vpop.f32.mrf.mxu0
        %v490 = vadd.f32 0.0, %v489
        %491 = vmatmul.bf16.gmra.mxu0 %v415
        %v492 = vpop.f32.mrf.mxu0
        %v493 = vadd.f32 0.0, %v492
        %v494 = vpop.f32.mrf.mxu0
        %v495 = vadd.f32 0.0, %v494
        %496 = vdwg.mxu0
        %v497 = vld [vmem:[%s2] sm:$0x1]
        %v499 = vperm.slane %v497, 0
        %v501 = vmul.f32 %v478, %v499
        %v502 = vmul.f32 %v480, %v499
        %v503 = vmul.f32 %v483, %v499
        %v504 = vmul.f32 %v485, %v499
        %v505 = vmul.f32 %v488, %v499
        %v506 = vmul.f32 %v490, %v499
        %v507 = vmul.f32 %v493, %v499
        %v508 = vmul.f32 %v495, %v499
        %v509 = vld [vmem:[%s3] sm:$0x1]
        %v511 = vperm.slane %v509, 0
        %v513 = vadd.f32 %v501, %v511
        %v514 = vadd.f32 %v502, %v511
        %v515 = vadd.f32 %v503, %v511
        %v516 = vadd.f32 %v504, %v511
        %v517 = vadd.f32 %v505, %v511
        %v518 = vadd.f32 %v506, %v511
        %v519 = vadd.f32 %v507, %v511
        %v520 = vadd.f32 %v508, %v511
        %v521 = vld [vmem:[%s368] sm:$0xff]
        %v522 = vld [vmem:[%s368 + $0x8] sm:$0xff]
        %v523 = vld [vmem:[%s368 + $0x10] sm:$0xff]
        %v524 = vld [vmem:[%s368 + $0x18] sm:$0xff]
        %v525 = vld [vmem:[%s368 + $0x20] sm:$0xff]
        %v526 = vld [vmem:[%s368 + $0x28] sm:$0xff]
        %v527 = vld [vmem:[%s368 + $0x30] sm:$0xff]
        %v528 = vld [vmem:[%s368 + $0x38] sm:$0xff]
        %v529 = vpack.c.bf16 %v522, %v521
        %v530 = vpack.c.bf16 %v524, %v523
        %v531 = vpack.c.bf16 %v526, %v525
        %v532 = vpack.c.bf16 %v528, %v527
        %v533 = vld [vmem:[%s5] sm:$0xf]
        %v534 = vld [vmem:[%s5 + $0x4] sm:$0xf]
        %v535 = vld [vmem:[%s5 + $0x8] sm:$0xf]
        %v536 = vld [vmem:[%s5 + $0xc] sm:$0xf]
        %v541 = vunpack.c.l.b16 %v533
        %v542 = vunpack.c.l.b16 %v534
        %v543 = vunpack.c.l.b16 %v535
        %v544 = vunpack.c.l.b16 %v536
        %v545 = vpack.c.b16 %v542, %v541
        %v546 = vpack.c.b16 %v544, %v543
        %vm549 = vcmask 261120
        %v551 = vsel %vm549, %v529, 0
        %v554 = vsel %vm549, %v530, 0
        %v557 = vsel %vm549, %v531, 0
        %v560 = vsel %vm549, %v532, 0
        %562 = vmatpush.bf16.msra.mxu0 0
        %563 = vmatpush.bf16.msra.mxu0 0
        %564 = vmatpush.bf16.msra.mxu0 0
        %565 = vmatpush.bf16.msra.mxu0 0
        %566 = vmatpush.bf16.msra.mxu0 0
        %567 = vmatpush.bf16.msra.mxu0 0
        %568 = vmatpush.bf16.msra.mxu0 %v546
        %569 = vmatpush.bf16.msra.mxu0 %v545
        %570 = vmatmul.bf16.gmra.mxu0 %v551
        %v571 = vpop.f32.mrf.mxu0
        %v572 = vadd.f32 0.0, %v571
        %v573 = vpop.f32.mrf.mxu0
        %v574 = vadd.f32 0.0, %v573
        %575 = vmatmul.bf16.gmra.mxu0 %v554
        %v576 = vpop.f32.mrf.mxu0
        %v577 = vadd.f32 0.0, %v576
        %v578 = vpop.f32.mrf.mxu0
        %v579 = vadd.f32 0.0, %v578
        %580 = vmatmul.bf16.gmra.mxu0 %v557
        %v581 = vpop.f32.mrf.mxu0
        %v582 = vadd.f32 0.0, %v581
        %v583 = vpop.f32.mrf.mxu0
        %v584 = vadd.f32 0.0, %v583
        %585 = vmatmul.bf16.gmra.mxu0 %v560
        %v586 = vpop.f32.mrf.mxu0
        %v587 = vadd.f32 0.0, %v586
        %v588 = vpop.f32.mrf.mxu0
        %v589 = vadd.f32 0.0, %v588
        %590 = vdwg.mxu0
        %v591 = vld [vmem:[%s6] sm:$0x1]
        %v593 = vperm.slane %v591, 0
        %v595 = vmul.f32 %v572, %v593
        %v596 = vmul.f32 %v574, %v593
        %v597 = vmul.f32 %v577, %v593
        %v598 = vmul.f32 %v579, %v593
        %v599 = vmul.f32 %v582, %v593
        %v600 = vmul.f32 %v584, %v593
        %v601 = vmul.f32 %v587, %v593
        %v602 = vmul.f32 %v589, %v593
        %v603 = vld [vmem:[%s7] sm:$0x1]
        %v605 = vperm.slane %v603, 0
        %v607 = vadd.f32 %v595, %v605
        %v608 = vadd.f32 %v596, %v605
        %v609 = vadd.f32 %v597, %v605
        %v610 = vadd.f32 %v598, %v605
        %v611 = vadd.f32 %v599, %v605
        %v612 = vadd.f32 %v600, %v605
        %v613 = vadd.f32 %v601, %v605
        %v614 = vadd.f32 %v602, %v605
        %v615 = vadd.f32 %v513, %v607
        %v616 = vadd.f32 %v514, %v608
        %v617 = vadd.f32 %v515, %v609
        %v618 = vadd.f32 %v516, %v610
        %v619 = vadd.f32 %v517, %v611
        %v620 = vadd.f32 %v518, %v612
        %v621 = vadd.f32 %v519, %v613
        %v622 = vadd.f32 %v520, %v614
        %v623 = vmax.f32 %v615, 0.0
        %v624 = vmax.f32 %v616, 0.0
        %v625 = vmax.f32 %v617, 0.0
        %v626 = vmax.f32 %v618, 0.0
        %v627 = vmax.f32 %v619, 0.0
        %v628 = vmax.f32 %v620, 0.0
        %v629 = vmax.f32 %v621, 0.0
        %v630 = vmax.f32 %v622, 0.0
        %v631 = vpack.c.bf16 %v623, %v623
        %v632 = vpack.c.bf16 %v624, %v624
        %v633 = vpack.c.bf16 %v625, %v625
        %v634 = vpack.c.bf16 %v626, %v626
        %v635 = vpack.c.bf16 %v627, %v627
        %v636 = vpack.c.bf16 %v628, %v628
        %v637 = vpack.c.bf16 %v629, %v629
        %v638 = vpack.c.bf16 %v630, %v630
        %639 = vst [vmem:[%s349] sm:$0xf] %v631
        %640 = vst [vmem:[%s349 + $0x4] sm:$0xf] %v632
        %641 = vst [vmem:[%s349 + $0x8] sm:$0xf] %v633
        %642 = vst [vmem:[%s349 + $0xc] sm:$0xf] %v634
        %643 = vst [vmem:[%s349 + $0x10] sm:$0xf] %v635
        %644 = vst [vmem:[%s349 + $0x14] sm:$0xf] %v636
        %645 = vst [vmem:[%s349 + $0x18] sm:$0xf] %v637
        %646 = vst [vmem:[%s349 + $0x1c] sm:$0xf] %v638
        %s647 = sand.u32 %s226, 1
        %s648 = scalar_lea.sflag [#allocation3], %s647
        %s649 = sand.u32 %s226, 1
        %s650 = smul.addr %s649, 32
        %s651 = scalar_lea.vmem [#allocation2], %s650
        // Predicated region
        $region53: #{res_bottleneck_block.3} parent=51 // pred_check
          %p652 = pneg %p236
        $region54: #{res_bottleneck_block.3} parent=51 // pred_check_branch
          %654 = sbr.rel (%p652) target = $region56
        $region55: #{res_bottleneck_block.3} parent=51 // pred_region
          %s655 = smul.u32 8, %s27
          %657 = vsyncadd %s648, 0
          %s658 = smul.addr %s26, 8
          %s659 = sadd.s32 %s655, %s658
          %s660 = smul.addr %s659, 4
          %s661 = scalar_lea.hbm %s8, %s660
          %s662 = sshll.u32 %s651, 4
          %s663 = int_to_ptr.vmem [resolvable:$true] %s662
          %s664 = sshll.u32 %s661, 4
          %s665 = int_to_ptr.hbm [resolvable:$true] %s664
          %670 = dma.vmem_to_hbm [thread:$0]  %s663, 512, %s665, %s648, 64, 64, 4
        $region56: #{res_bottleneck_block.3} parent=51 // pred_fallthru
          _
      $region52: #{res_bottleneck_block.3} parent=5 // pred_fallthru
        _
      %p671 = scmp.le.s32.totalorder 2, %s17
      // Predicated region
      $region57: #{res_bottleneck_block.3} parent=5 // pred_check
        %p672 = pneg %p671
      $region58: #{res_bottleneck_block.3} parent=5 // pred_check_branch
        %674 = sbr.rel (%p672) target = $region60
      $region59: #{res_bottleneck_block.3} parent=5 // pred_region
        %s675 = ssub.s32 %s17, 2
        // Predicated region
        $region61: #{res_bottleneck_block.3} parent=59 // pred_check
          %p676 = pneg %p242
        $region62: #{res_bottleneck_block.3} parent=59 // pred_check_branch
          %678 = sbr.rel (%p676) target = $region64
        $region63: #{res_bottleneck_block.3} parent=59 // pred_region
          %s679 = sand.u32 %s227, 1
          %s680 = scalar_lea.sflag [#allocation3], %s679
          %s681 = sand.u32 %s227, 1
          %s682 = smul.addr %s681, 32
          %s683 = scalar_lea.vmem [#allocation2], %s682
          %685 = dma.done %s680, 512
        $region64: #{res_bottleneck_block.3} parent=59 // pred_fallthru
          _
      $region60: #{res_bottleneck_block.3} parent=5 // pred_fallthru
        _
    $region6: #{res_bottleneck_block.3} parent=1 // loop_footer
      %s21 = sadd.s32 1, %s17
    $region7: #{res_bottleneck_block.3} parent=1 // loop_footer_branch
      %16 = sbr.rel target = $region3
    $region8: #{res_bottleneck_block.3} parent=1 // loop_exit
      _
    %686 = vsyncpa [#allocation3], 1
    %s687 = scalar_lea.sflag [#allocation3], 1
    %688 = vsyncpa %s687, 1

// kernel: res_bottleneck_block.2
$region0: #{res_bottleneck_block.2}
  #allocation0 [shape = 'u32[]', space=smem, size = 0x4, offset = 0x4, fixed_abs, tag = 'smem constant byte address 0x4 - core index']
  #allocation1 [shape = 'u32[72,128]{1,0:T(1,128)}', space=vmem, size = 0x9000, scoped, tag = 'internal scratch']
  %s0 = inlined_call_operand.vmem [shape: f32[8,9,9,32], index: 0, kind: input, shape index: {}]
  %s1 = inlined_call_operand.vmem [shape: f32[324,1], index: 1, kind: input, shape index: {}]
  %s2 = inlined_call_operand.vmem [shape: bf16[32,128], index: 2, kind: input, shape index: {}]
  %s3 = inlined_call_operand.vmem [shape: f32[1,128], index: 3, kind: input, shape index: {}]
  %s4 = inlined_call_operand.vmem [shape: f32[1,128], index: 4, kind: input, shape index: {}]
  %s5 = inlined_call_operand.vmem [shape: bf16[9,128,128], index: 5, kind: input, shape index: {}]
  %s6 = inlined_call_operand.vmem [shape: f32[1,128], index: 6, kind: input, shape index: {}]
  %s7 = inlined_call_operand.vmem [shape: f32[1,128], index: 7, kind: input, shape index: {}]
  %s8 = inlined_call_operand.vmem [shape: f32[128,8], index: 8, kind: input, shape index: {}]
  %s9 = inlined_call_operand.vmem [shape: f32[1,8], index: 9, kind: input, shape index: {}]
  %s10 = inlined_call_operand.vmem [shape: f32[8,128], index: 10, kind: input, shape index: {}]
  %s11 = inlined_call_operand.vmem [shape: f32[1,128], index: 11, kind: input, shape index: {}]
  %s12 = inlined_call_operand.vmem [shape: bf16[2,64,128], index: 12, kind: output, shape index: {}]
  %s13 = sld [smem:[#allocation0]]
  $region81: #{res_bottleneck_block.2} parent=0
    _
  %s15 = ssub.s32 1, %s13
  %s16 = scalar_select 0, %s15, %s13
  loop: start=0, step=1, limit=4
  $region2: #{res_bottleneck_block.2} parent=0 // loop_pre_header
    _
  $region3: #{res_bottleneck_block.2} parent=0 // loop_header
    %s18 = sphi 0, %s22
    %p19 = scmp.ge.s32.totalorder %s18, 4
    %s28 = sphi 0, %s30
    %s31 = sphi 0, %s28
    %s32 = sphi 0, %s31
    %s48 = sphi 0, %s32
    %s52 = sphi 0, %s52
    %s54 = sphi 0, %s52
    %s55 = sphi 0, %s54
    %s69 = sphi 0, %s55
    %s73 = sphi 0, %s73
    %s75 = sphi 0, %s73
    %s76 = sphi 0, %s75
    %s90 = sphi 0, %s76
    %s94 = sphi 0, %s94
    %s96 = sphi 0, %s94
    %s97 = sphi 0, %s96
    %s111 = sphi 0, %s97
    %s115 = sphi 0, %s115
    %s117 = sphi 0, %s115
    %s118 = sphi 0, %s117
    %s132 = sphi 0, %s118
    %s136 = sphi 0, %s136
    %s138 = sphi 0, %s136
    %s139 = sphi 0, %s138
    %s153 = sphi 0, %s139
    %s157 = sphi 0, %s157
    %s159 = sphi 0, %s157
    %s160 = sphi 0, %s159
    %s174 = sphi 0, %s160
    %s178 = sphi 0, %s178
    %s180 = sphi 0, %s178
    %s181 = sphi 0, %s180
    %s195 = sphi 0, %s181
    %s199 = sphi 0, %s199
    %s201 = sphi 0, %s199
    %s202 = sphi 0, %s201
    %s216 = sphi 0, %s202
    %s220 = sphi 0, %s220
    %s222 = sphi 0, %s220
    %s223 = sphi 0, %s222
    %s237 = sphi 0, %s223
    %s241 = sphi 0, %s241
    %s243 = sphi 0, %s241
    %s244 = sphi 0, %s243
    %s258 = sphi 0, %s244
    %s262 = sphi 0, %s262
    %s264 = sphi 0, %s262
    %s265 = sphi 0, %s264
    %s279 = sphi 0, %s265
    %s285 = sphi 0, %s287
    %s288 = sphi 0, %s285
    %s289 = sphi 0, %s288
    %s305 = sphi 0, %s289
  $region4: #{res_bottleneck_block.2} parent=0 // loop_header_branch
    %21 = sbr.rel (%p19) target = $region8
  $region5: #{res_bottleneck_block.2} parent=0 // loop_body
    %s23 = ssub.s32 %s18, 1
    %s24 = ssub.s32 %s18, 2
    %s25 = sadd.s32 %s18, 1
    %s26 = ssub.s32 %s18, %s25
    %p27 = scmp.eq.s32.totalorder %s26, 0
    %s29 = sadd.s32 %s28, 1
    %s30 = scalar_select %p27, %s28, %s29
    %p33 = pneg %p27
    %p34 = scmp.eq.s32.totalorder %s18, 1
    %p35 = por %p33, %p34
    %p36 = scmp.ne.s32.totalorder %s28, %s31
    %p37 = scmp.eq.s32.totalorder %s18, 0
    %p38 = por %p36, %p37
    %p39 = scmp.ne.s32.totalorder %s28, %s31
    %p40 = scmp.eq.s32.totalorder %s23, 1
    %p41 = por %p39, %p40
    %p42 = scmp.ne.s32.totalorder %s31, %s32
    %p43 = scmp.eq.s32.totalorder %s23, 0
    %p44 = por %p42, %p43
    %p45 = scmp.ne.s32.totalorder %s31, %s32
    %p46 = scmp.eq.s32.totalorder %s24, 1
    %p47 = por %p45, %p46
    %p49 = scmp.ne.s32.totalorder %s32, %s48
    %p50 = scmp.eq.s32.totalorder %s24, 0
    %p51 = por %p49, %p50
    %s53 = sadd.s32 %s52, 1
    %p56 = scmp.eq.s32.totalorder %s18, 1
    %p57 = scmp.ne.s32.totalorder %s52, %s54
    %p58 = scmp.eq.s32.totalorder %s18, 0
    %p59 = por %p57, %p58
    %p60 = scmp.ne.s32.totalorder %s52, %s54
    %p61 = scmp.eq.s32.totalorder %s23, 1
    %p62 = por %p60, %p61
    %p63 = scmp.ne.s32.totalorder %s54, %s55
    %p64 = scmp.eq.s32.totalorder %s23, 0
    %p65 = por %p63, %p64
    %p66 = scmp.ne.s32.totalorder %s54, %s55
    %p67 = scmp.eq.s32.totalorder %s24, 1
    %p68 = por %p66, %p67
    %p70 = scmp.ne.s32.totalorder %s55, %s69
    %p71 = scmp.eq.s32.totalorder %s24, 0
    %p72 = por %p70, %p71
    %s74 = sadd.s32 %s73, 1
    %p77 = scmp.eq.s32.totalorder %s18, 1
    %p78 = scmp.ne.s32.totalorder %s73, %s75
    %p79 = scmp.eq.s32.totalorder %s18, 0
    %p80 = por %p78, %p79
    %p81 = scmp.ne.s32.totalorder %s73, %s75
    %p82 = scmp.eq.s32.totalorder %s23, 1
    %p83 = por %p81, %p82
    %p84 = scmp.ne.s32.totalorder %s75, %s76
    %p85 = scmp.eq.s32.totalorder %s23, 0
    %p86 = por %p84, %p85
    %p87 = scmp.ne.s32.totalorder %s75, %s76
    %p88 = scmp.eq.s32.totalorder %s24, 1
    %p89 = por %p87, %p88
    %p91 = scmp.ne.s32.totalorder %s76, %s90
    %p92 = scmp.eq.s32.totalorder %s24, 0
    %p93 = por %p91, %p92
    %s95 = sadd.s32 %s94, 1
    %p98 = scmp.eq.s32.totalorder %s18, 1
    %p99 = scmp.ne.s32.totalorder %s94, %s96
    %p100 = scmp.eq.s32.totalorder %s18, 0
    %p101 = por %p99, %p100
    %p102 = scmp.ne.s32.totalorder %s94, %s96
    %p103 = scmp.eq.s32.totalorder %s23, 1
    %p104 = por %p102, %p103
    %p105 = scmp.ne.s32.totalorder %s96, %s97
    %p106 = scmp.eq.s32.totalorder %s23, 0
    %p107 = por %p105, %p106
    %p108 = scmp.ne.s32.totalorder %s96, %s97
    %p109 = scmp.eq.s32.totalorder %s24, 1
    %p110 = por %p108, %p109
    %p112 = scmp.ne.s32.totalorder %s97, %s111
    %p113 = scmp.eq.s32.totalorder %s24, 0
    %p114 = por %p112, %p113
    %s116 = sadd.s32 %s115, 1
    %p119 = scmp.eq.s32.totalorder %s18, 1
    %p120 = scmp.ne.s32.totalorder %s115, %s117
    %p121 = scmp.eq.s32.totalorder %s18, 0
    %p122 = por %p120, %p121
    %p123 = scmp.ne.s32.totalorder %s115, %s117
    %p124 = scmp.eq.s32.totalorder %s23, 1
    %p125 = por %p123, %p124
    %p126 = scmp.ne.s32.totalorder %s117, %s118
    %p127 = scmp.eq.s32.totalorder %s23, 0
    %p128 = por %p126, %p127
    %p129 = scmp.ne.s32.totalorder %s117, %s118
    %p130 = scmp.eq.s32.totalorder %s24, 1
    %p131 = por %p129, %p130
    %p133 = scmp.ne.s32.totalorder %s118, %s132
    %p134 = scmp.eq.s32.totalorder %s24, 0
    %p135 = por %p133, %p134
    %s137 = sadd.s32 %s136, 1
    %p140 = scmp.eq.s32.totalorder %s18, 1
    %p141 = scmp.ne.s32.totalorder %s136, %s138
    %p142 = scmp.eq.s32.totalorder %s18, 0
    %p143 = por %p141, %p142
    %p144 = scmp.ne.s32.totalorder %s136, %s138
    %p145 = scmp.eq.s32.totalorder %s23, 1
    %p146 = por %p144, %p145
    %p147 = scmp.ne.s32.totalorder %s138, %s139
    %p148 = scmp.eq.s32.totalorder %s23, 0
    %p149 = por %p147, %p148
    %p150 = scmp.ne.s32.totalorder %s138, %s139
    %p151 = scmp.eq.s32.totalorder %s24, 1
    %p152 = por %p150, %p151
    %p154 = scmp.ne.s32.totalorder %s139, %s153
    %p155 = scmp.eq.s32.totalorder %s24, 0
    %p156 = por %p154, %p155
    %s158 = sadd.s32 %s157, 1
    %p161 = scmp.eq.s32.totalorder %s18, 1
    %p162 = scmp.ne.s32.totalorder %s157, %s159
    %p163 = scmp.eq.s32.totalorder %s18, 0
    %p164 = por %p162, %p163
    %p165 = scmp.ne.s32.totalorder %s157, %s159
    %p166 = scmp.eq.s32.totalorder %s23, 1
    %p167 = por %p165, %p166
    %p168 = scmp.ne.s32.totalorder %s159, %s160
    %p169 = scmp.eq.s32.totalorder %s23, 0
    %p170 = por %p168, %p169
    %p171 = scmp.ne.s32.totalorder %s159, %s160
    %p172 = scmp.eq.s32.totalorder %s24, 1
    %p173 = por %p171, %p172
    %p175 = scmp.ne.s32.totalorder %s160, %s174
    %p176 = scmp.eq.s32.totalorder %s24, 0
    %p177 = por %p175, %p176
    %s179 = sadd.s32 %s178, 1
    %p182 = scmp.eq.s32.totalorder %s18, 1
    %p183 = scmp.ne.s32.totalorder %s178, %s180
    %p184 = scmp.eq.s32.totalorder %s18, 0
    %p185 = por %p183, %p184
    %p186 = scmp.ne.s32.totalorder %s178, %s180
    %p187 = scmp.eq.s32.totalorder %s23, 1
    %p188 = por %p186, %p187
    %p189 = scmp.ne.s32.totalorder %s180, %s181
    %p190 = scmp.eq.s32.totalorder %s23, 0
    %p191 = por %p189, %p190
    %p192 = scmp.ne.s32.totalorder %s180, %s181
    %p193 = scmp.eq.s32.totalorder %s24, 1
    %p194 = por %p192, %p193
    %p196 = scmp.ne.s32.totalorder %s181, %s195
    %p197 = scmp.eq.s32.totalorder %s24, 0
    %p198 = por %p196, %p197
    %s200 = sadd.s32 %s199, 1
    %p203 = scmp.eq.s32.totalorder %s18, 1
    %p204 = scmp.ne.s32.totalorder %s199, %s201
    %p205 = scmp.eq.s32.totalorder %s18, 0
    %p206 = por %p204, %p205
    %p207 = scmp.ne.s32.totalorder %s199, %s201
    %p208 = scmp.eq.s32.totalorder %s23, 1
    %p209 = por %p207, %p208
    %p210 = scmp.ne.s32.totalorder %s201, %s202
    %p211 = scmp.eq.s32.totalorder %s23, 0
    %p212 = por %p210, %p211
    %p213 = scmp.ne.s32.totalorder %s201, %s202
    %p214 = scmp.eq.s32.totalorder %s24, 1
    %p215 = por %p213, %p214
    %p217 = scmp.ne.s32.totalorder %s202, %s216
    %p218 = scmp.eq.s32.totalorder %s24, 0
    %p219 = por %p217, %p218
    %s221 = sadd.s32 %s220, 1
    %p224 = scmp.eq.s32.totalorder %s18, 1
    %p225 = scmp.ne.s32.totalorder %s220, %s222
    %p226 = scmp.eq.s32.totalorder %s18, 0
    %p227 = por %p225, %p226
    %p228 = scmp.ne.s32.totalorder %s220, %s222
    %p229 = scmp.eq.s32.totalorder %s23, 1
    %p230 = por %p228, %p229
    %p231 = scmp.ne.s32.totalorder %s222, %s223
    %p232 = scmp.eq.s32.totalorder %s23, 0
    %p233 = por %p231, %p232
    %p234 = scmp.ne.s32.totalorder %s222, %s223
    %p235 = scmp.eq.s32.totalorder %s24, 1
    %p236 = por %p234, %p235
    %p238 = scmp.ne.s32.totalorder %s223, %s237
    %p239 = scmp.eq.s32.totalorder %s24, 0
    %p240 = por %p238, %p239
    %s242 = sadd.s32 %s241, 1
    %p245 = scmp.eq.s32.totalorder %s18, 1
    %p246 = scmp.ne.s32.totalorder %s241, %s243
    %p247 = scmp.eq.s32.totalorder %s18, 0
    %p248 = por %p246, %p247
    %p249 = scmp.ne.s32.totalorder %s241, %s243
    %p250 = scmp.eq.s32.totalorder %s23, 1
    %p251 = por %p249, %p250
    %p252 = scmp.ne.s32.totalorder %s243, %s244
    %p253 = scmp.eq.s32.totalorder %s23, 0
    %p254 = por %p252, %p253
    %p255 = scmp.ne.s32.totalorder %s243, %s244
    %p256 = scmp.eq.s32.totalorder %s24, 1
    %p257 = por %p255, %p256
    %p259 = scmp.ne.s32.totalorder %s244, %s258
    %p260 = scmp.eq.s32.totalorder %s24, 0
    %p261 = por %p259, %p260
    %s263 = sadd.s32 %s262, 1
    %p266 = scmp.eq.s32.totalorder %s18, 1
    %p267 = scmp.ne.s32.totalorder %s262, %s264
    %p268 = scmp.eq.s32.totalorder %s18, 0
    %p269 = por %p267, %p268
    %p270 = scmp.ne.s32.totalorder %s262, %s264
    %p271 = scmp.eq.s32.totalorder %s23, 1
    %p272 = por %p270, %p271
    %p273 = scmp.ne.s32.totalorder %s264, %s265
    %p274 = scmp.eq.s32.totalorder %s23, 0
    %p275 = por %p273, %p274
    %p276 = scmp.ne.s32.totalorder %s264, %s265
    %p277 = scmp.eq.s32.totalorder %s24, 1
    %p278 = por %p276, %p277
    %p280 = scmp.ne.s32.totalorder %s265, %s279
    %p281 = scmp.eq.s32.totalorder %s24, 0
    %p282 = por %p280, %p281
    %s283 = ssub.s32 %s18, %s25
    %p284 = scmp.eq.s32.totalorder %s283, 0
    %s286 = sadd.s32 %s285, 1
    %s287 = scalar_select %p284, %s285, %s286
    %p290 = pneg %p284
    %p291 = scmp.eq.s32.totalorder %s18, 1
    %p292 = por %p290, %p291
    %p293 = scmp.ne.s32.totalorder %s285, %s288
    %p294 = scmp.eq.s32.totalorder %s18, 0
    %p295 = por %p293, %p294
    %p296 = scmp.ne.s32.totalorder %s285, %s288
    %p297 = scmp.eq.s32.totalorder %s23, 1
    %p298 = por %p296, %p297
    %p299 = scmp.ne.s32.totalorder %s288, %s289
    %p300 = scmp.eq.s32.totalorder %s23, 0
    %p301 = por %p299, %p300
    %p302 = scmp.ne.s32.totalorder %s288, %s289
    %p303 = scmp.eq.s32.totalorder %s24, 1
    %p304 = por %p302, %p303
    %p306 = scmp.ne.s32.totalorder %s289, %s305
    %p307 = scmp.eq.s32.totalorder %s24, 0
    %p308 = por %p306, %p307
    %p309 = scmp.le.s32.totalorder 1, %s18
    %p310 = scmp.lt.s32.totalorder %s18, 3
    %p311 = pnand %p309, %p310
    %p312 = pneg %p311
    // Predicated region
    $region9: #{res_bottleneck_block.2} parent=5 // pred_check
      _
    $region10: #{res_bottleneck_block.2} parent=5 // pred_check_branch
      %314 = sbr.rel (%p311) target = $region12
    $region11: #{res_bottleneck_block.2} parent=5 // pred_region
      %s315 = ssub.s32 %s18, 1
      // Predicated region
      $region13: #{res_bottleneck_block.2} parent=11 // pred_check
        %p316 = pneg %p65
      $region14: #{res_bottleneck_block.2} parent=11 // pred_check_branch
        %318 = sbr.rel (%p316) target = $region16
      $region15: #{res_bottleneck_block.2} parent=11 // pred_region
        _
      $region16: #{res_bottleneck_block.2} parent=11 // pred_fallthru
        _
      // Predicated region
      $region17: #{res_bottleneck_block.2} parent=11 // pred_check
        %p319 = pneg %p86
      $region18: #{res_bottleneck_block.2} parent=11 // pred_check_branch
        %321 = sbr.rel (%p319) target = $region20
      $region19: #{res_bottleneck_block.2} parent=11 // pred_region
        _
      $region20: #{res_bottleneck_block.2} parent=11 // pred_fallthru
        _
      // Predicated region
      $region21: #{res_bottleneck_block.2} parent=11 // pred_check
        %p322 = pneg %p107
      $region22: #{res_bottleneck_block.2} parent=11 // pred_check_branch
        %324 = sbr.rel (%p322) target = $region24
      $region23: #{res_bottleneck_block.2} parent=11 // pred_region
        _
      $region24: #{res_bottleneck_block.2} parent=11 // pred_fallthru
        _
      // Predicated region
      $region25: #{res_bottleneck_block.2} parent=11 // pred_check
        %p325 = pneg %p128
      $region26: #{res_bottleneck_block.2} parent=11 // pred_check_branch
        %327 = sbr.rel (%p325) target = $region28
      $region27: #{res_bottleneck_block.2} parent=11 // pred_region
        _
      $region28: #{res_bottleneck_block.2} parent=11 // pred_fallthru
        _
      // Predicated region
      $region29: #{res_bottleneck_block.2} parent=11 // pred_check
        %p328 = pneg %p149
      $region30: #{res_bottleneck_block.2} parent=11 // pred_check_branch
        %330 = sbr.rel (%p328) target = $region32
      $region31: #{res_bottleneck_block.2} parent=11 // pred_region
        _
      $region32: #{res_bottleneck_block.2} parent=11 // pred_fallthru
        _
      // Predicated region
      $region33: #{res_bottleneck_block.2} parent=11 // pred_check
        %p331 = pneg %p170
      $region34: #{res_bottleneck_block.2} parent=11 // pred_check_branch
        %333 = sbr.rel (%p331) target = $region36
      $region35: #{res_bottleneck_block.2} parent=11 // pred_region
        _
      $region36: #{res_bottleneck_block.2} parent=11 // pred_fallthru
        _
      // Predicated region
      $region37: #{res_bottleneck_block.2} parent=11 // pred_check
        %p334 = pneg %p191
      $region38: #{res_bottleneck_block.2} parent=11 // pred_check_branch
        %336 = sbr.rel (%p334) target = $region40
      $region39: #{res_bottleneck_block.2} parent=11 // pred_region
        _
      $region40: #{res_bottleneck_block.2} parent=11 // pred_fallthru
        _
      // Predicated region
      $region41: #{res_bottleneck_block.2} parent=11 // pred_check
        %p337 = pneg %p212
      $region42: #{res_bottleneck_block.2} parent=11 // pred_check_branch
        %339 = sbr.rel (%p337) target = $region44
      $region43: #{res_bottleneck_block.2} parent=11 // pred_region
        _
      $region44: #{res_bottleneck_block.2} parent=11 // pred_fallthru
        _
      // Predicated region
      $region45: #{res_bottleneck_block.2} parent=11 // pred_check
        %p340 = pneg %p233
      $region46: #{res_bottleneck_block.2} parent=11 // pred_check_branch
        %342 = sbr.rel (%p340) target = $region48
      $region47: #{res_bottleneck_block.2} parent=11 // pred_region
        _
      $region48: #{res_bottleneck_block.2} parent=11 // pred_fallthru
        _
      // Predicated region
      $region49: #{res_bottleneck_block.2} parent=11 // pred_check
        %p343 = pneg %p254
      $region50: #{res_bottleneck_block.2} parent=11 // pred_check_branch
        %345 = sbr.rel (%p343) target = $region52
      $region51: #{res_bottleneck_block.2} parent=11 // pred_region
        _
      $region52: #{res_bottleneck_block.2} parent=11 // pred_fallthru
        _
      // Predicated region
      $region53: #{res_bottleneck_block.2} parent=11 // pred_check
        %p346 = pneg %p275
      $region54: #{res_bottleneck_block.2} parent=11 // pred_check_branch
        %348 = sbr.rel (%p346) target = $region56
      $region55: #{res_bottleneck_block.2} parent=11 // pred_region
        _
      $region56: #{res_bottleneck_block.2} parent=11 // pred_fallthru
        _
    $region12: #{res_bottleneck_block.2} parent=5 // pred_fallthru
      _
    %p349 = scmp.lt.s32.totalorder %s18, 2
    // Predicated region
    $region57: #{res_bottleneck_block.2} parent=5 // pred_check
      %p350 = pneg %p349
    $region58: #{res_bottleneck_block.2} parent=5 // pred_check_branch
      %352 = sbr.rel (%p350) target = $region60
    $region59: #{res_bottleneck_block.2} parent=5 // pred_region
      // Predicated region
      $region61: #{res_bottleneck_block.2} parent=59 // pred_check
        %p353 = pneg %p38
      $region62: #{res_bottleneck_block.2} parent=59 // pred_check_branch
        %355 = sbr.rel (%p353) target = $region64
      $region63: #{res_bottleneck_block.2} parent=59 // pred_region
        %s356 = smul.u32 4, %s18
        %p357 = scmp.lt.s32.totalorder %s356, 7
        %s358 = scalar_select %p357, %s356, 7
        %s359 = smul.addr %s358, 18
        %s360 = smul.addr %s359, 8
        %s361 = scalar_lea.vmem %s0, %s360
        %s362 = smul.u32 4, %s18
      $region64: #{res_bottleneck_block.2} parent=59 // pred_fallthru
        _
    $region60: #{res_bottleneck_block.2} parent=5 // pred_fallthru
      _
    %p363 = scmp.le.s32.totalorder 1, %s18
    %p364 = scmp.lt.s32.totalorder %s18, 3
    %p365 = pnand %p363, %p364
    %p366 = pneg %p365
    // Predicated region
    $region65: #{res_bottleneck_block.2} parent=5 // pred_check
      _
    $region66: #{res_bottleneck_block.2} parent=5 // pred_check_branch
      %368 = sbr.rel (%p365) target = $region68
    $region67: #{res_bottleneck_block.2} parent=5 // pred_region
      %s369 = ssub.s32 %s18, 1
      %s370 = smul.u32 4, %s23
      %p371 = scmp.lt.s32.totalorder %s370, 7
      %s372 = scalar_select %p371, %s370, 7
      %s373 = smul.addr %s372, 18
      %s374 = smul.addr %s373, 8
      %s375 = scalar_lea.vmem %s0, %s374
      %p376 = pneg %p44
      %p377 = pneg %p41
      %p378 = pneg %p65
      %p379 = pneg %p62
      %p380 = pneg %p86
      %p381 = pneg %p83
      %p382 = pneg %p107
      %p383 = pneg %p104
      %p384 = pneg %p128
      %p385 = pneg %p125
      %p386 = pneg %p149
      %p387 = pneg %p146
      %p388 = pneg %p170
      %p389 = pneg %p167
      %p390 = pneg %p191
      %p391 = pneg %p188
      %p392 = pneg %p212
      %p393 = pneg %p209
      %p394 = pneg %p233
      %p395 = pneg %p230
      %p396 = pneg %p254
      %p397 = pneg %p251
      %p398 = pneg %p275
      %p399 = pneg %p272
      %p400 = pneg %p301
      %p401 = pneg %p298
      %p402 = scmp.lt.s32.totalorder %s23, 1
      %s403 = scalar_select %p402, %s23, 1
      %s404 = smul.addr %s403, 8
      %s405 = smul.addr %s404, 4
      %s406 = scalar_lea.vmem %s12, %s405
      %s407 = smul.u32 4, %s23
      %p408 = scmp.lt.s32.totalorder %s407, 7
      %s409 = scalar_select %p408, %s407, 7
      %s410 = smul.addr %s409, 18
      %s411 = smul.addr %s410, 8
      %s412 = scalar_lea.vmem %s0, %s411
      %s413 = smul.u32 4, %s23
      %p414 = scmp.lt.s32.totalorder %s23, 1
      %s415 = scalar_select %p414, %s23, 1
      %s416 = smul.addr %s415, 8
      %s417 = smul.addr %s416, 4
      %s418 = scalar_lea.vmem %s12, %s417
      %v420 = vld [vmem:[%s412] sm:$0xff]
      %v421 = vld [vmem:[%s412 + $0x8] sm:$0x1]
      %v422 = vld [vmem:[%s412 + $0x10] sm:$0xff]
      %v423 = vld [vmem:[%s412 + $0x18] sm:$0x1]
      %v424 = vld [vmem:[%s412 + $0x20] sm:$0xff]
      %v425 = vld [vmem:[%s412 + $0x28] sm:$0x1]
      %v426 = vld [vmem:[%s412 + $0x30] sm:$0xff]
      %v427 = vld [vmem:[%s412 + $0x38] sm:$0x1]
      %v428 = vld [vmem:[%s412 + $0x40] sm:$0xff]
      %v429 = vld [vmem:[%s412 + $0x48] sm:$0x1]
      %v430 = vld [vmem:[%s412 + $0x50] sm:$0xff]
      %v431 = vld [vmem:[%s412 + $0x58] sm:$0x1]
      %v432 = vld [vmem:[%s412 + $0x60] sm:$0xff]
      %v433 = vld [vmem:[%s412 + $0x68] sm:$0x1]
      %v434 = vld [vmem:[%s412 + $0x70] sm:$0xff]
      %v435 = vld [vmem:[%s412 + $0x78] sm:$0x1]
      %v436 = vld [vmem:[%s412 + $0x80] sm:$0xff]
      %v437 = vld [vmem:[%s412 + $0x88] sm:$0x1]
      %v438 = vld [vmem:[%s412 + $0x90] sm:$0xff]
      %v439 = vld [vmem:[%s412 + $0x98] sm:$0x1]
      %v440 = vld [vmem:[%s412 + $0xa0] sm:$0xff]
      %v441 = vld [vmem:[%s412 + $0xa8] sm:$0x1]
      %v442 = vld [vmem:[%s412 + $0xb0] sm:$0xff]
      %v443 = vld [vmem:[%s412 + $0xb8] sm:$0x1]
      %v444 = vld [vmem:[%s412 + $0xc0] sm:$0xff]
      %v445 = vld [vmem:[%s412 + $0xc8] sm:$0x1]
      %v446 = vld [vmem:[%s412 + $0xd0] sm:$0xff]
      %v447 = vld [vmem:[%s412 + $0xd8] sm:$0x1]
      %v448 = vld [vmem:[%s412 + $0xe0] sm:$0xff]
      %v449 = vld [vmem:[%s412 + $0xe8] sm:$0x1]
      %v450 = vld [vmem:[%s412 + $0xf0] sm:$0xff]
      %v451 = vld [vmem:[%s412 + $0xf8] sm:$0x1]
      %v452 = vld [vmem:[%s412 + $0x100] sm:$0xff]
      %v453 = vld [vmem:[%s412 + $0x108] sm:$0x1]
      %v454 = vld [vmem:[%s412 + $0x110] sm:$0xff]
      %v455 = vld [vmem:[%s412 + $0x118] sm:$0x1]
      %v456 = vld [vmem:[%s412 + $0x120] sm:$0xff]
      %v457 = vld [vmem:[%s412 + $0x128] sm:$0x1]
      %v458 = vld [vmem:[%s412 + $0x130] sm:$0xff]
      %v459 = vld [vmem:[%s412 + $0x138] sm:$0x1]
      %v460 = vld [vmem:[%s412 + $0x140] sm:$0xff]
      %v461 = vld [vmem:[%s412 + $0x148] sm:$0x1]
      %v462 = vld [vmem:[%s412 + $0x150] sm:$0xff]
      %v463 = vld [vmem:[%s412 + $0x158] sm:$0x1]
      %v464 = vld [vmem:[%s412 + $0x160] sm:$0xff]
      %v465 = vld [vmem:[%s412 + $0x168] sm:$0x1]
      %v466 = vld [vmem:[%s412 + $0x170] sm:$0xff]
      %v467 = vld [vmem:[%s412 + $0x178] sm:$0x1]
      %v468 = vld [vmem:[%s412 + $0x180] sm:$0xff]
      %v469 = vld [vmem:[%s412 + $0x188] sm:$0x1]
      %v470 = vld [vmem:[%s412 + $0x190] sm:$0xff]
      %v471 = vld [vmem:[%s412 + $0x198] sm:$0x1]
      %v472 = vld [vmem:[%s412 + $0x1a0] sm:$0xff]
      %v473 = vld [vmem:[%s412 + $0x1a8] sm:$0x1]
      %v474 = vld [vmem:[%s412 + $0x1b0] sm:$0xff]
      %v475 = vld [vmem:[%s412 + $0x1b8] sm:$0x1]
      %v476 = vld [vmem:[%s412 + $0x1c0] sm:$0xff]
      %v477 = vld [vmem:[%s412 + $0x1c8] sm:$0x1]
      %v478 = vld [vmem:[%s412 + $0x1d0] sm:$0xff]
      %v479 = vld [vmem:[%s412 + $0x1d8] sm:$0x1]
      %v480 = vld [vmem:[%s412 + $0x1e0] sm:$0xff]
      %v481 = vld [vmem:[%s412 + $0x1e8] sm:$0x1]
      %v482 = vld [vmem:[%s412 + $0x1f0] sm:$0xff]
      %v483 = vld [vmem:[%s412 + $0x1f8] sm:$0x1]
      %v484 = vld [vmem:[%s412 + $0x200] sm:$0xff]
      %v485 = vld [vmem:[%s412 + $0x208] sm:$0x1]
      %v486 = vld [vmem:[%s412 + $0x210] sm:$0xff]
      %v487 = vld [vmem:[%s412 + $0x218] sm:$0x1]
      %v488 = vld [vmem:[%s412 + $0x220] sm:$0xff]
      %v489 = vld [vmem:[%s412 + $0x228] sm:$0x1]
      %v490 = vld [vmem:[%s412 + $0x230] sm:$0xff]
      %v491 = vld [vmem:[%s412 + $0x238] sm:$0x1]
      %v564 = vrot.slane %v420, 1
      %v565 = vrot.slane %v420, 2
      %v566 = vrot.slane %v420, 3
      %v567 = vrot.slane %v420, 4
      %v568 = vrot.slane %v420, 5
      %v569 = vrot.slane %v420, 6
      %v570 = vrot.slane %v420, 7
      %v571 = vrot.slane %v422, 1
      %v572 = vrot.slane %v422, 2
      %v573 = vrot.slane %v422, 3
      %v574 = vrot.slane %v422, 4
      %v575 = vrot.slane %v422, 5
      %v576 = vrot.slane %v422, 6
      %v577 = vrot.slane %v422, 7
      %v578 = vrot.slane %v424, 1
      %v579 = vrot.slane %v424, 2
      %v580 = vrot.slane %v424, 3
      %v581 = vrot.slane %v424, 4
      %v582 = vrot.slane %v424, 5
      %v583 = vrot.slane %v424, 6
      %v584 = vrot.slane %v424, 7
      %v585 = vrot.slane %v426, 1
      %v586 = vrot.slane %v426, 2
      %v587 = vrot.slane %v426, 3
      %v588 = vrot.slane %v426, 4
      %v589 = vrot.slane %v426, 5
      %v590 = vrot.slane %v426, 6
      %v591 = vrot.slane %v426, 7
      %v592 = vrot.slane %v428, 1
      %v593 = vrot.slane %v428, 2
      %v594 = vrot.slane %v428, 3
      %v595 = vrot.slane %v428, 4
      %v596 = vrot.slane %v428, 5
      %v597 = vrot.slane %v428, 6
      %v598 = vrot.slane %v428, 7
      %v599 = vrot.slane %v430, 1
      %v600 = vrot.slane %v430, 2
      %v601 = vrot.slane %v430, 3
      %v602 = vrot.slane %v430, 4
      %v603 = vrot.slane %v430, 5
      %v604 = vrot.slane %v430, 6
      %v605 = vrot.slane %v430, 7
      %v606 = vrot.slane %v432, 1
      %v607 = vrot.slane %v432, 2
      %v608 = vrot.slane %v432, 3
      %v609 = vrot.slane %v432, 4
      %v610 = vrot.slane %v432, 5
      %v611 = vrot.slane %v432, 6
      %v612 = vrot.slane %v432, 7
      %v613 = vrot.slane %v434, 1
      %v614 = vrot.slane %v434, 2
      %v615 = vrot.slane %v434, 3
      %v616 = vrot.slane %v434, 4
      %v617 = vrot.slane %v434, 5
      %v618 = vrot.slane %v434, 6
      %v619 = vrot.slane %v434, 7
      %v620 = vrot.slane %v436, 1
      %v621 = vrot.slane %v436, 2
      %v622 = vrot.slane %v436, 3
      %v623 = vrot.slane %v436, 4
      %v624 = vrot.slane %v436, 5
      %v625 = vrot.slane %v436, 6
      %v626 = vrot.slane %v436, 7
      %v627 = vrot.slane %v438, 1
      %v628 = vrot.slane %v438, 2
      %v629 = vrot.slane %v438, 3
      %v630 = vrot.slane %v438, 4
      %v631 = vrot.slane %v438, 5
      %v632 = vrot.slane %v438, 6
      %v633 = vrot.slane %v438, 7
      %v634 = vrot.slane %v440, 1
      %v635 = vrot.slane %v440, 2
      %v636 = vrot.slane %v440, 3
      %v637 = vrot.slane %v440, 4
      %v638 = vrot.slane %v440, 5
      %v639 = vrot.slane %v440, 6
      %v640 = vrot.slane %v440, 7
      %v641 = vrot.slane %v442, 1
      %v642 = vrot.slane %v442, 2
      %v643 = vrot.slane %v442, 3
      %v644 = vrot.slane %v442, 4
      %v645 = vrot.slane %v442, 5
      %v646 = vrot.slane %v442, 6
      %v647 = vrot.slane %v442, 7
      %v648 = vrot.slane %v444, 1
      %v649 = vrot.slane %v444, 2
      %v650 = vrot.slane %v444, 3
      %v651 = vrot.slane %v444, 4
      %v652 = vrot.slane %v444, 5
      %v653 = vrot.slane %v444, 6
      %v654 = vrot.slane %v444, 7
      %v655 = vrot.slane %v446, 1
      %v656 = vrot.slane %v446, 2
      %v657 = vrot.slane %v446, 3
      %v658 = vrot.slane %v446, 4
      %v659 = vrot.slane %v446, 5
      %v660 = vrot.slane %v446, 6
      %v661 = vrot.slane %v446, 7
      %v662 = vrot.slane %v448, 1
      %v663 = vrot.slane %v448, 2
      %v664 = vrot.slane %v448, 3
      %v665 = vrot.slane %v448, 4
      %v666 = vrot.slane %v448, 5
      %v667 = vrot.slane %v448, 6
      %v668 = vrot.slane %v448, 7
      %v669 = vrot.slane %v450, 1
      %v670 = vrot.slane %v450, 2
      %v671 = vrot.slane %v450, 3
      %v672 = vrot.slane %v450, 4
      %v673 = vrot.slane %v450, 5
      %v674 = vrot.slane %v450, 6
      %v675 = vrot.slane %v450, 7
      %v676 = vrot.slane %v452, 1
      %v677 = vrot.slane %v452, 2
      %v678 = vrot.slane %v452, 3
      %v679 = vrot.slane %v452, 4
      %v680 = vrot.slane %v452, 5
      %v681 = vrot.slane %v452, 6
      %v682 = vrot.slane %v452, 7
      %v683 = vrot.slane %v454, 1
      %v684 = vrot.slane %v454, 2
      %v685 = vrot.slane %v454, 3
      %v686 = vrot.slane %v454, 4
      %v687 = vrot.slane %v454, 5
      %v688 = vrot.slane %v454, 6
      %v689 = vrot.slane %v454, 7
      %v690 = vrot.slane %v456, 1
      %v691 = vrot.slane %v456, 2
      %v692 = vrot.slane %v456, 3
      %v693 = vrot.slane %v456, 4
      %v694 = vrot.slane %v456, 5
      %v695 = vrot.slane %v456, 6
      %v696 = vrot.slane %v456, 7
      %v697 = vrot.slane %v458, 1
      %v698 = vrot.slane %v458, 2
      %v699 = vrot.slane %v458, 3
      %v700 = vrot.slane %v458, 4
      %v701 = vrot.slane %v458, 5
      %v702 = vrot.slane %v458, 6
      %v703 = vrot.slane %v458, 7
      %v704 = vrot.slane %v460, 1
      %v705 = vrot.slane %v460, 2
      %v706 = vrot.slane %v460, 3
      %v707 = vrot.slane %v460, 4
      %v708 = vrot.slane %v460, 5
      %v709 = vrot.slane %v460, 6
      %v710 = vrot.slane %v460, 7
      %v711 = vrot.slane %v462, 1
      %v712 = vrot.slane %v462, 2
      %v713 = vrot.slane %v462, 3
      %v714 = vrot.slane %v462, 4
      %v715 = vrot.slane %v462, 5
      %v716 = vrot.slane %v462, 6
      %v717 = vrot.slane %v462, 7
      %v718 = vrot.slane %v464, 1
      %v719 = vrot.slane %v464, 2
      %v720 = vrot.slane %v464, 3
      %v721 = vrot.slane %v464, 4
      %v722 = vrot.slane %v464, 5
      %v723 = vrot.slane %v464, 6
      %v724 = vrot.slane %v464, 7
      %v725 = vrot.slane %v466, 1
      %v726 = vrot.slane %v466, 2
      %v727 = vrot.slane %v466, 3
      %v728 = vrot.slane %v466, 4
      %v729 = vrot.slane %v466, 5
      %v730 = vrot.slane %v466, 6
      %v731 = vrot.slane %v466, 7
      %v732 = vrot.slane %v468, 1
      %v733 = vrot.slane %v468, 2
      %v734 = vrot.slane %v468, 3
      %v735 = vrot.slane %v468, 4
      %v736 = vrot.slane %v468, 5
      %v737 = vrot.slane %v468, 6
      %v738 = vrot.slane %v468, 7
      %v739 = vrot.slane %v470, 1
      %v740 = vrot.slane %v470, 2
      %v741 = vrot.slane %v470, 3
      %v742 = vrot.slane %v470, 4
      %v743 = vrot.slane %v470, 5
      %v744 = vrot.slane %v470, 6
      %v745 = vrot.slane %v470, 7
      %v746 = vrot.slane %v472, 1
      %v747 = vrot.slane %v472, 2
      %v748 = vrot.slane %v472, 3
      %v749 = vrot.slane %v472, 4
      %v750 = vrot.slane %v472, 5
      %v751 = vrot.slane %v472, 6
      %v752 = vrot.slane %v472, 7
      %v753 = vrot.slane %v474, 1
      %v754 = vrot.slane %v474, 2
      %v755 = vrot.slane %v474, 3
      %v756 = vrot.slane %v474, 4
      %v757 = vrot.slane %v474, 5
      %v758 = vrot.slane %v474, 6
      %v759 = vrot.slane %v474, 7
      %v760 = vrot.slane %v476, 1
      %v761 = vrot.slane %v476, 2
      %v762 = vrot.slane %v476, 3
      %v763 = vrot.slane %v476, 4
      %v764 = vrot.slane %v476, 5
      %v765 = vrot.slane %v476, 6
      %v766 = vrot.slane %v476, 7
      %v767 = vrot.slane %v478, 1
      %v768 = vrot.slane %v478, 2
      %v769 = vrot.slane %v478, 3
      %v770 = vrot.slane %v478, 4
      %v771 = vrot.slane %v478, 5
      %v772 = vrot.slane %v478, 6
      %v773 = vrot.slane %v478, 7
      %v774 = vrot.slane %v480, 1
      %v775 = vrot.slane %v480, 2
      %v776 = vrot.slane %v480, 3
      %v777 = vrot.slane %v480, 4
      %v778 = vrot.slane %v480, 5
      %v779 = vrot.slane %v480, 6
      %v780 = vrot.slane %v480, 7
      %v781 = vrot.slane %v482, 1
      %v782 = vrot.slane %v482, 2
      %v783 = vrot.slane %v482, 3
      %v784 = vrot.slane %v482, 4
      %v785 = vrot.slane %v482, 5
      %v786 = vrot.slane %v482, 6
      %v787 = vrot.slane %v482, 7
      %v788 = vrot.slane %v484, 1
      %v789 = vrot.slane %v484, 2
      %v790 = vrot.slane %v484, 3
      %v791 = vrot.slane %v484, 4
      %v792 = vrot.slane %v484, 5
      %v793 = vrot.slane %v484, 6
      %v794 = vrot.slane %v484, 7
      %v795 = vrot.slane %v486, 1
      %v796 = vrot.slane %v486, 2
      %v797 = vrot.slane %v486, 3
      %v798 = vrot.slane %v486, 4
      %v799 = vrot.slane %v486, 5
      %v800 = vrot.slane %v486, 6
      %v801 = vrot.slane %v486, 7
      %v802 = vrot.slane %v488, 1
      %v803 = vrot.slane %v488, 2
      %v804 = vrot.slane %v488, 3
      %v805 = vrot.slane %v488, 4
      %v806 = vrot.slane %v488, 5
      %v807 = vrot.slane %v488, 6
      %v808 = vrot.slane %v488, 7
      %v809 = vrot.slane %v490, 1
      %v810 = vrot.slane %v490, 2
      %v811 = vrot.slane %v490, 3
      %v812 = vrot.slane %v490, 4
      %v813 = vrot.slane %v490, 5
      %v814 = vrot.slane %v490, 6
      %v815 = vrot.slane %v490, 7
      %816 = vst [vmem:[#allocation1] ss:$9 sm:$0xff] %v420
      %s817 = scalar_lea.vmem [#allocation1], 1
      %818 = vst [vmem:[%s817] ss:$9 sm:$0xff] %v564
      %s819 = scalar_lea.vmem [#allocation1], 2
      %820 = vst [vmem:[%s819] ss:$9 sm:$0xff] %v565
      %s821 = scalar_lea.vmem [#allocation1], 3
      %822 = vst [vmem:[%s821] ss:$9 sm:$0xff] %v566
      %s823 = scalar_lea.vmem [#allocation1], 4
      %824 = vst [vmem:[%s823] ss:$9 sm:$0xff] %v567
      %s825 = scalar_lea.vmem [#allocation1], 5
      %826 = vst [vmem:[%s825] ss:$9 sm:$0xff] %v568
      %s827 = scalar_lea.vmem [#allocation1], 6
      %828 = vst [vmem:[%s827] ss:$9 sm:$0xff] %v569
      %s829 = scalar_lea.vmem [#allocation1], 7
      %830 = vst [vmem:[%s829] ss:$9 sm:$0xff] %v570
      %v831 = vld [vmem:[#allocation1] sm:$0xff]
      %832 = vst [vmem:[#allocation1] ss:$9 sm:$0xff] %v421
      %833 = vst [vmem:[%s817] ss:$9 sm:$0xff] %v422
      %834 = vst [vmem:[%s819] ss:$9 sm:$0xff] %v571
      %835 = vst [vmem:[%s821] ss:$9 sm:$0xff] %v572
      %836 = vst [vmem:[%s823] ss:$9 sm:$0xff] %v573
      %837 = vst [vmem:[%s825] ss:$9 sm:$0xff] %v574
      %838 = vst [vmem:[%s827] ss:$9 sm:$0xff] %v575
      %839 = vst [vmem:[%s829] ss:$9 sm:$0xff] %v576
      %v840 = vld [vmem:[#allocation1] sm:$0xff]
      %841 = vst [vmem:[#allocation1] ss:$9 sm:$0xff] %v577
      %842 = vst [vmem:[%s817] ss:$9 sm:$0xff] %v423
      %843 = vst [vmem:[%s819] ss:$9 sm:$0xff] %v424
      %844 = vst [vmem:[%s821] ss:$9 sm:$0xff] %v578
      %845 = vst [vmem:[%s823] ss:$9 sm:$0xff] %v579
      %846 = vst [vmem:[%s825] ss:$9 sm:$0xff] %v580
      %847 = vst [vmem:[%s827] ss:$9 sm:$0xff] %v581
      %848 = vst [vmem:[%s829] ss:$9 sm:$0xff] %v582
      %v849 = vld [vmem:[#allocation1] sm:$0xff]
      %850 = vst [vmem:[#allocation1] ss:$9 sm:$0xff] %v583
      %851 = vst [vmem:[%s817] ss:$9 sm:$0xff] %v584
      %852 = vst [vmem:[%s819] ss:$9 sm:$0xff] %v425
      %853 = vst [vmem:[%s821] ss:$9 sm:$0xff] %v426
      %854 = vst [vmem:[%s823] ss:$9 sm:$0xff] %v585
      %855 = vst [vmem:[%s825] ss:$9 sm:$0xff] %v586
      %856 = vst [vmem:[%s827] ss:$9 sm:$0xff] %v587
      %857 = vst [vmem:[%s829] ss:$9 sm:$0xff] %v588
      %v858 = vld [vmem:[#allocation1] sm:$0xff]
      %859 = vst [vmem:[#allocation1] ss:$9 sm:$0xff] %v589
      %860 = vst [vmem:[%s817] ss:$9 sm:$0xff] %v590
      %861 = vst [vmem:[%s819] ss:$9 sm:$0xff] %v591
      %862 = vst [vmem:[%s821] ss:$9 sm:$0xff] %v427
      %863 = vst [vmem:[%s823] ss:$9 sm:$0xff] %v428
      %864 = vst [vmem:[%s825] ss:$9 sm:$0xff] %v592
      %865 = vst [vmem:[%s827] ss:$9 sm:$0xff] %v593
      %866 = vst [vmem:[%s829] ss:$9 sm:$0xff] %v594
      %v867 = vld [vmem:[#allocation1] sm:$0xff]
      %868 = vst [vmem:[#allocation1] ss:$9 sm:$0xff] %v595
      %869 = vst [vmem:[%s817] ss:$9 sm:$0xff] %v596
      %870 = vst [vmem:[%s819] ss:$9 sm:$0xff] %v597
      %871 = vst [vmem:[%s821] ss:$9 sm:$0xff] %v598
      %872 = vst [vmem:[%s823] ss:$9 sm:$0xff] %v429
      %873 = vst [vmem:[%s825] ss:$9 sm:$0xff] %v430
      %874 = vst [vmem:[%s827] ss:$9 sm:$0xff] %v599
      %875 = vst [vmem:[%s829] ss:$9 sm:$0xff] %v600
      %v876 = vld [vmem:[#allocation1] sm:$0xff]
      %877 = vst [vmem:[#allocation1] ss:$9 sm:$0xff] %v601
      %878 = vst [vmem:[%s817] ss:$9 sm:$0xff] %v602
      %879 = vst [vmem:[%s819] ss:$9 sm:$0xff] %v603
      %880 = vst [vmem:[%s821] ss:$9 sm:$0xff] %v604
      %881 = vst [vmem:[%s823] ss:$9 sm:$0xff] %v605
      %882 = vst [vmem:[%s825] ss:$9 sm:$0xff] %v431
      %883 = vst [vmem:[%s827] ss:$9 sm:$0xff] %v432
      %884 = vst [vmem:[%s829] ss:$9 sm:$0xff] %v606
      %v885 = vld [vmem:[#allocation1] sm:$0xff]
      %886 = vst [vmem:[#allocation1] ss:$9 sm:$0xff] %v607
      %887 = vst [vmem:[%s817] ss:$9 sm:$0xff] %v608
      %888 = vst [vmem:[%s819] ss:$9 sm:$0xff] %v609
      %889 = vst [vmem:[%s821] ss:$9 sm:$0xff] %v610
      %890 = vst [vmem:[%s823] ss:$9 sm:$0xff] %v611
      %891 = vst [vmem:[%s825] ss:$9 sm:$0xff] %v612
      %892 = vst [vmem:[%s827] ss:$9 sm:$0xff] %v433
      %893 = vst [vmem:[%s829] ss:$9 sm:$0xff] %v434
      %v894 = vld [vmem:[#allocation1] sm:$0xff]
      %895 = vst [vmem:[#allocation1] ss:$9 sm:$0xff] %v613
      %896 = vst [vmem:[%s817] ss:$9 sm:$0xff] %v614
      %897 = vst [vmem:[%s819] ss:$9 sm:$0xff] %v615
      %898 = vst [vmem:[%s821] ss:$9 sm:$0xff] %v616
      %899 = vst [vmem:[%s823] ss:$9 sm:$0xff] %v617
      %900 = vst [vmem:[%s825] ss:$9 sm:$0xff] %v618
      %901 = vst [vmem:[%s827] ss:$9 sm:$0xff] %v619
      %902 = vst [vmem:[%s829] ss:$9 sm:$0xff] %v435
      %v903 = vld [vmem:[#allocation1] sm:$0xff]
      %904 = vst [vmem:[#allocation1] ss:$9 sm:$0xff] %v436
      %905 = vst [vmem:[%s817] ss:$9 sm:$0xff] %v620
      %906 = vst [vmem:[%s819] ss:$9 sm:$0xff] %v621
      %907 = vst [vmem:[%s821] ss:$9 sm:$0xff] %v622
      %908 = vst [vmem:[%s823] ss:$9 sm:$0xff] %v623
      %909 = vst [vmem:[%s825] ss:$9 sm:$0xff] %v624
      %910 = vst [vmem:[%s827] ss:$9 sm:$0xff] %v625
      %911 = vst [vmem:[%s829] ss:$9 sm:$0xff] %v626
      %v912 = vld [vmem:[#allocation1] sm:$0xff]
      %913 = vst [vmem:[#allocation1] ss:$9 sm:$0xff] %v437
      %914 = vst [vmem:[%s817] ss:$9 sm:$0xff] %v438
      %915 = vst [vmem:[%s819] ss:$9 sm:$0xff] %v627
      %916 = vst [vmem:[%s821] ss:$9 sm:$0xff] %v628
      %917 = vst [vmem:[%s823] ss:$9 sm:$0xff] %v629
      %918 = vst [vmem:[%s825] ss:$9 sm:$0xff] %v630
      %919 = vst [vmem:[%s827] ss:$9 sm:$0xff] %v631
      %920 = vst [vmem:[%s829] ss:$9 sm:$0xff] %v632
      %v921 = vld [vmem:[#allocation1] sm:$0xff]
      %922 = vst [vmem:[#allocation1] ss:$9 sm:$0xff] %v633
      %923 = vst [vmem:[%s817] ss:$9 sm:$0xff] %v439
      %924 = vst [vmem:[%s819] ss:$9 sm:$0xff] %v440
      %925 = vst [vmem:[%s821] ss:$9 sm:$0xff] %v634
      %926 = vst [vmem:[%s823] ss:$9 sm:$0xff] %v635
      %927 = vst [vmem:[%s825] ss:$9 sm:$0xff] %v636
      %928 = vst [vmem:[%s827] ss:$9 sm:$0xff] %v637
      %929 = vst [vmem:[%s829] ss:$9 sm:$0xff] %v638
      %v930 = vld [vmem:[#allocation1] sm:$0xff]
      %931 = vst [vmem:[#allocation1] ss:$9 sm:$0xff] %v639
      %932 = vst [vmem:[%s817] ss:$9 sm:$0xff] %v640
      %933 = vst [vmem:[%s819] ss:$9 sm:$0xff] %v441
      %934 = vst [vmem:[%s821] ss:$9 sm:$0xff] %v442
      %935 = vst [vmem:[%s823] ss:$9 sm:$0xff] %v641
      %936 = vst [vmem:[%s825] ss:$9 sm:$0xff] %v642
      %937 = vst [vmem:[%s827] ss:$9 sm:$0xff] %v643
      %938 = vst [vmem:[%s829] ss:$9 sm:$0xff] %v644
      %v939 = vld [vmem:[#allocation1] sm:$0xff]
      %940 = vst [vmem:[#allocation1] ss:$9 sm:$0xff] %v645
      %941 = vst [vmem:[%s817] ss:$9 sm:$0xff] %v646
      %942 = vst [vmem:[%s819] ss:$9 sm:$0xff] %v647
      %943 = vst [vmem:[%s821] ss:$9 sm:$0xff] %v443
      %944 = vst [vmem:[%s823] ss:$9 sm:$0xff] %v444
      %945 = vst [vmem:[%s825] ss:$9 sm:$0xff] %v648
      %946 = vst [vmem:[%s827] ss:$9 sm:$0xff] %v649
      %947 = vst [vmem:[%s829] ss:$9 sm:$0xff] %v650
      %v948 = vld [vmem:[#allocation1] sm:$0xff]
      %949 = vst [vmem:[#allocation1] ss:$9 sm:$0xff] %v651
      %950 = vst [vmem:[%s817] ss:$9 sm:$0xff] %v652
      %951 = vst [vmem:[%s819] ss:$9 sm:$0xff] %v653
      %952 = vst [vmem:[%s821] ss:$9 sm:$0xff] %v654
      %953 = vst [vmem:[%s823] ss:$9 sm:$0xff] %v445
      %954 = vst [vmem:[%s825] ss:$9 sm:$0xff] %v446
      %955 = vst [vmem:[%s827] ss:$9 sm:$0xff] %v655
      %956 = vst [vmem:[%s829] ss:$9 sm:$0xff] %v656
      %v957 = vld [vmem:[#allocation1] sm:$0xff]
      %958 = vst [vmem:[#allocation1] ss:$9 sm:$0xff] %v657
      %959 = vst [vmem:[%s817] ss:$9 sm:$0xff] %v658
      %960 = vst [vmem:[%s819] ss:$9 sm:$0xff] %v659
      %961 = vst [vmem:[%s821] ss:$9 sm:$0xff] %v660
      %962 = vst [vmem:[%s823] ss:$9 sm:$0xff] %v661
      %963 = vst [vmem:[%s825] ss:$9 sm:$0xff] %v447
      %964 = vst [vmem:[%s827] ss:$9 sm:$0xff] %v448
      %965 = vst [vmem:[%s829] ss:$9 sm:$0xff] %v662
      %v966 = vld [vmem:[#allocation1] sm:$0xff]
      %967 = vst [vmem:[#allocation1] ss:$9 sm:$0xff] %v663
      %968 = vst [vmem:[%s817] ss:$9 sm:$0xff] %v664
      %969 = vst [vmem:[%s819] ss:$9 sm:$0xff] %v665
      %970 = vst [vmem:[%s821] ss:$9 sm:$0xff] %v666
      %971 = vst [vmem:[%s823] ss:$9 sm:$0xff] %v667
      %972 = vst [vmem:[%s825] ss:$9 sm:$0xff] %v668
      %973 = vst [vmem:[%s827] ss:$9 sm:$0xff] %v449
      %974 = vst [vmem:[%s829] ss:$9 sm:$0xff] %v450
      %v975 = vld [vmem:[#allocation1] sm:$0xff]
      %976 = vst [vmem:[#allocation1] ss:$9 sm:$0xff] %v669
      %977 = vst [vmem:[%s817] ss:$9 sm:$0xff] %v670
      %978 = vst [vmem:[%s819] ss:$9 sm:$0xff] %v671
      %979 = vst [vmem:[%s821] ss:$9 sm:$0xff] %v672
      %980 = vst [vmem:[%s823] ss:$9 sm:$0xff] %v673
      %981 = vst [vmem:[%s825] ss:$9 sm:$0xff] %v674
      %982 = vst [vmem:[%s827] ss:$9 sm:$0xff] %v675
      %983 = vst [vmem:[%s829] ss:$9 sm:$0xff] %v451
      %v984 = vld [vmem:[#allocation1] sm:$0xff]
      %985 = vst [vmem:[#allocation1] ss:$9 sm:$0xff] %v452
      %986 = vst [vmem:[%s817] ss:$9 sm:$0xff] %v676
      %987 = vst [vmem:[%s819] ss:$9 sm:$0xff] %v677
      %988 = vst [vmem:[%s821] ss:$9 sm:$0xff] %v678
      %989 = vst [vmem:[%s823] ss:$9 sm:$0xff] %v679
      %990 = vst [vmem:[%s825] ss:$9 sm:$0xff] %v680
      %991 = vst [vmem:[%s827] ss:$9 sm:$0xff] %v681
      %992 = vst [vmem:[%s829] ss:$9 sm:$0xff] %v682
      %v993 = vld [vmem:[#allocation1] sm:$0xff]
      %994 = vst [vmem:[#allocation1] ss:$9 sm:$0xff] %v453
      %995 = vst [vmem:[%s817] ss:$9 sm:$0xff] %v454
      %996 = vst [vmem:[%s819] ss:$9 sm:$0xff] %v683
      %997 = vst [vmem:[%s821] ss:$9 sm:$0xff] %v684
      %998 = vst [vmem:[%s823] ss:$9 sm:$0xff] %v685
      %999 = vst [vmem:[%s825] ss:$9 sm:$0xff] %v686
      %1000 = vst [vmem:[%s827] ss:$9 sm:$0xff] %v687
      %1001 = vst [vmem:[%s829] ss:$9 sm:$0xff] %v688
      %v1002 = vld [vmem:[#allocation1] sm:$0xff]
      %1003 = vst [vmem:[#allocation1] ss:$9 sm:$0xff] %v689
      %1004 = vst [vmem:[%s817] ss:$9 sm:$0xff] %v455
      %1005 = vst [vmem:[%s819] ss:$9 sm:$0xff] %v456
      %1006 = vst [vmem:[%s821] ss:$9 sm:$0xff] %v690
      %1007 = vst [vmem:[%s823] ss:$9 sm:$0xff] %v691
      %1008 = vst [vmem:[%s825] ss:$9 sm:$0xff] %v692
      %1009 = vst [vmem:[%s827] ss:$9 sm:$0xff] %v693
      %1010 = vst [vmem:[%s829] ss:$9 sm:$0xff] %v694
      %v1011 = vld [vmem:[#allocation1] sm:$0xff]
      %1012 = vst [vmem:[#allocation1] ss:$9 sm:$0xff] %v695
      %1013 = vst [vmem:[%s817] ss:$9 sm:$0xff] %v696
      %1014 = vst [vmem:[%s819] ss:$9 sm:$0xff] %v457
      %1015 = vst [vmem:[%s821] ss:$9 sm:$0xff] %v458
      %1016 = vst [vmem:[%s823] ss:$9 sm:$0xff] %v697
      %1017 = vst [vmem:[%s825] ss:$9 sm:$0xff] %v698
      %1018 = vst [vmem:[%s827] ss:$9 sm:$0xff] %v699
      %1019 = vst [vmem:[%s829] ss:$9 sm:$0xff] %v700
      %v1020 = vld [vmem:[#allocation1] sm:$0xff]
      %1021 = vst [vmem:[#allocation1] ss:$9 sm:$0xff] %v701
      %1022 = vst [vmem:[%s817] ss:$9 sm:$0xff] %v702
      %1023 = vst [vmem:[%s819] ss:$9 sm:$0xff] %v703
      %1024 = vst [vmem:[%s821] ss:$9 sm:$0xff] %v459
      %1025 = vst [vmem:[%s823] ss:$9 sm:$0xff] %v460
      %1026 = vst [vmem:[%s825] ss:$9 sm:$0xff] %v704
      %1027 = vst [vmem:[%s827] ss:$9 sm:$0xff] %v705
      %1028 = vst [vmem:[%s829] ss:$9 sm:$0xff] %v706
      %v1029 = vld [vmem:[#allocation1] sm:$0xff]
      %1030 = vst [vmem:[#allocation1] ss:$9 sm:$0xff] %v707
      %1031 = vst [vmem:[%s817] ss:$9 sm:$0xff] %v708
      %1032 = vst [vmem:[%s819] ss:$9 sm:$0xff] %v709
      %1033 = vst [vmem:[%s821] ss:$9 sm:$0xff] %v710
      %1034 = vst [vmem:[%s823] ss:$9 sm:$0xff] %v461
      %1035 = vst [vmem:[%s825] ss:$9 sm:$0xff] %v462
      %1036 = vst [vmem:[%s827] ss:$9 sm:$0xff] %v711
      %1037 = vst [vmem:[%s829] ss:$9 sm:$0xff] %v712
      %v1038 = vld [vmem:[#allocation1] sm:$0xff]
      %1039 = vst [vmem:[#allocation1] ss:$9 sm:$0xff] %v713
      %1040 = vst [vmem:[%s817] ss:$9 sm:$0xff] %v714
      %1041 = vst [vmem:[%s819] ss:$9 sm:$0xff] %v715
      %1042 = vst [vmem:[%s821] ss:$9 sm:$0xff] %v716
      %1043 = vst [vmem:[%s823] ss:$9 sm:$0xff] %v717
      %1044 = vst [vmem:[%s825] ss:$9 sm:$0xff] %v463
      %1045 = vst [vmem:[%s827] ss:$9 sm:$0xff] %v464
      %1046 = vst [vmem:[%s829] ss:$9 sm:$0xff] %v718
      %v1047 = vld [vmem:[#allocation1] sm:$0xff]
      %1048 = vst [vmem:[#allocation1] ss:$9 sm:$0xff] %v719
      %1049 = vst [vmem:[%s817] ss:$9 sm:$0xff] %v720
      %1050 = vst [vmem:[%s819] ss:$9 sm:$0xff] %v721
      %1051 = vst [vmem:[%s821] ss:$9 sm:$0xff] %v722
      %1052 = vst [vmem:[%s823] ss:$9 sm:$0xff] %v723
      %1053 = vst [vmem:[%s825] ss:$9 sm:$0xff] %v724
      %1054 = vst [vmem:[%s827] ss:$9 sm:$0xff] %v465
      %1055 = vst [vmem:[%s829] ss:$9 sm:$0xff] %v466
      %v1056 = vld [vmem:[#allocation1] sm:$0xff]
      %1057 = vst [vmem:[#allocation1] ss:$9 sm:$0xff] %v725
      %1058 = vst [vmem:[%s817] ss:$9 sm:$0xff] %v726
      %1059 = vst [vmem:[%s819] ss:$9 sm:$0xff] %v727
      %1060 = vst [vmem:[%s821] ss:$9 sm:$0xff] %v728
      %1061 = vst [vmem:[%s823] ss:$9 sm:$0xff] %v729
      %1062 = vst [vmem:[%s825] ss:$9 sm:$0xff] %v730
      %1063 = vst [vmem:[%s827] ss:$9 sm:$0xff] %v731
      %1064 = vst [vmem:[%s829] ss:$9 sm:$0xff] %v467
      %v1065 = vld [vmem:[#allocation1] sm:$0xff]
      %1066 = vst [vmem:[#allocation1] ss:$9 sm:$0xff] %v468
      %1067 = vst [vmem:[%s817] ss:$9 sm:$0xff] %v732
      %1068 = vst [vmem:[%s819] ss:$9 sm:$0xff] %v733
      %1069 = vst [vmem:[%s821] ss:$9 sm:$0xff] %v734
      %1070 = vst [vmem:[%s823] ss:$9 sm:$0xff] %v735
      %1071 = vst [vmem:[%s825] ss:$9 sm:$0xff] %v736
      %1072 = vst [vmem:[%s827] ss:$9 sm:$0xff] %v737
      %1073 = vst [vmem:[%s829] ss:$9 sm:$0xff] %v738
      %v1074 = vld [vmem:[#allocation1] sm:$0xff]
      %1075 = vst [vmem:[#allocation1] ss:$9 sm:$0xff] %v469
      %1076 = vst [vmem:[%s817] ss:$9 sm:$0xff] %v470
      %1077 = vst [vmem:[%s819] ss:$9 sm:$0xff] %v739
      %1078 = vst [vmem:[%s821] ss:$9 sm:$0xff] %v740
      %1079 = vst [vmem:[%s823] ss:$9 sm:$0xff] %v741
      %1080 = vst [vmem:[%s825] ss:$9 sm:$0xff] %v742
      %1081 = vst [vmem:[%s827] ss:$9 sm:$0xff] %v743
      %1082 = vst [vmem:[%s829] ss:$9 sm:$0xff] %v744
      %v1083 = vld [vmem:[#allocation1] sm:$0xff]
      %1084 = vst [vmem:[#allocation1] ss:$9 sm:$0xff] %v745
      %1085 = vst [vmem:[%s817] ss:$9 sm:$0xff] %v471
      %1086 = vst [vmem:[%s819] ss:$9 sm:$0xff] %v472
      %1087 = vst [vmem:[%s821] ss:$9 sm:$0xff] %v746
      %1088 = vst [vmem:[%s823] ss:$9 sm:$0xff] %v747
      %1089 = vst [vmem:[%s825] ss:$9 sm:$0xff] %v748
      %1090 = vst [vmem:[%s827] ss:$9 sm:$0xff] %v749
      %1091 = vst [vmem:[%s829] ss:$9 sm:$0xff] %v750
      %v1092 = vld [vmem:[#allocation1] sm:$0xff]
      %1093 = vst [vmem:[#allocation1] ss:$9 sm:$0xff] %v751
      %1094 = vst [vmem:[%s817] ss:$9 sm:$0xff] %v752
      %1095 = vst [vmem:[%s819] ss:$9 sm:$0xff] %v473
      %1096 = vst [vmem:[%s821] ss:$9 sm:$0xff] %v474
      %1097 = vst [vmem:[%s823] ss:$9 sm:$0xff] %v753
      %1098 = vst [vmem:[%s825] ss:$9 sm:$0xff] %v754
      %1099 = vst [vmem:[%s827] ss:$9 sm:$0xff] %v755
      %1100 = vst [vmem:[%s829] ss:$9 sm:$0xff] %v756
      %v1101 = vld [vmem:[#allocation1] sm:$0xff]
      %1102 = vst [vmem:[#allocation1] ss:$9 sm:$0xff] %v757
      %1103 = vst [vmem:[%s817] ss:$9 sm:$0xff] %v758
      %1104 = vst [vmem:[%s819] ss:$9 sm:$0xff] %v759
      %1105 = vst [vmem:[%s821] ss:$9 sm:$0xff] %v475
      %1106 = vst [vmem:[%s823] ss:$9 sm:$0xff] %v476
      %1107 = vst [vmem:[%s825] ss:$9 sm:$0xff] %v760
      %1108 = vst [vmem:[%s827] ss:$9 sm:$0xff] %v761
      %1109 = vst [vmem:[%s829] ss:$9 sm:$0xff] %v762
      %v1110 = vld [vmem:[#allocation1] sm:$0xff]
      %1111 = vst [vmem:[#allocation1] ss:$9 sm:$0xff] %v763
      %1112 = vst [vmem:[%s817] ss:$9 sm:$0xff] %v764
      %1113 = vst [vmem:[%s819] ss:$9 sm:$0xff] %v765
      %1114 = vst [vmem:[%s821] ss:$9 sm:$0xff] %v766
      %1115 = vst [vmem:[%s823] ss:$9 sm:$0xff] %v477
      %1116 = vst [vmem:[%s825] ss:$9 sm:$0xff] %v478
      %1117 = vst [vmem:[%s827] ss:$9 sm:$0xff] %v767
      %1118 = vst [vmem:[%s829] ss:$9 sm:$0xff] %v768
      %v1119 = vld [vmem:[#allocation1] sm:$0xff]
      %1120 = vst [vmem:[#allocation1] ss:$9 sm:$0xff] %v769
      %1121 = vst [vmem:[%s817] ss:$9 sm:$0xff] %v770
      %1122 = vst [vmem:[%s819] ss:$9 sm:$0xff] %v771
      %1123 = vst [vmem:[%s821] ss:$9 sm:$0xff] %v772
      %1124 = vst [vmem:[%s823] ss:$9 sm:$0xff] %v773
      %1125 = vst [vmem:[%s825] ss:$9 sm:$0xff] %v479
      %1126 = vst [vmem:[%s827] ss:$9 sm:$0xff] %v480
      %1127 = vst [vmem:[%s829] ss:$9 sm:$0xff] %v774
      %v1128 = vld [vmem:[#allocation1] sm:$0xff]
      %1129 = vst [vmem:[#allocation1] ss:$9 sm:$0xff] %v775
      %1130 = vst [vmem:[%s817] ss:$9 sm:$0xff] %v776
      %1131 = vst [vmem:[%s819] ss:$9 sm:$0xff] %v777
      %1132 = vst [vmem:[%s821] ss:$9 sm:$0xff] %v778
      %1133 = vst [vmem:[%s823] ss:$9 sm:$0xff] %v779
      %1134 = vst [vmem:[%s825] ss:$9 sm:$0xff] %v780
      %1135 = vst [vmem:[%s827] ss:$9 sm:$0xff] %v481
      %1136 = vst [vmem:[%s829] ss:$9 sm:$0xff] %v482
      %v1137 = vld [vmem:[#allocation1] sm:$0xff]
      %1138 = vst [vmem:[#allocation1] ss:$9 sm:$0xff] %v781
      %1139 = vst [vmem:[%s817] ss:$9 sm:$0xff] %v782
      %1140 = vst [vmem:[%s819] ss:$9 sm:$0xff] %v783
      %1141 = vst [vmem:[%s821] ss:$9 sm:$0xff] %v784
      %1142 = vst [vmem:[%s823] ss:$9 sm:$0xff] %v785
      %1143 = vst [vmem:[%s825] ss:$9 sm:$0xff] %v786
      %1144 = vst [vmem:[%s827] ss:$9 sm:$0xff] %v787
      %1145 = vst [vmem:[%s829] ss:$9 sm:$0xff] %v483
      %v1146 = vld [vmem:[#allocation1] sm:$0xff]
      %1147 = vst [vmem:[#allocation1] ss:$9 sm:$0xff] %v484
      %1148 = vst [vmem:[%s817] ss:$9 sm:$0xff] %v788
      %1149 = vst [vmem:[%s819] ss:$9 sm:$0xff] %v789
      %1150 = vst [vmem:[%s821] ss:$9 sm:$0xff] %v790
      %1151 = vst [vmem:[%s823] ss:$9 sm:$0xff] %v791
      %1152 = vst [vmem:[%s825] ss:$9 sm:$0xff] %v792
      %1153 = vst [vmem:[%s827] ss:$9 sm:$0xff] %v793
      %1154 = vst [vmem:[%s829] ss:$9 sm:$0xff] %v794
      %v1155 = vld [vmem:[#allocation1] sm:$0xff]
      %1156 = vst [vmem:[#allocation1] ss:$9 sm:$0xff] %v485
      %1157 = vst [vmem:[%s817] ss:$9 sm:$0xff] %v486
      %1158 = vst [vmem:[%s819] ss:$9 sm:$0xff] %v795
      %1159 = vst [vmem:[%s821] ss:$9 sm:$0xff] %v796
      %1160 = vst [vmem:[%s823] ss:$9 sm:$0xff] %v797
      %1161 = vst [vmem:[%s825] ss:$9 sm:$0xff] %v798
      %1162 = vst [vmem:[%s827] ss:$9 sm:$0xff] %v799
      %1163 = vst [vmem:[%s829] ss:$9 sm:$0xff] %v800
      %v1164 = vld [vmem:[#allocation1] sm:$0xff]
      %1165 = vst [vmem:[#allocation1] ss:$9 sm:$0xff] %v801
      %1166 = vst [vmem:[%s817] ss:$9 sm:$0xff] %v487
      %1167 = vst [vmem:[%s819] ss:$9 sm:$0xff] %v488
      %1168 = vst [vmem:[%s821] ss:$9 sm:$0xff] %v802
      %1169 = vst [vmem:[%s823] ss:$9 sm:$0xff] %v803
      %1170 = vst [vmem:[%s825] ss:$9 sm:$0xff] %v804
      %1171 = vst [vmem:[%s827] ss:$9 sm:$0xff] %v805
      %1172 = vst [vmem:[%s829] ss:$9 sm:$0xff] %v806
      %v1173 = vld [vmem:[#allocation1] sm:$0xff]
      %1174 = vst [vmem:[#allocation1] ss:$9 sm:$0xff] %v807
      %1175 = vst [vmem:[%s817] ss:$9 sm:$0xff] %v808
      %1176 = vst [vmem:[%s819] ss:$9 sm:$0xff] %v489
      %1177 = vst [vmem:[%s821] ss:$9 sm:$0xff] %v490
      %1178 = vst [vmem:[%s823] ss:$9 sm:$0xff] %v809
      %1179 = vst [vmem:[%s825] ss:$9 sm:$0xff] %v810
      %1180 = vst [vmem:[%s827] ss:$9 sm:$0xff] %v811
      %1181 = vst [vmem:[%s829] ss:$9 sm:$0xff] %v812
      %v1182 = vld [vmem:[#allocation1] sm:$0xff]
      %1183 = vst [vmem:[#allocation1] ss:$9 sm:$0xff] %v813
      %1184 = vst [vmem:[%s817] ss:$9 sm:$0xff] %v814
      %1185 = vst [vmem:[%s819] ss:$9 sm:$0xff] %v815
      %1186 = vst [vmem:[%s821] ss:$9 sm:$0xff] %v491
      %v1187 = vld [vmem:[#allocation1] sm:$0xff]
      %v1229 = vpack.c.bf16 %v840, %v831
      %v1230 = vpack.c.bf16 %v858, %v849
      %v1231 = vpack.c.bf16 %v876, %v867
      %v1232 = vpack.c.bf16 %v894, %v885
      %v1233 = vpack.c.bf16 %v912, %v903
      %v1234 = vpack.c.bf16 %v930, %v921
      %v1235 = vpack.c.bf16 %v948, %v939
      %v1236 = vpack.c.bf16 %v966, %v957
      %v1237 = vpack.c.bf16 %v984, %v975
      %v1238 = vpack.c.bf16 %v1002, %v993
      %v1239 = vpack.c.bf16 %v1020, %v1011
      %v1240 = vpack.c.bf16 %v1038, %v1029
      %v1241 = vpack.c.bf16 %v1056, %v1047
      %v1242 = vpack.c.bf16 %v1074, %v1065
      %v1243 = vpack.c.bf16 %v1092, %v1083
      %v1244 = vpack.c.bf16 %v1110, %v1101
      %v1245 = vpack.c.bf16 %v1128, %v1119
      %v1246 = vpack.c.bf16 %v1146, %v1137
      %v1247 = vpack.c.bf16 %v1164, %v1155
      %v1248 = vpack.c.bf16 %v1182, %v1173
      %v1249 = vpack.c.bf16 %v1187, %v1187
      %v1250 = vld [vmem:[%s2] sm:$0xf]
      %v1251 = vld [vmem:[%s2 + $0x4] sm:$0xf]
      %v1252 = vld [vmem:[%s2 + $0x8] sm:$0xf]
      %v1253 = vld [vmem:[%s2 + $0xc] sm:$0xf]
      %v1258 = vunpack.c.l.b16 %v1250
      %v1259 = vunpack.c.l.b16 %v1251
      %v1260 = vunpack.c.l.b16 %v1252
      %v1261 = vunpack.c.l.b16 %v1253
      %v1262 = vpack.c.b16 %v1259, %v1258
      %v1263 = vpack.c.b16 %v1261, %v1260
      %vm1266 = vcmask 261120
      %v1268 = vsel %vm1266, %v1229, 0
      %v1271 = vsel %vm1266, %v1230, 0
      %v1274 = vsel %vm1266, %v1231, 0
      %v1277 = vsel %vm1266, %v1232, 0
      %v1280 = vsel %vm1266, %v1233, 0
      %v1283 = vsel %vm1266, %v1234, 0
      %v1286 = vsel %vm1266, %v1235, 0
      %v1289 = vsel %vm1266, %v1236, 0
      %v1292 = vsel %vm1266, %v1237, 0
      %v1295 = vsel %vm1266, %v1238, 0
      %v1298 = vsel %vm1266, %v1239, 0
      %v1301 = vsel %vm1266, %v1240, 0
      %v1304 = vsel %vm1266, %v1241, 0
      %v1307 = vsel %vm1266, %v1242, 0
      %v1310 = vsel %vm1266, %v1243, 0
      %v1313 = vsel %vm1266, %v1244, 0
      %v1316 = vsel %vm1266, %v1245, 0
      %v1319 = vsel %vm1266, %v1246, 0
      %v1322 = vsel %vm1266, %v1247, 0
      %v1325 = vsel %vm1266, %v1248, 0
      %v1328 = vsel %vm1266, %v1249, 0
      %1330 = vmatpush.bf16.msra.mxu0 0
      %1331 = vmatpush.bf16.msra.mxu0 0
      %1332 = vmatpush.bf16.msra.mxu0 0
      %1333 = vmatpush.bf16.msra.mxu0 0
      %1334 = vmatpush.bf16.msra.mxu0 0
      %1335 = vmatpush.bf16.msra.mxu0 0
      %1336 = vmatpush.bf16.msra.mxu0 %v1263
      %1337 = vmatpush.bf16.msra.mxu0 %v1262
      %1338 = vmatmul.bf16.gmra.mxu0 %v1268
      %v1339 = vpop.f32.mrf.mxu0
      %v1340 = vadd.f32 0.0, %v1339
      %v1341 = vpop.f32.mrf.mxu0
      %v1342 = vadd.f32 0.0, %v1341
      %1343 = vmatmul.bf16.gmra.mxu0 %v1271
      %v1344 = vpop.f32.mrf.mxu0
      %v1345 = vadd.f32 0.0, %v1344
      %v1346 = vpop.f32.mrf.mxu0
      %v1347 = vadd.f32 0.0, %v1346
      %1348 = vmatmul.bf16.gmra.mxu0 %v1274
      %v1349 = vpop.f32.mrf.mxu0
      %v1350 = vadd.f32 0.0, %v1349
      %v1351 = vpop.f32.mrf.mxu0
      %v1352 = vadd.f32 0.0, %v1351
      %1353 = vmatmul.bf16.gmra.mxu0 %v1277
      %v1354 = vpop.f32.mrf.mxu0
      %v1355 = vadd.f32 0.0, %v1354
      %v1356 = vpop.f32.mrf.mxu0
      %v1357 = vadd.f32 0.0, %v1356
      %1358 = vmatmul.bf16.gmra.mxu0 %v1280
      %v1359 = vpop.f32.mrf.mxu0
      %v1360 = vadd.f32 0.0, %v1359
      %v1361 = vpop.f32.mrf.mxu0
      %v1362 = vadd.f32 0.0, %v1361
      %1363 = vmatmul.bf16.gmra.mxu0 %v1283
      %v1364 = vpop.f32.mrf.mxu0
      %v1365 = vadd.f32 0.0, %v1364
      %v1366 = vpop.f32.mrf.mxu0
      %v1367 = vadd.f32 0.0, %v1366
      %1368 = vmatmul.bf16.gmra.mxu0 %v1286
      %v1369 = vpop.f32.mrf.mxu0
      %v1370 = vadd.f32 0.0, %v1369
      %v1371 = vpop.f32.mrf.mxu0
      %v1372 = vadd.f32 0.0, %v1371
      %1373 = vmatmul.bf16.gmra.mxu0 %v1289
      %v1374 = vpop.f32.mrf.mxu0
      %v1375 = vadd.f32 0.0, %v1374
      %v1376 = vpop.f32.mrf.mxu0
      %v1377 = vadd.f32 0.0, %v1376
      %1378 = vmatmul.bf16.gmra.mxu0 %v1292
      %v1379 = vpop.f32.mrf.mxu0
      %v1380 = vadd.f32 0.0, %v1379
      %v1381 = vpop.f32.mrf.mxu0
      %v1382 = vadd.f32 0.0, %v1381
      %1383 = vmatmul.bf16.gmra.mxu0 %v1295
      %v1384 = vpop.f32.mrf.mxu0
      %v1385 = vadd.f32 0.0, %v1384
      %v1386 = vpop.f32.mrf.mxu0
      %v1387 = vadd.f32 0.0, %v1386
      %1388 = vmatmul.bf16.gmra.mxu0 %v1298
      %v1389 = vpop.f32.mrf.mxu0
      %v1390 = vadd.f32 0.0, %v1389
      %v1391 = vpop.f32.mrf.mxu0
      %v1392 = vadd.f32 0.0, %v1391
      %1393 = vmatmul.bf16.gmra.mxu0 %v1301
      %v1394 = vpop.f32.mrf.mxu0
      %v1395 = vadd.f32 0.0, %v1394
      %v1396 = vpop.f32.mrf.mxu0
      %v1397 = vadd.f32 0.0, %v1396
      %1398 = vmatmul.bf16.gmra.mxu0 %v1304
      %v1399 = vpop.f32.mrf.mxu0
      %v1400 = vadd.f32 0.0, %v1399
      %v1401 = vpop.f32.mrf.mxu0
      %v1402 = vadd.f32 0.0, %v1401
      %1403 = vmatmul.bf16.gmra.mxu0 %v1307
      %v1404 = vpop.f32.mrf.mxu0
      %v1405 = vadd.f32 0.0, %v1404
      %v1406 = vpop.f32.mrf.mxu0
      %v1407 = vadd.f32 0.0, %v1406
      %1408 = vmatmul.bf16.gmra.mxu0 %v1310
      %v1409 = vpop.f32.mrf.mxu0
      %v1410 = vadd.f32 0.0, %v1409
      %v1411 = vpop.f32.mrf.mxu0
      %v1412 = vadd.f32 0.0, %v1411
      %1413 = vmatmul.bf16.gmra.mxu0 %v1313
      %v1414 = vpop.f32.mrf.mxu0
      %v1415 = vadd.f32 0.0, %v1414
      %v1416 = vpop.f32.mrf.mxu0
      %v1417 = vadd.f32 0.0, %v1416
      %1418 = vmatmul.bf16.gmra.mxu0 %v1316
      %v1419 = vpop.f32.mrf.mxu0
      %v1420 = vadd.f32 0.0, %v1419
      %v1421 = vpop.f32.mrf.mxu0
      %v1422 = vadd.f32 0.0, %v1421
      %1423 = vmatmul.bf16.gmra.mxu0 %v1319
      %v1424 = vpop.f32.mrf.mxu0
      %v1425 = vadd.f32 0.0, %v1424
      %v1426 = vpop.f32.mrf.mxu0
      %v1427 = vadd.f32 0.0, %v1426
      %1428 = vmatmul.bf16.gmra.mxu0 %v1322
      %v1429 = vpop.f32.mrf.mxu0
      %v1430 = vadd.f32 0.0, %v1429
      %v1431 = vpop.f32.mrf.mxu0
      %v1432 = vadd.f32 0.0, %v1431
      %1433 = vmatmul.bf16.gmra.mxu0 %v1325
      %v1434 = vpop.f32.mrf.mxu0
      %v1435 = vadd.f32 0.0, %v1434
      %v1436 = vpop.f32.mrf.mxu0
      %v1437 = vadd.f32 0.0, %v1436
      %1438 = vmatmul.bf16.gmra.mxu0 %v1328
      %v1439 = vpop.f32.mrf.mxu0
      %v1440 = vpop.f32.mrf.mxu0
      %1441 = vdwg.mxu0
      %v1442 = vld [vmem:[%s3] sm:$0x1]
      %v1444 = vperm.slane %v1442, 0
      %v1446 = vmul.f32 %v1340, %v1444
      %v1447 = vmul.f32 %v1342, %v1444
      %v1448 = vmul.f32 %v1345, %v1444
      %v1449 = vmul.f32 %v1347, %v1444
      %v1450 = vmul.f32 %v1350, %v1444
      %v1451 = vmul.f32 %v1352, %v1444
      %v1452 = vmul.f32 %v1355, %v1444
      %v1453 = vmul.f32 %v1357, %v1444
      %v1454 = vmul.f32 %v1360, %v1444
      %v1455 = vmul.f32 %v1362, %v1444
      %v1456 = vmul.f32 %v1365, %v1444
      %v1457 = vmul.f32 %v1367, %v1444
      %v1458 = vmul.f32 %v1370, %v1444
      %v1459 = vmul.f32 %v1372, %v1444
      %v1460 = vmul.f32 %v1375, %v1444
      %v1461 = vmul.f32 %v1377, %v1444
      %v1462 = vmul.f32 %v1380, %v1444
      %v1463 = vmul.f32 %v1382, %v1444
      %v1464 = vmul.f32 %v1385, %v1444
      %v1465 = vmul.f32 %v1387, %v1444
      %v1466 = vmul.f32 %v1390, %v1444
      %v1467 = vmul.f32 %v1392, %v1444
      %v1468 = vmul.f32 %v1395, %v1444
      %v1469 = vmul.f32 %v1397, %v1444
      %v1470 = vmul.f32 %v1400, %v1444
      %v1471 = vmul.f32 %v1402, %v1444
      %v1472 = vmul.f32 %v1405, %v1444
      %v1473 = vmul.f32 %v1407, %v1444
      %v1474 = vmul.f32 %v1410, %v1444
      %v1475 = vmul.f32 %v1412, %v1444
      %v1476 = vmul.f32 %v1415, %v1444
      %v1477 = vmul.f32 %v1417, %v1444
      %v1478 = vmul.f32 %v1420, %v1444
      %v1479 = vmul.f32 %v1422, %v1444
      %v1480 = vmul.f32 %v1425, %v1444
      %v1481 = vmul.f32 %v1427, %v1444
      %v1482 = vmul.f32 %v1430, %v1444
      %v1483 = vmul.f32 %v1432, %v1444
      %v1484 = vmul.f32 %v1435, %v1444
      %v1485 = vmul.f32 %v1437, %v1444
      %v1486 = vld [vmem:[%s4] sm:$0x1]
      %v1488 = vperm.slane %v1486, 0
      %v1490 = vadd.f32 %v1446, %v1488
      %v1491 = vadd.f32 %v1447, %v1488
      %v1492 = vadd.f32 %v1448, %v1488
      %v1493 = vadd.f32 %v1449, %v1488
      %v1494 = vadd.f32 %v1450, %v1488
      %v1495 = vadd.f32 %v1451, %v1488
      %v1496 = vadd.f32 %v1452, %v1488
      %v1497 = vadd.f32 %v1453, %v1488
      %v1498 = vadd.f32 %v1454, %v1488
      %v1499 = vadd.f32 %v1455, %v1488
      %v1500 = vadd.f32 %v1456, %v1488
      %v1501 = vadd.f32 %v1457, %v1488
      %v1502 = vadd.f32 %v1458, %v1488
      %v1503 = vadd.f32 %v1459, %v1488
      %v1504 = vadd.f32 %v1460, %v1488
      %v1505 = vadd.f32 %v1461, %v1488
      %v1506 = vadd.f32 %v1462, %v1488
      %v1507 = vadd.f32 %v1463, %v1488
      %v1508 = vadd.f32 %v1464, %v1488
      %v1509 = vadd.f32 %v1465, %v1488
      %v1510 = vadd.f32 %v1466, %v1488
      %v1511 = vadd.f32 %v1467, %v1488
      %v1512 = vadd.f32 %v1468, %v1488
      %v1513 = vadd.f32 %v1469, %v1488
      %v1514 = vadd.f32 %v1470, %v1488
      %v1515 = vadd.f32 %v1471, %v1488
      %v1516 = vadd.f32 %v1472, %v1488
      %v1517 = vadd.f32 %v1473, %v1488
      %v1518 = vadd.f32 %v1474, %v1488
      %v1519 = vadd.f32 %v1475, %v1488
      %v1520 = vadd.f32 %v1476, %v1488
      %v1521 = vadd.f32 %v1477, %v1488
      %v1522 = vadd.f32 %v1478, %v1488
      %v1523 = vadd.f32 %v1479, %v1488
      %v1524 = vadd.f32 %v1480, %v1488
      %v1525 = vadd.f32 %v1481, %v1488
      %v1526 = vadd.f32 %v1482, %v1488
      %v1527 = vadd.f32 %v1483, %v1488
      %v1528 = vadd.f32 %v1484, %v1488
      %v1529 = vadd.f32 %v1485, %v1488
      %v1530 = vmax.f32 %v1490, 0.0
      %v1531 = vmax.f32 %v1491, 0.0
      %v1532 = vmax.f32 %v1492, 0.0
      %v1533 = vmax.f32 %v1493, 0.0
      %v1534 = vmax.f32 %v1494, 0.0
      %v1535 = vmax.f32 %v1495, 0.0
      %v1536 = vmax.f32 %v1496, 0.0
      %v1537 = vmax.f32 %v1497, 0.0
      %v1538 = vmax.f32 %v1498, 0.0
      %v1539 = vmax.f32 %v1499, 0.0
      %v1540 = vmax.f32 %v1500, 0.0
      %v1541 = vmax.f32 %v1501, 0.0
      %v1542 = vmax.f32 %v1502, 0.0
      %v1543 = vmax.f32 %v1503, 0.0
      %v1544 = vmax.f32 %v1504, 0.0
      %v1545 = vmax.f32 %v1505, 0.0
      %v1546 = vmax.f32 %v1506, 0.0
      %v1547 = vmax.f32 %v1507, 0.0
      %v1548 = vmax.f32 %v1508, 0.0
      %v1549 = vmax.f32 %v1509, 0.0
      %v1550 = vmax.f32 %v1510, 0.0
      %v1551 = vmax.f32 %v1511, 0.0
      %v1552 = vmax.f32 %v1512, 0.0
      %v1553 = vmax.f32 %v1513, 0.0
      %v1554 = vmax.f32 %v1514, 0.0
      %v1555 = vmax.f32 %v1515, 0.0
      %v1556 = vmax.f32 %v1516, 0.0
      %v1557 = vmax.f32 %v1517, 0.0
      %v1558 = vmax.f32 %v1518, 0.0
      %v1559 = vmax.f32 %v1519, 0.0
      %v1560 = vmax.f32 %v1520, 0.0
      %v1561 = vmax.f32 %v1521, 0.0
      %v1562 = vmax.f32 %v1522, 0.0
      %v1563 = vmax.f32 %v1523, 0.0
      %v1564 = vmax.f32 %v1524, 0.0
      %v1565 = vmax.f32 %v1525, 0.0
      %v1566 = vmax.f32 %v1526, 0.0
      %v1567 = vmax.f32 %v1527, 0.0
      %v1568 = vmax.f32 %v1528, 0.0
      %v1569 = vmax.f32 %v1529, 0.0
      %v1570 = vld [vmem:[%s1] sm:$0xff]
      %v1571 = vld [vmem:[%s1 + $0x8] sm:$0xff]
      %v1572 = vld [vmem:[%s1 + $0x10] sm:$0xff]
      %v1573 = vld [vmem:[%s1 + $0x18] sm:$0xff]
      %v1574 = vld [vmem:[%s1 + $0x20] sm:$0xff]
      %v1575 = vld [vmem:[%s1 + $0x28] sm:$0xff]
      %v1576 = vld [vmem:[%s1 + $0x30] sm:$0xff]
      %v1577 = vld [vmem:[%s1 + $0x38] sm:$0xff]
      %v1578 = vld [vmem:[%s1 + $0x40] sm:$0xff]
      %v1579 = vld [vmem:[%s1 + $0x48] sm:$0xff]
      %v1580 = vld [vmem:[%s1 + $0x50] sm:$0xff]
      %v1581 = vld [vmem:[%s1 + $0x58] sm:$0xff]
      %v1582 = vld [vmem:[%s1 + $0x60] sm:$0xff]
      %v1583 = vld [vmem:[%s1 + $0x68] sm:$0xff]
      %v1584 = vld [vmem:[%s1 + $0x70] sm:$0xff]
      %v1585 = vld [vmem:[%s1 + $0x78] sm:$0xff]
      %v1586 = vld [vmem:[%s1 + $0x80] sm:$0xff]
      %v1587 = vld [vmem:[%s1 + $0x88] sm:$0xff]
      %v1588 = vld [vmem:[%s1 + $0x90] sm:$0xff]
      %v1589 = vld [vmem:[%s1 + $0x98] sm:$0xff]
      %v1590 = vld [vmem:[%s1 + $0xa0] sm:$0xff]
      %v1591 = vld [vmem:[%s1 + $0xa8] sm:$0xff]
      %v1592 = vld [vmem:[%s1 + $0xb0] sm:$0xff]
      %v1593 = vld [vmem:[%s1 + $0xb8] sm:$0xff]
      %v1594 = vld [vmem:[%s1 + $0xc0] sm:$0xff]
      %v1595 = vld [vmem:[%s1 + $0xc8] sm:$0xff]
      %v1596 = vld [vmem:[%s1 + $0xd0] sm:$0xff]
      %v1597 = vld [vmem:[%s1 + $0xd8] sm:$0xff]
      %v1598 = vld [vmem:[%s1 + $0xe0] sm:$0xff]
      %v1599 = vld [vmem:[%s1 + $0xe8] sm:$0xff]
      %v1600 = vld [vmem:[%s1 + $0xf0] sm:$0xff]
      %v1601 = vld [vmem:[%s1 + $0xf8] sm:$0xff]
      %v1602 = vld [vmem:[%s1 + $0x100] sm:$0xff]
      %v1603 = vld [vmem:[%s1 + $0x108] sm:$0xff]
      %v1604 = vld [vmem:[%s1 + $0x110] sm:$0xff]
      %v1605 = vld [vmem:[%s1 + $0x118] sm:$0xff]
      %v1606 = vld [vmem:[%s1 + $0x120] sm:$0xff]
      %v1607 = vld [vmem:[%s1 + $0x128] sm:$0xff]
      %v1608 = vld [vmem:[%s1 + $0x130] sm:$0xff]
      %v1609 = vld [vmem:[%s1 + $0x138] sm:$0xff]
      %1611 = vset.pattern.permute.xlu0 0
      %1612 = vperm.xlu0 %1611, %v1570
      %v1613 = vpop.permute.xlu0 %1612
      %1616 = vset.pattern.permute.xlu0 0
      %1617 = vperm.xlu0 %1616, %v1571
      %v1618 = vpop.permute.xlu0 %1617
      %1621 = vset.pattern.permute.xlu0 0
      %1622 = vperm.xlu0 %1621, %v1572
      %v1623 = vpop.permute.xlu0 %1622
      %1626 = vset.pattern.permute.xlu0 0
      %1627 = vperm.xlu0 %1626, %v1573
      %v1628 = vpop.permute.xlu0 %1627
      %1631 = vset.pattern.permute.xlu0 0
      %1632 = vperm.xlu0 %1631, %v1574
      %v1633 = vpop.permute.xlu0 %1632
      %1636 = vset.pattern.permute.xlu0 0
      %1637 = vperm.xlu0 %1636, %v1575
      %v1638 = vpop.permute.xlu0 %1637
      %1641 = vset.pattern.permute.xlu0 0
      %1642 = vperm.xlu0 %1641, %v1576
      %v1643 = vpop.permute.xlu0 %1642
      %1646 = vset.pattern.permute.xlu0 0
      %1647 = vperm.xlu0 %1646, %v1577
      %v1648 = vpop.permute.xlu0 %1647
      %1651 = vset.pattern.permute.xlu0 0
      %1652 = vperm.xlu0 %1651, %v1578
      %v1653 = vpop.permute.xlu0 %1652
      %1656 = vset.pattern.permute.xlu0 0
      %1657 = vperm.xlu0 %1656, %v1579
      %v1658 = vpop.permute.xlu0 %1657
      %1661 = vset.pattern.permute.xlu0 0
      %1662 = vperm.xlu0 %1661, %v1580
      %v1663 = vpop.permute.xlu0 %1662
      %1666 = vset.pattern.permute.xlu0 0
      %1667 = vperm.xlu0 %1666, %v1581
      %v1668 = vpop.permute.xlu0 %1667
      %1671 = vset.pattern.permute.xlu0 0
      %1672 = vperm.xlu0 %1671, %v1582
      %v1673 = vpop.permute.xlu0 %1672
      %1676 = vset.pattern.permute.xlu0 0
      %1677 = vperm.xlu0 %1676, %v1583
      %v1678 = vpop.permute.xlu0 %1677
      %1681 = vset.pattern.permute.xlu0 0
      %1682 = vperm.xlu0 %1681, %v1584
      %v1683 = vpop.permute.xlu0 %1682
      %1686 = vset.pattern.permute.xlu0 0
      %1687 = vperm.xlu0 %1686, %v1585
      %v1688 = vpop.permute.xlu0 %1687
      %1691 = vset.pattern.permute.xlu0 0
      %1692 = vperm.xlu0 %1691, %v1586
      %v1693 = vpop.permute.xlu0 %1692
      %1696 = vset.pattern.permute.xlu0 0
      %1697 = vperm.xlu0 %1696, %v1587
      %v1698 = vpop.permute.xlu0 %1697
      %1701 = vset.pattern.permute.xlu0 0
      %1702 = vperm.xlu0 %1701, %v1588
      %v1703 = vpop.permute.xlu0 %1702
      %1706 = vset.pattern.permute.xlu0 0
      %1707 = vperm.xlu0 %1706, %v1589
      %v1708 = vpop.permute.xlu0 %1707
      %1711 = vset.pattern.permute.xlu0 0
      %1712 = vperm.xlu0 %1711, %v1590
      %v1713 = vpop.permute.xlu0 %1712
      %1716 = vset.pattern.permute.xlu0 0
      %1717 = vperm.xlu0 %1716, %v1591
      %v1718 = vpop.permute.xlu0 %1717
      %1721 = vset.pattern.permute.xlu0 0
      %1722 = vperm.xlu0 %1721, %v1592
      %v1723 = vpop.permute.xlu0 %1722
      %1726 = vset.pattern.permute.xlu0 0
      %1727 = vperm.xlu0 %1726, %v1593
      %v1728 = vpop.permute.xlu0 %1727
      %1731 = vset.pattern.permute.xlu0 0
      %1732 = vperm.xlu0 %1731, %v1594
      %v1733 = vpop.permute.xlu0 %1732
      %1736 = vset.pattern.permute.xlu0 0
      %1737 = vperm.xlu0 %1736, %v1595
      %v1738 = vpop.permute.xlu0 %1737
      %1741 = vset.pattern.permute.xlu0 0
      %1742 = vperm.xlu0 %1741, %v1596
      %v1743 = vpop.permute.xlu0 %1742
      %1746 = vset.pattern.permute.xlu0 0
      %1747 = vperm.xlu0 %1746, %v1597
      %v1748 = vpop.permute.xlu0 %1747
      %1751 = vset.pattern.permute.xlu0 0
      %1752 = vperm.xlu0 %1751, %v1598
      %v1753 = vpop.permute.xlu0 %1752
      %1756 = vset.pattern.permute.xlu0 0
      %1757 = vperm.xlu0 %1756, %v1599
      %v1758 = vpop.permute.xlu0 %1757
      %1761 = vset.pattern.permute.xlu0 0
      %1762 = vperm.xlu0 %1761, %v1600
      %v1763 = vpop.permute.xlu0 %1762
      %1766 = vset.pattern.permute.xlu0 0
      %1767 = vperm.xlu0 %1766, %v1601
      %v1768 = vpop.permute.xlu0 %1767
      %1771 = vset.pattern.permute.xlu0 0
      %1772 = vperm.xlu0 %1771, %v1602
      %v1773 = vpop.permute.xlu0 %1772
      %1776 = vset.pattern.permute.xlu0 0
      %1777 = vperm.xlu0 %1776, %v1603
      %v1778 = vpop.permute.xlu0 %1777
      %1781 = vset.pattern.permute.xlu0 0
      %1782 = vperm.xlu0 %1781, %v1604
      %v1783 = vpop.permute.xlu0 %1782
      %1786 = vset.pattern.permute.xlu0 0
      %1787 = vperm.xlu0 %1786, %v1605
      %v1788 = vpop.permute.xlu0 %1787
      %1791 = vset.pattern.permute.xlu0 0
      %1792 = vperm.xlu0 %1791, %v1606
      %v1793 = vpop.permute.xlu0 %1792
      %1796 = vset.pattern.permute.xlu0 0
      %1797 = vperm.xlu0 %1796, %v1607
      %v1798 = vpop.permute.xlu0 %1797
      %1801 = vset.pattern.permute.xlu0 0
      %1802 = vperm.xlu0 %1801, %v1608
      %v1803 = vpop.permute.xlu0 %1802
      %1806 = vset.pattern.permute.xlu0 0
      %1807 = vperm.xlu0 %1806, %v1609
      %v1808 = vpop.permute.xlu0 %1807
      %v1810 = vmul.f32 %v1530, %v1613
      %v1811 = vmul.f32 %v1531, %v1618
      %v1812 = vmul.f32 %v1532, %v1623
      %v1813 = vmul.f32 %v1533, %v1628
      %v1814 = vmul.f32 %v1534, %v1633
      %v1815 = vmul.f32 %v1535, %v1638
      %v1816 = vmul.f32 %v1536, %v1643
      %v1817 = vmul.f32 %v1537, %v1648
      %v1818 = vmul.f32 %v1538, %v1653
      %v1819 = vmul.f32 %v1539, %v1658
      %v1820 = vmul.f32 %v1540, %v1663
      %v1821 = vmul.f32 %v1541, %v1668
      %v1822 = vmul.f32 %v1542, %v1673
      %v1823 = vmul.f32 %v1543, %v1678
      %v1824 = vmul.f32 %v1544, %v1683
      %v1825 = vmul.f32 %v1545, %v1688
      %v1826 = vmul.f32 %v1546, %v1693
      %v1827 = vmul.f32 %v1547, %v1698
      %v1828 = vmul.f32 %v1548, %v1703
      %v1829 = vmul.f32 %v1549, %v1708
      %v1830 = vmul.f32 %v1550, %v1713
      %v1831 = vmul.f32 %v1551, %v1718
      %v1832 = vmul.f32 %v1552, %v1723
      %v1833 = vmul.f32 %v1553, %v1728
      %v1834 = vmul.f32 %v1554, %v1733
      %v1835 = vmul.f32 %v1555, %v1738
      %v1836 = vmul.f32 %v1556, %v1743
      %v1837 = vmul.f32 %v1557, %v1748
      %v1838 = vmul.f32 %v1558, %v1753
      %v1839 = vmul.f32 %v1559, %v1758
      %v1840 = vmul.f32 %v1560, %v1763
      %v1841 = vmul.f32 %v1561, %v1768
      %v1842 = vmul.f32 %v1562, %v1773
      %v1843 = vmul.f32 %v1563, %v1778
      %v1844 = vmul.f32 %v1564, %v1783
      %v1845 = vmul.f32 %v1565, %v1788
      %v1846 = vmul.f32 %v1566, %v1793
      %v1847 = vmul.f32 %v1567, %v1798
      %v1848 = vmul.f32 %v1568, %v1803
      %v1849 = vmul.f32 %v1569, %v1808
      %v1850 = vpack.c.bf16 %v1810, %v1810
      %v1851 = vpack.c.bf16 %v1811, %v1811
      %v1852 = vpack.c.bf16 %v1812, %v1812
      %v1853 = vpack.c.bf16 %v1813, %v1813
      %v1854 = vpack.c.bf16 %v1814, %v1814
      %v1855 = vpack.c.bf16 %v1815, %v1815
      %v1856 = vpack.c.bf16 %v1816, %v1816
      %v1857 = vpack.c.bf16 %v1817, %v1817
      %v1858 = vpack.c.bf16 %v1818, %v1818
      %v1859 = vpack.c.bf16 %v1819, %v1819
      %v1860 = vpack.c.bf16 %v1820, %v1820
      %v1861 = vpack.c.bf16 %v1821, %v1821
      %v1862 = vpack.c.bf16 %v1822, %v1822
      %v1863 = vpack.c.bf16 %v1823, %v1823
      %v1864 = vpack.c.bf16 %v1824, %v1824
      %v1865 = vpack.c.bf16 %v1825, %v1825
      %v1866 = vpack.c.bf16 %v1826, %v1826
      %v1867 = vpack.c.bf16 %v1827, %v1827
      %v1868 = vpack.c.bf16 %v1828, %v1828
      %v1869 = vpack.c.bf16 %v1829, %v1829
      %v1870 = vpack.c.bf16 %v1830, %v1830
      %v1871 = vpack.c.bf16 %v1831, %v1831
      %v1872 = vpack.c.bf16 %v1832, %v1832
      %v1873 = vpack.c.bf16 %v1833, %v1833
      %v1874 = vpack.c.bf16 %v1834, %v1834
      %v1875 = vpack.c.bf16 %v1835, %v1835
      %v1876 = vpack.c.bf16 %v1836, %v1836
      %v1877 = vpack.c.bf16 %v1837, %v1837
      %v1878 = vpack.c.bf16 %v1838, %v1838
      %v1879 = vpack.c.bf16 %v1839, %v1839
      %v1880 = vpack.c.bf16 %v1840, %v1840
      %v1881 = vpack.c.bf16 %v1841, %v1841
      %v1882 = vpack.c.bf16 %v1842, %v1842
      %v1883 = vpack.c.bf16 %v1843, %v1843
      %v1884 = vpack.c.bf16 %v1844, %v1844
      %v1885 = vpack.c.bf16 %v1845, %v1845
      %v1886 = vpack.c.bf16 %v1846, %v1846
      %v1887 = vpack.c.bf16 %v1847, %v1847
      %v1888 = vpack.c.bf16 %v1848, %v1848
      %v1889 = vpack.c.bf16 %v1849, %v1849
      %v1930 = vrot.slane %v1850, 3
      %v1931 = vrot.slane %v1851, 3
      %v1932 = vrot.slane %v1852, 3
      %v1933 = vrot.slane %v1853, 3
      %v1934 = vrot.slane %v1854, 3
      %v1935 = vrot.slane %v1855, 3
      %v1936 = vrot.slane %v1856, 3
      %v1937 = vrot.slane %v1857, 3
      %v1938 = vrot.slane %v1858, 3
      %v1939 = vrot.slane %v1859, 3
      %v1940 = vrot.slane %v1860, 3
      %v1941 = vrot.slane %v1861, 3
      %v1942 = vrot.slane %v1862, 3
      %v1943 = vrot.slane %v1863, 3
      %v1944 = vrot.slane %v1864, 3
      %v1945 = vrot.slane %v1865, 3
      %v1946 = vrot.slane %v1866, 3
      %v1947 = vrot.slane %v1867, 3
      %v1948 = vrot.slane %v1868, 3
      %v1949 = vrot.slane %v1869, 3
      %v1950 = vrot.slane %v1870, 3
      %v1951 = vrot.slane %v1871, 3
      %v1952 = vrot.slane %v1872, 3
      %v1953 = vrot.slane %v1873, 3
      %v1954 = vrot.slane %v1874, 3
      %v1955 = vrot.slane %v1875, 3
      %v1956 = vrot.slane %v1876, 3
      %v1957 = vrot.slane %v1877, 3
      %v1958 = vrot.slane %v1878, 3
      %v1959 = vrot.slane %v1879, 3
      %v1960 = vrot.slane %v1880, 3
      %v1961 = vrot.slane %v1881, 3
      %v1962 = vrot.slane %v1882, 3
      %v1963 = vrot.slane %v1883, 3
      %v1964 = vrot.slane %v1884, 3
      %v1965 = vrot.slane %v1885, 3
      %v1966 = vrot.slane %v1886, 3
      %v1967 = vrot.slane %v1887, 3
      %v1968 = vrot.slane %v1888, 3
      %v1969 = vrot.slane %v1889, 3
      %vm1970 = vcmask 1040384
      %v1973 = vsel %vm1970, %v1850, %v1930
      %vm1975 = vcmask 1041409
      %v1976 = vsel %vm1975, %v1850, %v1930
      %v1978 = vrot.slane %v1976, 1
      %vm1979 = vcmask 1042434
      %v1980 = vsel %vm1979, %v1850, %v1930
      %v1982 = vrot.slane %v1980, 2
      %vm1983 = vcmask 1043459
      %v1984 = vsel %vm1983, %v1850, %v1930
      %v1986 = vrot.slane %v1984, 3
      %v1989 = vsel %vm1970, %v1851, %v1931
      %v1991 = vsel %vm1975, %v1851, %v1931
      %v1993 = vrot.slane %v1991, 1
      %v1994 = vsel %vm1979, %v1851, %v1931
      %v1996 = vrot.slane %v1994, 2
      %v1997 = vsel %vm1983, %v1851, %v1931
      %v1999 = vrot.slane %v1997, 3
      %v2002 = vsel %vm1970, %v1852, %v1932
      %v2004 = vsel %vm1975, %v1852, %v1932
      %v2006 = vrot.slane %v2004, 1
      %v2007 = vsel %vm1979, %v1852, %v1932
      %v2009 = vrot.slane %v2007, 2
      %v2010 = vsel %vm1983, %v1852, %v1932
      %v2012 = vrot.slane %v2010, 3
      %v2015 = vsel %vm1970, %v1853, %v1933
      %v2017 = vsel %vm1975, %v1853, %v1933
      %v2019 = vrot.slane %v2017, 1
      %v2020 = vsel %vm1979, %v1853, %v1933
      %v2022 = vrot.slane %v2020, 2
      %v2023 = vsel %vm1983, %v1853, %v1933
      %v2025 = vrot.slane %v2023, 3
      %v2028 = vsel %vm1970, %v1854, %v1934
      %v2030 = vsel %vm1975, %v1854, %v1934
      %v2032 = vrot.slane %v2030, 1
      %v2033 = vsel %vm1979, %v1854, %v1934
      %v2035 = vrot.slane %v2033, 2
      %v2036 = vsel %vm1983, %v1854, %v1934
      %v2038 = vrot.slane %v2036, 3
      %v2041 = vsel %vm1970, %v1855, %v1935
      %v2043 = vsel %vm1975, %v1855, %v1935
      %v2045 = vrot.slane %v2043, 1
      %v2046 = vsel %vm1979, %v1855, %v1935
      %v2048 = vrot.slane %v2046, 2
      %v2049 = vsel %vm1983, %v1855, %v1935
      %v2051 = vrot.slane %v2049, 3
      %v2054 = vsel %vm1970, %v1856, %v1936
      %v2056 = vsel %vm1975, %v1856, %v1936
      %v2058 = vrot.slane %v2056, 1
      %v2059 = vsel %vm1979, %v1856, %v1936
      %v2061 = vrot.slane %v2059, 2
      %v2062 = vsel %vm1983, %v1856, %v1936
      %v2064 = vrot.slane %v2062, 3
      %v2067 = vsel %vm1970, %v1857, %v1937
      %v2069 = vsel %vm1975, %v1857, %v1937
      %v2071 = vrot.slane %v2069, 1
      %v2072 = vsel %vm1979, %v1857, %v1937
      %v2074 = vrot.slane %v2072, 2
      %v2075 = vsel %vm1983, %v1857, %v1937
      %v2077 = vrot.slane %v2075, 3
      %v2080 = vsel %vm1970, %v1858, %v1938
      %v2082 = vsel %vm1975, %v1858, %v1938
      %v2084 = vrot.slane %v2082, 1
      %v2085 = vsel %vm1979, %v1858, %v1938
      %v2087 = vrot.slane %v2085, 2
      %v2088 = vsel %vm1983, %v1858, %v1938
      %v2090 = vrot.slane %v2088, 3
      %v2093 = vsel %vm1970, %v1859, %v1939
      %v2095 = vsel %vm1975, %v1859, %v1939
      %v2097 = vrot.slane %v2095, 1
      %v2098 = vsel %vm1979, %v1859, %v1939
      %v2100 = vrot.slane %v2098, 2
      %v2101 = vsel %vm1983, %v1859, %v1939
      %v2103 = vrot.slane %v2101, 3
      %v2106 = vsel %vm1970, %v1860, %v1940
      %v2108 = vsel %vm1975, %v1860, %v1940
      %v2110 = vrot.slane %v2108, 1
      %v2111 = vsel %vm1979, %v1860, %v1940
      %v2113 = vrot.slane %v2111, 2
      %v2114 = vsel %vm1983, %v1860, %v1940
      %v2116 = vrot.slane %v2114, 3
      %v2119 = vsel %vm1970, %v1861, %v1941
      %v2121 = vsel %vm1975, %v1861, %v1941
      %v2123 = vrot.slane %v2121, 1
      %v2124 = vsel %vm1979, %v1861, %v1941
      %v2126 = vrot.slane %v2124, 2
      %v2127 = vsel %vm1983, %v1861, %v1941
      %v2129 = vrot.slane %v2127, 3
      %v2132 = vsel %vm1970, %v1862, %v1942
      %v2134 = vsel %vm1975, %v1862, %v1942
      %v2136 = vrot.slane %v2134, 1
      %v2137 = vsel %vm1979, %v1862, %v1942
      %v2139 = vrot.slane %v2137, 2
      %v2140 = vsel %vm1983, %v1862, %v1942
      %v2142 = vrot.slane %v2140, 3
      %v2145 = vsel %vm1970, %v1863, %v1943
      %v2147 = vsel %vm1975, %v1863, %v1943
      %v2149 = vrot.slane %v2147, 1
      %v2150 = vsel %vm1979, %v1863, %v1943
      %v2152 = vrot.slane %v2150, 2
      %v2153 = vsel %vm1983, %v1863, %v1943
      %v2155 = vrot.slane %v2153, 3
      %v2158 = vsel %vm1970, %v1864, %v1944
      %v2160 = vsel %vm1975, %v1864, %v1944
      %v2162 = vrot.slane %v2160, 1
      %v2163 = vsel %vm1979, %v1864, %v1944
      %v2165 = vrot.slane %v2163, 2
      %v2166 = vsel %vm1983, %v1864, %v1944
      %v2168 = vrot.slane %v2166, 3
      %v2171 = vsel %vm1970, %v1865, %v1945
      %v2173 = vsel %vm1975, %v1865, %v1945
      %v2175 = vrot.slane %v2173, 1
      %v2176 = vsel %vm1979, %v1865, %v1945
      %v2178 = vrot.slane %v2176, 2
      %v2179 = vsel %vm1983, %v1865, %v1945
      %v2181 = vrot.slane %v2179, 3
      %v2184 = vsel %vm1970, %v1866, %v1946
      %v2186 = vsel %vm1975, %v1866, %v1946
      %v2188 = vrot.slane %v2186, 1
      %v2189 = vsel %vm1979, %v1866, %v1946
      %v2191 = vrot.slane %v2189, 2
      %v2192 = vsel %vm1983, %v1866, %v1946
      %v2194 = vrot.slane %v2192, 3
      %v2197 = vsel %vm1970, %v1867, %v1947
      %v2199 = vsel %vm1975, %v1867, %v1947
      %v2201 = vrot.slane %v2199, 1
      %v2202 = vsel %vm1979, %v1867, %v1947
      %v2204 = vrot.slane %v2202, 2
      %v2205 = vsel %vm1983, %v1867, %v1947
      %v2207 = vrot.slane %v2205, 3
      %v2210 = vsel %vm1970, %v1868, %v1948
      %v2212 = vsel %vm1975, %v1868, %v1948
      %v2214 = vrot.slane %v2212, 1
      %v2215 = vsel %vm1979, %v1868, %v1948
      %v2217 = vrot.slane %v2215, 2
      %v2218 = vsel %vm1983, %v1868, %v1948
      %v2220 = vrot.slane %v2218, 3
      %v2223 = vsel %vm1970, %v1869, %v1949
      %v2225 = vsel %vm1975, %v1869, %v1949
      %v2227 = vrot.slane %v2225, 1
      %v2228 = vsel %vm1979, %v1869, %v1949
      %v2230 = vrot.slane %v2228, 2
      %v2231 = vsel %vm1983, %v1869, %v1949
      %v2233 = vrot.slane %v2231, 3
      %v2236 = vsel %vm1970, %v1870, %v1950
      %v2238 = vsel %vm1975, %v1870, %v1950
      %v2240 = vrot.slane %v2238, 1
      %v2241 = vsel %vm1979, %v1870, %v1950
      %v2243 = vrot.slane %v2241, 2
      %v2244 = vsel %vm1983, %v1870, %v1950
      %v2246 = vrot.slane %v2244, 3
      %v2249 = vsel %vm1970, %v1871, %v1951
      %v2251 = vsel %vm1975, %v1871, %v1951
      %v2253 = vrot.slane %v2251, 1
      %v2254 = vsel %vm1979, %v1871, %v1951
      %v2256 = vrot.slane %v2254, 2
      %v2257 = vsel %vm1983, %v1871, %v1951
      %v2259 = vrot.slane %v2257, 3
      %v2262 = vsel %vm1970, %v1872, %v1952
      %v2264 = vsel %vm1975, %v1872, %v1952
      %v2266 = vrot.slane %v2264, 1
      %v2267 = vsel %vm1979, %v1872, %v1952
      %v2269 = vrot.slane %v2267, 2
      %v2270 = vsel %vm1983, %v1872, %v1952
      %v2272 = vrot.slane %v2270, 3
      %v2275 = vsel %vm1970, %v1873, %v1953
      %v2277 = vsel %vm1975, %v1873, %v1953
      %v2279 = vrot.slane %v2277, 1
      %v2280 = vsel %vm1979, %v1873, %v1953
      %v2282 = vrot.slane %v2280, 2
      %v2283 = vsel %vm1983, %v1873, %v1953
      %v2285 = vrot.slane %v2283, 3
      %v2288 = vsel %vm1970, %v1874, %v1954
      %v2290 = vsel %vm1975, %v1874, %v1954
      %v2292 = vrot.slane %v2290, 1
      %v2293 = vsel %vm1979, %v1874, %v1954
      %v2295 = vrot.slane %v2293, 2
      %v2296 = vsel %vm1983, %v1874, %v1954
      %v2298 = vrot.slane %v2296, 3
      %v2301 = vsel %vm1970, %v1875, %v1955
      %v2303 = vsel %vm1975, %v1875, %v1955
      %v2305 = vrot.slane %v2303, 1
      %v2306 = vsel %vm1979, %v1875, %v1955
      %v2308 = vrot.slane %v2306, 2
      %v2309 = vsel %vm1983, %v1875, %v1955
      %v2311 = vrot.slane %v2309, 3
      %v2314 = vsel %vm1970, %v1876, %v1956
      %v2316 = vsel %vm1975, %v1876, %v1956
      %v2318 = vrot.slane %v2316, 1
      %v2319 = vsel %vm1979, %v1876, %v1956
      %v2321 = vrot.slane %v2319, 2
      %v2322 = vsel %vm1983, %v1876, %v1956
      %v2324 = vrot.slane %v2322, 3
      %v2327 = vsel %vm1970, %v1877, %v1957
      %v2329 = vsel %vm1975, %v1877, %v1957
      %v2331 = vrot.slane %v2329, 1
      %v2332 = vsel %vm1979, %v1877, %v1957
      %v2334 = vrot.slane %v2332, 2
      %v2335 = vsel %vm1983, %v1877, %v1957
      %v2337 = vrot.slane %v2335, 3
      %v2340 = vsel %vm1970, %v1878, %v1958
      %v2342 = vsel %vm1975, %v1878, %v1958
      %v2344 = vrot.slane %v2342, 1
      %v2345 = vsel %vm1979, %v1878, %v1958
      %v2347 = vrot.slane %v2345, 2
      %v2348 = vsel %vm1983, %v1878, %v1958
      %v2350 = vrot.slane %v2348, 3
      %v2353 = vsel %vm1970, %v1879, %v1959
      %v2357 = vsel %vm1975, %v1880, %v1960
      %v2359 = vrot.slane %v2357, 1
      %v2360 = vsel %vm1979, %v1880, %v1960
      %v2362 = vrot.slane %v2360, 2
      %v2363 = vsel %vm1983, %v1880, %v1960
      %v2365 = vrot.slane %v2363, 3
      %v2368 = vsel %vm1970, %v1881, %v1961
      %v2370 = vsel %vm1975, %v1881, %v1961
      %v2372 = vrot.slane %v2370, 1
      %v2373 = vsel %vm1979, %v1881, %v1961
      %v2375 = vrot.slane %v2373, 2
      %v2376 = vsel %vm1983, %v1881, %v1961
      %v2378 = vrot.slane %v2376, 3
      %v2381 = vsel %vm1970, %v1882, %v1962
      %v2383 = vsel %vm1975, %v1882, %v1962
      %v2385 = vrot.slane %v2383, 1
      %v2386 = vsel %vm1979, %v1882, %v1962
      %v2388 = vrot.slane %v2386, 2
      %v2389 = vsel %vm1983, %v1882, %v1962
      %v2391 = vrot.slane %v2389, 3
      %v2394 = vsel %vm1970, %v1883, %v1963
      %v2396 = vsel %vm1975, %v1883, %v1963
      %v2398 = vrot.slane %v2396, 1
      %v2399 = vsel %vm1979, %v1883, %v1963
      %v2401 = vrot.slane %v2399, 2
      %v2402 = vsel %vm1983, %v1883, %v1963
      %v2404 = vrot.slane %v2402, 3
      %v2407 = vsel %vm1970, %v1884, %v1964
      %v2409 = vsel %vm1975, %v1884, %v1964
      %v2411 = vrot.slane %v2409, 1
      %v2412 = vsel %vm1979, %v1884, %v1964
      %v2414 = vrot.slane %v2412, 2
      %v2415 = vsel %vm1983, %v1884, %v1964
      %v2417 = vrot.slane %v2415, 3
      %v2420 = vsel %vm1970, %v1885, %v1965
      %v2422 = vsel %vm1975, %v1885, %v1965
      %v2424 = vrot.slane %v2422, 1
      %v2425 = vsel %vm1979, %v1885, %v1965
      %v2427 = vrot.slane %v2425, 2
      %v2428 = vsel %vm1983, %v1885, %v1965
      %v2430 = vrot.slane %v2428, 3
      %v2433 = vsel %vm1970, %v1886, %v1966
      %v2435 = vsel %vm1975, %v1886, %v1966
      %v2437 = vrot.slane %v2435, 1
      %v2438 = vsel %vm1979, %v1886, %v1966
      %v2440 = vrot.slane %v2438, 2
      %v2441 = vsel %vm1983, %v1886, %v1966
      %v2443 = vrot.slane %v2441, 3
      %v2446 = vsel %vm1970, %v1887, %v1967
      %v2448 = vsel %vm1975, %v1887, %v1967
      %v2450 = vrot.slane %v2448, 1
      %v2451 = vsel %vm1979, %v1887, %v1967
      %v2453 = vrot.slane %v2451, 2
      %v2454 = vsel %vm1983, %v1887, %v1967
      %v2456 = vrot.slane %v2454, 3
      %v2459 = vsel %vm1970, %v1888, %v1968
      %v2461 = vsel %vm1975, %v1888, %v1968
      %v2463 = vrot.slane %v2461, 1
      %v2464 = vsel %vm1979, %v1888, %v1968
      %v2466 = vrot.slane %v2464, 2
      %v2467 = vsel %vm1983, %v1888, %v1968
      %v2469 = vrot.slane %v2467, 3
      %v2472 = vsel %vm1970, %v1889, %v1969
      %v2474 = vunpack.i.l.s16 %v1973
      %v2475 = vunpack.i.h.s16 %v1973
      %v2476 = vunpack.i.l.s16 %v1978
      %v2477 = vunpack.i.h.s16 %v1978
      %v2478 = vunpack.i.l.s16 %v1982
      %v2479 = vunpack.i.h.s16 %v1982
      %v2480 = vunpack.i.l.s16 %v1986
      %v2481 = vunpack.i.h.s16 %v1986
      %v2482 = vunpack.i.l.s16 %v1989
      %v2483 = vunpack.i.h.s16 %v1989
      %v2484 = vunpack.i.l.s16 %v1993
      %v2485 = vunpack.i.h.s16 %v1993
      %v2486 = vunpack.i.l.s16 %v1996
      %v2487 = vunpack.i.h.s16 %v1996
      %v2488 = vunpack.i.l.s16 %v1999
      %v2489 = vunpack.i.h.s16 %v1999
      %v2490 = vunpack.i.l.s16 %v2002
      %v2491 = vunpack.i.h.s16 %v2002
      %v2492 = vunpack.i.l.s16 %v2006
      %v2493 = vunpack.i.h.s16 %v2006
      %v2494 = vunpack.i.l.s16 %v2009
      %v2495 = vunpack.i.h.s16 %v2009
      %v2496 = vunpack.i.l.s16 %v2012
      %v2497 = vunpack.i.h.s16 %v2012
      %v2498 = vunpack.i.l.s16 %v2015
      %v2499 = vunpack.i.h.s16 %v2015
      %v2500 = vunpack.i.l.s16 %v2019
      %v2501 = vunpack.i.h.s16 %v2019
      %v2502 = vunpack.i.l.s16 %v2022
      %v2503 = vunpack.i.h.s16 %v2022
      %v2504 = vunpack.i.l.s16 %v2025
      %v2505 = vunpack.i.h.s16 %v2025
      %v2506 = vunpack.i.l.s16 %v2028
      %v2507 = vunpack.i.h.s16 %v2028
      %v2508 = vunpack.i.l.s16 %v2032
      %v2509 = vunpack.i.h.s16 %v2032
      %v2510 = vunpack.i.l.s16 %v2035
      %v2511 = vunpack.i.h.s16 %v2035
      %v2512 = vunpack.i.l.s16 %v2038
      %v2513 = vunpack.i.h.s16 %v2038
      %v2514 = vunpack.i.l.s16 %v2041
      %v2515 = vunpack.i.h.s16 %v2041
      %v2516 = vunpack.i.l.s16 %v2045
      %v2517 = vunpack.i.h.s16 %v2045
      %v2518 = vunpack.i.l.s16 %v2048
      %v2519 = vunpack.i.h.s16 %v2048
      %v2520 = vunpack.i.l.s16 %v2051
      %v2521 = vunpack.i.h.s16 %v2051
      %v2522 = vunpack.i.l.s16 %v2054
      %v2523 = vunpack.i.h.s16 %v2054
      %v2524 = vunpack.i.l.s16 %v2058
      %v2525 = vunpack.i.h.s16 %v2058
      %v2526 = vunpack.i.l.s16 %v2061
      %v2527 = vunpack.i.h.s16 %v2061
      %v2528 = vunpack.i.l.s16 %v2064
      %v2529 = vunpack.i.h.s16 %v2064
      %v2530 = vunpack.i.l.s16 %v2067
      %v2531 = vunpack.i.h.s16 %v2067
      %v2532 = vunpack.i.l.s16 %v2071
      %v2533 = vunpack.i.h.s16 %v2071
      %v2534 = vunpack.i.l.s16 %v2074
      %v2535 = vunpack.i.h.s16 %v2074
      %v2536 = vunpack.i.l.s16 %v2077
      %v2537 = vunpack.i.h.s16 %v2077
      %v2538 = vunpack.i.l.s16 %v2080
      %v2539 = vunpack.i.h.s16 %v2080
      %v2540 = vunpack.i.l.s16 %v2084
      %v2541 = vunpack.i.h.s16 %v2084
      %v2542 = vunpack.i.l.s16 %v2087
      %v2543 = vunpack.i.h.s16 %v2087
      %v2544 = vunpack.i.l.s16 %v2090
      %v2545 = vunpack.i.h.s16 %v2090
      %v2546 = vunpack.i.l.s16 %v2093
      %v2547 = vunpack.i.h.s16 %v2093
      %v2548 = vunpack.i.l.s16 %v2097
      %v2549 = vunpack.i.h.s16 %v2097
      %v2550 = vunpack.i.l.s16 %v2100
      %v2551 = vunpack.i.h.s16 %v2100
      %v2552 = vunpack.i.l.s16 %v2103
      %v2553 = vunpack.i.h.s16 %v2103
      %v2554 = vunpack.i.l.s16 %v2106
      %v2555 = vunpack.i.h.s16 %v2106
      %v2556 = vunpack.i.l.s16 %v2110
      %v2557 = vunpack.i.h.s16 %v2110
      %v2558 = vunpack.i.l.s16 %v2113
      %v2559 = vunpack.i.h.s16 %v2113
      %v2560 = vunpack.i.l.s16 %v2116
      %v2561 = vunpack.i.h.s16 %v2116
      %v2562 = vunpack.i.l.s16 %v2119
      %v2563 = vunpack.i.l.s16 %v2123
      %v2564 = vunpack.i.h.s16 %v2123
      %v2565 = vunpack.i.l.s16 %v2126
      %v2566 = vunpack.i.h.s16 %v2126
      %v2567 = vunpack.i.l.s16 %v2129
      %v2568 = vunpack.i.h.s16 %v2129
      %v2569 = vunpack.i.l.s16 %v2132
      %v2570 = vunpack.i.h.s16 %v2132
      %v2571 = vunpack.i.h.s16 %v2136
      %v2572 = vunpack.i.l.s16 %v2139
      %v2573 = vunpack.i.h.s16 %v2139
      %v2574 = vunpack.i.l.s16 %v2142
      %v2575 = vunpack.i.h.s16 %v2142
      %v2576 = vunpack.i.l.s16 %v2145
      %v2577 = vunpack.i.h.s16 %v2145
      %v2578 = vunpack.i.l.s16 %v2149
      %v2579 = vunpack.i.l.s16 %v2152
      %v2580 = vunpack.i.h.s16 %v2152
      %v2581 = vunpack.i.l.s16 %v2155
      %v2582 = vunpack.i.h.s16 %v2155
      %v2583 = vunpack.i.l.s16 %v2158
      %v2584 = vunpack.i.h.s16 %v2158
      %v2585 = vunpack.i.l.s16 %v2162
      %v2586 = vunpack.i.h.s16 %v2162
      %v2587 = vunpack.i.h.s16 %v2165
      %v2588 = vunpack.i.l.s16 %v2168
      %v2589 = vunpack.i.h.s16 %v2168
      %v2590 = vunpack.i.l.s16 %v2171
      %v2591 = vunpack.i.h.s16 %v2171
      %v2592 = vunpack.i.l.s16 %v2175
      %v2593 = vunpack.i.h.s16 %v2175
      %v2594 = vunpack.i.l.s16 %v2178
      %v2595 = vunpack.i.l.s16 %v2181
      %v2596 = vunpack.i.h.s16 %v2181
      %v2597 = vunpack.i.l.s16 %v2184
      %v2598 = vunpack.i.h.s16 %v2184
      %v2599 = vunpack.i.l.s16 %v2188
      %v2600 = vunpack.i.h.s16 %v2188
      %v2601 = vunpack.i.l.s16 %v2191
      %v2602 = vunpack.i.h.s16 %v2191
      %v2603 = vunpack.i.h.s16 %v2194
      %v2604 = vunpack.i.l.s16 %v2197
      %v2605 = vunpack.i.h.s16 %v2197
      %v2606 = vunpack.i.l.s16 %v2201
      %v2607 = vunpack.i.h.s16 %v2201
      %v2608 = vunpack.i.l.s16 %v2204
      %v2609 = vunpack.i.h.s16 %v2204
      %v2610 = vunpack.i.l.s16 %v2207
      %v2611 = vunpack.i.l.s16 %v2210
      %v2612 = vunpack.i.h.s16 %v2210
      %v2613 = vunpack.i.l.s16 %v2214
      %v2614 = vunpack.i.h.s16 %v2214
      %v2615 = vunpack.i.l.s16 %v2217
      %v2616 = vunpack.i.h.s16 %v2217
      %v2617 = vunpack.i.l.s16 %v2220
      %v2618 = vunpack.i.h.s16 %v2220
      %v2619 = vunpack.i.h.s16 %v2223
      %v2620 = vunpack.i.l.s16 %v2227
      %v2621 = vunpack.i.h.s16 %v2227
      %v2622 = vunpack.i.l.s16 %v2230
      %v2623 = vunpack.i.h.s16 %v2230
      %v2624 = vunpack.i.l.s16 %v2233
      %v2625 = vunpack.i.h.s16 %v2233
      %v2626 = vunpack.i.l.s16 %v2236
      %v2627 = vunpack.i.l.s16 %v2240
      %v2628 = vunpack.i.h.s16 %v2240
      %v2629 = vunpack.i.l.s16 %v2243
      %v2630 = vunpack.i.h.s16 %v2243
      %v2631 = vunpack.i.l.s16 %v2246
      %v2632 = vunpack.i.h.s16 %v2246
      %v2633 = vunpack.i.l.s16 %v2249
      %v2634 = vunpack.i.h.s16 %v2249
      %v2635 = vunpack.i.l.s16 %v2253
      %v2636 = vunpack.i.h.s16 %v2253
      %v2637 = vunpack.i.l.s16 %v2256
      %v2638 = vunpack.i.h.s16 %v2256
      %v2639 = vunpack.i.l.s16 %v2259
      %v2640 = vunpack.i.h.s16 %v2259
      %v2641 = vunpack.i.l.s16 %v2262
      %v2642 = vunpack.i.h.s16 %v2262
      %v2643 = vunpack.i.l.s16 %v2266
      %v2644 = vunpack.i.h.s16 %v2266
      %v2645 = vunpack.i.l.s16 %v2269
      %v2646 = vunpack.i.h.s16 %v2269
      %v2647 = vunpack.i.l.s16 %v2272
      %v2648 = vunpack.i.h.s16 %v2272
      %v2649 = vunpack.i.l.s16 %v2275
      %v2650 = vunpack.i.h.s16 %v2275
      %v2651 = vunpack.i.l.s16 %v2279
      %v2652 = vunpack.i.h.s16 %v2279
      %v2653 = vunpack.i.l.s16 %v2282
      %v2654 = vunpack.i.h.s16 %v2282
      %v2655 = vunpack.i.l.s16 %v2285
      %v2656 = vunpack.i.h.s16 %v2285
      %v2657 = vunpack.i.l.s16 %v2288
      %v2658 = vunpack.i.h.s16 %v2288
      %v2659 = vunpack.i.l.s16 %v2292
      %v2660 = vunpack.i.h.s16 %v2292
      %v2661 = vunpack.i.l.s16 %v2295
      %v2662 = vunpack.i.h.s16 %v2295
      %v2663 = vunpack.i.l.s16 %v2298
      %v2664 = vunpack.i.h.s16 %v2298
      %v2665 = vunpack.i.l.s16 %v2301
      %v2666 = vunpack.i.h.s16 %v2301
      %v2667 = vunpack.i.l.s16 %v2305
      %v2668 = vunpack.i.h.s16 %v2305
      %v2669 = vunpack.i.l.s16 %v2308
      %v2670 = vunpack.i.h.s16 %v2308
      %v2671 = vunpack.i.l.s16 %v2311
      %v2672 = vunpack.i.h.s16 %v2311
      %v2673 = vunpack.i.l.s16 %v2314
      %v2674 = vunpack.i.h.s16 %v2314
      %v2675 = vunpack.i.l.s16 %v2318
      %v2676 = vunpack.i.h.s16 %v2318
      %v2677 = vunpack.i.l.s16 %v2321
      %v2678 = vunpack.i.h.s16 %v2321
      %v2679 = vunpack.i.l.s16 %v2324
      %v2680 = vunpack.i.h.s16 %v2324
      %v2681 = vunpack.i.l.s16 %v2327
      %v2682 = vunpack.i.h.s16 %v2327
      %v2683 = vunpack.i.l.s16 %v2331
      %v2684 = vunpack.i.h.s16 %v2331
      %v2685 = vunpack.i.l.s16 %v2334
      %v2686 = vunpack.i.h.s16 %v2334
      %v2687 = vunpack.i.l.s16 %v2337
      %v2688 = vunpack.i.h.s16 %v2337
      %v2689 = vunpack.i.l.s16 %v2340
      %v2690 = vunpack.i.h.s16 %v2340
      %v2691 = vunpack.i.l.s16 %v2344
      %v2692 = vunpack.i.h.s16 %v2344
      %v2693 = vunpack.i.l.s16 %v2347
      %v2694 = vunpack.i.h.s16 %v2347
      %v2695 = vunpack.i.l.s16 %v2350
      %v2696 = vunpack.i.h.s16 %v2350
      %v2697 = vunpack.i.l.s16 %v2353
      %v2698 = vunpack.i.h.s16 %v2353
      %v2699 = vunpack.i.h.s16 %v2359
      %v2700 = vunpack.i.l.s16 %v2362
      %v2701 = vunpack.i.h.s16 %v2362
      %v2702 = vunpack.i.l.s16 %v2365
      %v2703 = vunpack.i.h.s16 %v2365
      %v2704 = vunpack.i.l.s16 %v2368
      %v2705 = vunpack.i.h.s16 %v2368
      %v2706 = vunpack.i.l.s16 %v2372
      %v2707 = vunpack.i.l.s16 %v2375
      %v2708 = vunpack.i.h.s16 %v2375
      %v2709 = vunpack.i.l.s16 %v2378
      %v2710 = vunpack.i.h.s16 %v2378
      %v2711 = vunpack.i.l.s16 %v2381
      %v2712 = vunpack.i.h.s16 %v2381
      %v2713 = vunpack.i.l.s16 %v2385
      %v2714 = vunpack.i.h.s16 %v2385
      %v2715 = vunpack.i.h.s16 %v2388
      %v2716 = vunpack.i.l.s16 %v2391
      %v2717 = vunpack.i.h.s16 %v2391
      %v2718 = vunpack.i.l.s16 %v2394
      %v2719 = vunpack.i.h.s16 %v2394
      %v2720 = vunpack.i.l.s16 %v2398
      %v2721 = vunpack.i.h.s16 %v2398
      %v2722 = vunpack.i.l.s16 %v2401
      %v2723 = vunpack.i.l.s16 %v2404
      %v2724 = vunpack.i.h.s16 %v2404
      %v2725 = vunpack.i.l.s16 %v2407
      %v2726 = vunpack.i.h.s16 %v2407
      %v2727 = vunpack.i.l.s16 %v2411
      %v2728 = vunpack.i.h.s16 %v2411
      %v2729 = vunpack.i.l.s16 %v2414
      %v2730 = vunpack.i.h.s16 %v2414
      %v2731 = vunpack.i.h.s16 %v2417
      %v2732 = vunpack.i.l.s16 %v2420
      %v2733 = vunpack.i.h.s16 %v2420
      %v2734 = vunpack.i.l.s16 %v2424
      %v2735 = vunpack.i.h.s16 %v2424
      %v2736 = vunpack.i.l.s16 %v2427
      %v2737 = vunpack.i.h.s16 %v2427
      %v2738 = vunpack.i.l.s16 %v2430
      %v2739 = vunpack.i.l.s16 %v2433
      %v2740 = vunpack.i.h.s16 %v2433
      %v2741 = vunpack.i.l.s16 %v2437
      %v2742 = vunpack.i.h.s16 %v2437
      %v2743 = vunpack.i.l.s16 %v2440
      %v2744 = vunpack.i.h.s16 %v2440
      %v2745 = vunpack.i.l.s16 %v2443
      %v2746 = vunpack.i.h.s16 %v2443
      %v2747 = vunpack.i.h.s16 %v2446
      %v2748 = vunpack.i.l.s16 %v2450
      %v2749 = vunpack.i.h.s16 %v2450
      %v2750 = vunpack.i.l.s16 %v2453
      %v2751 = vunpack.i.h.s16 %v2453
      %v2752 = vunpack.i.l.s16 %v2456
      %v2753 = vunpack.i.h.s16 %v2456
      %v2754 = vunpack.i.l.s16 %v2459
      %v2755 = vunpack.i.l.s16 %v2463
      %v2756 = vunpack.i.h.s16 %v2463
      %v2757 = vunpack.i.l.s16 %v2466
      %v2758 = vunpack.i.h.s16 %v2466
      %v2759 = vunpack.i.l.s16 %v2469
      %v2760 = vunpack.i.h.s16 %v2469
      %v2761 = vunpack.i.l.s16 %v2472
      %v2762 = vunpack.i.h.s16 %v2472
      %v2763 = vld [vmem:[%s5] sm:$0xf]
      %v2764 = vld [vmem:[%s5 + $0x4] sm:$0xf]
      %v2765 = vld [vmem:[%s5 + $0x8] sm:$0xf]
      %v2766 = vld [vmem:[%s5 + $0xc] sm:$0xf]
      %v2767 = vld [vmem:[%s5 + $0x10] sm:$0xf]
      %v2768 = vld [vmem:[%s5 + $0x14] sm:$0xf]
      %v2769 = vld [vmem:[%s5 + $0x18] sm:$0xf]
      %v2770 = vld [vmem:[%s5 + $0x1c] sm:$0xf]
      %v2771 = vld [vmem:[%s5 + $0x20] sm:$0xf]
      %v2772 = vld [vmem:[%s5 + $0x24] sm:$0xf]
      %v2773 = vld [vmem:[%s5 + $0x28] sm:$0xf]
      %v2774 = vld [vmem:[%s5 + $0x2c] sm:$0xf]
      %v2775 = vld [vmem:[%s5 + $0x30] sm:$0xf]
      %v2776 = vld [vmem:[%s5 + $0x34] sm:$0xf]
      %v2777 = vld [vmem:[%s5 + $0x38] sm:$0xf]
      %v2778 = vld [vmem:[%s5 + $0x3c] sm:$0xf]
      %s2779 = scalar_lea.vmem %s5, 64
      %v2780 = vld [vmem:[%s2779] sm:$0xf]
      %v2781 = vld [vmem:[%s2779 + $0x4] sm:$0xf]
      %v2782 = vld [vmem:[%s2779 + $0x8] sm:$0xf]
      %v2783 = vld [vmem:[%s2779 + $0xc] sm:$0xf]
      %v2784 = vld [vmem:[%s2779 + $0x10] sm:$0xf]
      %v2785 = vld [vmem:[%s2779 + $0x14] sm:$0xf]
      %v2786 = vld [vmem:[%s2779 + $0x18] sm:$0xf]
      %v2787 = vld [vmem:[%s2779 + $0x1c] sm:$0xf]
      %v2788 = vld [vmem:[%s2779 + $0x20] sm:$0xf]
      %v2789 = vld [vmem:[%s2779 + $0x24] sm:$0xf]
      %v2790 = vld [vmem:[%s2779 + $0x28] sm:$0xf]
      %v2791 = vld [vmem:[%s2779 + $0x2c] sm:$0xf]
      %v2792 = vld [vmem:[%s2779 + $0x30] sm:$0xf]
      %v2793 = vld [vmem:[%s2779 + $0x34] sm:$0xf]
      %v2794 = vld [vmem:[%s2779 + $0x38] sm:$0xf]
      %v2795 = vld [vmem:[%s2779 + $0x3c] sm:$0xf]
      %v2796 = vpack.i.b16 %v2556, %v2555
      %v2797 = vpack.i.b16 %v2558, %v2557
      %v2798 = vpack.i.b16 %v2560, %v2559
      %v2799 = vpack.i.b16 %v2562, %v2561
      %v2800 = vpack.i.b16 %v2564, %v2563
      %v2801 = vpack.i.b16 %v2566, %v2565
      %v2802 = vpack.i.b16 %v2568, %v2567
      %v2803 = vpack.i.b16 %v2570, %v2569
      %v2804 = vpack.i.b16 %v2572, %v2571
      %v2805 = vpack.i.b16 %v2574, %v2573
      %v2806 = vpack.i.b16 %v2576, %v2575
      %v2807 = vpack.i.b16 %v2578, %v2577
      %v2808 = vpack.i.b16 %v2580, %v2579
      %v2809 = vpack.i.b16 %v2582, %v2581
      %v2810 = vpack.i.b16 %v2584, %v2583
      %v2811 = vpack.i.b16 %v2586, %v2585
      %v2812 = vpack.i.b16 %v2588, %v2587
      %v2813 = vpack.i.b16 %v2590, %v2589
      %v2814 = vpack.i.b16 %v2592, %v2591
      %v2815 = vpack.i.b16 %v2594, %v2593
      %v2816 = vpack.i.b16 %v2596, %v2595
      %v2817 = vpack.i.b16 %v2598, %v2597
      %v2818 = vpack.i.b16 %v2600, %v2599
      %v2819 = vpack.i.b16 %v2602, %v2601
      %v2820 = vpack.i.b16 %v2604, %v2603
      %v2821 = vpack.i.b16 %v2606, %v2605
      %v2822 = vpack.i.b16 %v2608, %v2607
      %v2823 = vpack.i.b16 %v2610, %v2609
      %v2824 = vpack.i.b16 %v2612, %v2611
      %v2825 = vpack.i.b16 %v2614, %v2613
      %v2826 = vpack.i.b16 %v2616, %v2615
      %v2827 = vpack.i.b16 %v2618, %v2617
      %2829 = vst [vmem:[#allocation1] ss:$9 sm:$0xff] %v2796
      %s2831 = scalar_lea.vmem [#allocation1], 1
      %2832 = vst [vmem:[%s2831] ss:$9 sm:$0xff] %v2797
      %s2834 = scalar_lea.vmem [#allocation1], 2
      %2835 = vst [vmem:[%s2834] ss:$9 sm:$0xff] %v2798
      %s2837 = scalar_lea.vmem [#allocation1], 3
      %2838 = vst [vmem:[%s2837] ss:$9 sm:$0xff] %v2799
      %s2840 = scalar_lea.vmem [#allocation1], 4
      %2841 = vst [vmem:[%s2840] ss:$9 sm:$0xff] %v2800
      %s2843 = scalar_lea.vmem [#allocation1], 5
      %2844 = vst [vmem:[%s2843] ss:$9 sm:$0xff] %v2801
      %s2846 = scalar_lea.vmem [#allocation1], 6
      %2847 = vst [vmem:[%s2846] ss:$9 sm:$0xff] %v2802
      %s2849 = scalar_lea.vmem [#allocation1], 7
      %2850 = vst [vmem:[%s2849] ss:$9 sm:$0xff] %v2803
      %v2851 = vld [vmem:[#allocation1] sm:$0xff]
      %2853 = vst [vmem:[#allocation1] ss:$9 sm:$0xff] %v2804
      %2855 = vst [vmem:[%s2831] ss:$9 sm:$0xff] %v2805
      %2857 = vst [vmem:[%s2834] ss:$9 sm:$0xff] %v2806
      %2859 = vst [vmem:[%s2837] ss:$9 sm:$0xff] %v2807
      %2861 = vst [vmem:[%s2840] ss:$9 sm:$0xff] %v2808
      %2863 = vst [vmem:[%s2843] ss:$9 sm:$0xff] %v2809
      %2865 = vst [vmem:[%s2846] ss:$9 sm:$0xff] %v2810
      %2867 = vst [vmem:[%s2849] ss:$9 sm:$0xff] %v2811
      %v2868 = vld [vmem:[#allocation1] sm:$0xff]
      %2870 = vst [vmem:[#allocation1] ss:$9 sm:$0xff] %v2812
      %2872 = vst [vmem:[%s2831] ss:$9 sm:$0xff] %v2813
      %2874 = vst [vmem:[%s2834] ss:$9 sm:$0xff] %v2814
      %2876 = vst [vmem:[%s2837] ss:$9 sm:$0xff] %v2815
      %2878 = vst [vmem:[%s2840] ss:$9 sm:$0xff] %v2816
      %2880 = vst [vmem:[%s2843] ss:$9 sm:$0xff] %v2817
      %2882 = vst [vmem:[%s2846] ss:$9 sm:$0xff] %v2818
      %2884 = vst [vmem:[%s2849] ss:$9 sm:$0xff] %v2819
      %v2885 = vld [vmem:[#allocation1] sm:$0xff]
      %2887 = vst [vmem:[#allocation1] ss:$9 sm:$0xff] %v2820
      %2889 = vst [vmem:[%s2831] ss:$9 sm:$0xff] %v2821
      %2891 = vst [vmem:[%s2834] ss:$9 sm:$0xff] %v2822
      %2893 = vst [vmem:[%s2837] ss:$9 sm:$0xff] %v2823
      %2895 = vst [vmem:[%s2840] ss:$9 sm:$0xff] %v2824
      %2897 = vst [vmem:[%s2843] ss:$9 sm:$0xff] %v2825
      %2899 = vst [vmem:[%s2846] ss:$9 sm:$0xff] %v2826
      %2901 = vst [vmem:[%s2849] ss:$9 sm:$0xff] %v2827
      %v2902 = vld [vmem:[#allocation1] sm:$0xff]
      %v2923 = vunpack.c.l.b16 %v2780
      %v2924 = vunpack.c.l.b16 %v2781
      %v2925 = vunpack.c.l.b16 %v2782
      %v2926 = vunpack.c.l.b16 %v2783
      %v2927 = vunpack.c.l.b16 %v2784
      %v2928 = vunpack.c.l.b16 %v2785
      %v2929 = vunpack.c.l.b16 %v2786
      %v2930 = vunpack.c.l.b16 %v2787
      %v2931 = vunpack.c.l.b16 %v2788
      %v2932 = vunpack.c.l.b16 %v2789
      %v2933 = vunpack.c.l.b16 %v2790
      %v2934 = vunpack.c.l.b16 %v2791
      %v2935 = vunpack.c.l.b16 %v2792
      %v2936 = vunpack.c.l.b16 %v2793
      %v2937 = vunpack.c.l.b16 %v2794
      %v2938 = vunpack.c.l.b16 %v2795
      %v2939 = vpack.c.b16 %v2924, %v2923
      %v2940 = vpack.c.b16 %v2926, %v2925
      %v2941 = vpack.c.b16 %v2928, %v2927
      %v2942 = vpack.c.b16 %v2930, %v2929
      %v2943 = vpack.c.b16 %v2932, %v2931
      %v2944 = vpack.c.b16 %v2934, %v2933
      %v2945 = vpack.c.b16 %v2936, %v2935
      %v2946 = vpack.c.b16 %v2938, %v2937
      %2955 = vmatpush.bf16.msra.mxu0 %v2946
      %2956 = vmatpush.bf16.msra.mxu0 %v2945
      %2957 = vmatpush.bf16.msra.mxu0 %v2944
      %2958 = vmatpush.bf16.msra.mxu0 %v2943
      %2959 = vmatpush.bf16.msra.mxu0 %v2942
      %2960 = vmatpush.bf16.msra.mxu0 %v2941
      %2961 = vmatpush.bf16.msra.mxu0 %v2940
      %2962 = vmatpush.bf16.msra.mxu0 %v2939
      %2963 = vmatmul.bf16.gmra.mxu0 %v2851
      %v2964 = vpop.f32.mrf.mxu0
      %v2965 = vadd.f32 0.0, %v2964
      %v2966 = vpop.f32.mrf.mxu0
      %v2967 = vadd.f32 0.0, %v2966
      %2968 = vmatmul.bf16.gmra.mxu0 %v2868
      %v2969 = vpop.f32.mrf.mxu0
      %v2970 = vadd.f32 0.0, %v2969
      %v2971 = vpop.f32.mrf.mxu0
      %v2972 = vadd.f32 0.0, %v2971
      %2973 = vmatmul.bf16.gmra.mxu0 %v2885
      %v2974 = vpop.f32.mrf.mxu0
      %v2975 = vadd.f32 0.0, %v2974
      %v2976 = vpop.f32.mrf.mxu0
      %v2977 = vadd.f32 0.0, %v2976
      %2978 = vmatmul.bf16.gmra.mxu0 %v2902
      %v2979 = vpop.f32.mrf.mxu0
      %v2980 = vadd.f32 0.0, %v2979
      %v2981 = vpop.f32.mrf.mxu0
      %v2982 = vadd.f32 0.0, %v2981
      %2983 = vdwg.mxu0
      %v2984 = vpack.i.b16 %v2475, %v2474
      %v2985 = vpack.i.b16 %v2477, %v2476
      %v2986 = vpack.i.b16 %v2479, %v2478
      %v2987 = vpack.i.b16 %v2481, %v2480
      %v2988 = vpack.i.b16 %v2484, %v2483
      %v2989 = vpack.i.b16 %v2486, %v2485
      %v2990 = vpack.i.b16 %v2488, %v2487
      %v2991 = vpack.i.b16 %v2490, %v2489
      %v2992 = vpack.i.b16 %v2493, %v2492
      %v2993 = vpack.i.b16 %v2495, %v2494
      %v2994 = vpack.i.b16 %v2497, %v2496
      %v2995 = vpack.i.b16 %v2499, %v2498
      %v2996 = vpack.i.b16 %v2502, %v2501
      %v2997 = vpack.i.b16 %v2504, %v2503
      %v2998 = vpack.i.b16 %v2506, %v2505
      %v2999 = vpack.i.b16 %v2508, %v2507
      %v3000 = vpack.i.b16 %v2511, %v2510
      %v3001 = vpack.i.b16 %v2513, %v2512
      %v3002 = vpack.i.b16 %v2515, %v2514
      %v3003 = vpack.i.b16 %v2517, %v2516
      %v3004 = vpack.i.b16 %v2520, %v2519
      %v3005 = vpack.i.b16 %v2522, %v2521
      %v3006 = vpack.i.b16 %v2524, %v2523
      %v3007 = vpack.i.b16 %v2526, %v2525
      %v3008 = vpack.i.b16 %v2529, %v2528
      %v3009 = vpack.i.b16 %v2531, %v2530
      %v3010 = vpack.i.b16 %v2533, %v2532
      %v3011 = vpack.i.b16 %v2535, %v2534
      %v3012 = vpack.i.b16 %v2538, %v2537
      %v3013 = vpack.i.b16 %v2540, %v2539
      %v3014 = vpack.i.b16 %v2542, %v2541
      %v3015 = vpack.i.b16 %v2544, %v2543
      %3017 = vst [vmem:[#allocation1] ss:$9 sm:$0xff] %v2984
      %s3019 = scalar_lea.vmem [#allocation1], 1
      %3020 = vst [vmem:[%s3019] ss:$9 sm:$0xff] %v2985
      %s3022 = scalar_lea.vmem [#allocation1], 2
      %3023 = vst [vmem:[%s3022] ss:$9 sm:$0xff] %v2986
      %s3025 = scalar_lea.vmem [#allocation1], 3
      %3026 = vst [vmem:[%s3025] ss:$9 sm:$0xff] %v2987
      %s3028 = scalar_lea.vmem [#allocation1], 4
      %3029 = vst [vmem:[%s3028] ss:$9 sm:$0xff] %v2988
      %s3031 = scalar_lea.vmem [#allocation1], 5
      %3032 = vst [vmem:[%s3031] ss:$9 sm:$0xff] %v2989
      %s3034 = scalar_lea.vmem [#allocation1], 6
      %3035 = vst [vmem:[%s3034] ss:$9 sm:$0xff] %v2990
      %s3037 = scalar_lea.vmem [#allocation1], 7
      %3038 = vst [vmem:[%s3037] ss:$9 sm:$0xff] %v2991
      %v3039 = vld [vmem:[#allocation1] sm:$0xff]
      %3041 = vst [vmem:[#allocation1] ss:$9 sm:$0xff] %v2992
      %3043 = vst [vmem:[%s3019] ss:$9 sm:$0xff] %v2993
      %3045 = vst [vmem:[%s3022] ss:$9 sm:$0xff] %v2994
      %3047 = vst [vmem:[%s3025] ss:$9 sm:$0xff] %v2995
      %3049 = vst [vmem:[%s3028] ss:$9 sm:$0xff] %v2996
      %3051 = vst [vmem:[%s3031] ss:$9 sm:$0xff] %v2997
      %3053 = vst [vmem:[%s3034] ss:$9 sm:$0xff] %v2998
      %3055 = vst [vmem:[%s3037] ss:$9 sm:$0xff] %v2999
      %v3056 = vld [vmem:[#allocation1] sm:$0xff]
      %3058 = vst [vmem:[#allocation1] ss:$9 sm:$0xff] %v3000
      %3060 = vst [vmem:[%s3019] ss:$9 sm:$0xff] %v3001
      %3062 = vst [vmem:[%s3022] ss:$9 sm:$0xff] %v3002
      %3064 = vst [vmem:[%s3025] ss:$9 sm:$0xff] %v3003
      %3066 = vst [vmem:[%s3028] ss:$9 sm:$0xff] %v3004
      %3068 = vst [vmem:[%s3031] ss:$9 sm:$0xff] %v3005
      %3070 = vst [vmem:[%s3034] ss:$9 sm:$0xff] %v3006
      %3072 = vst [vmem:[%s3037] ss:$9 sm:$0xff] %v3007
      %v3073 = vld [vmem:[#allocation1] sm:$0xff]
      %3075 = vst [vmem:[#allocation1] ss:$9 sm:$0xff] %v3008
      %3077 = vst [vmem:[%s3019] ss:$9 sm:$0xff] %v3009
      %3079 = vst [vmem:[%s3022] ss:$9 sm:$0xff] %v3010
      %3081 = vst [vmem:[%s3025] ss:$9 sm:$0xff] %v3011
      %3083 = vst [vmem:[%s3028] ss:$9 sm:$0xff] %v3012
      %3085 = vst [vmem:[%s3031] ss:$9 sm:$0xff] %v3013
      %3087 = vst [vmem:[%s3034] ss:$9 sm:$0xff] %v3014
      %3089 = vst [vmem:[%s3037] ss:$9 sm:$0xff] %v3015
      %v3090 = vld [vmem:[#allocation1] sm:$0xff]
      %v3111 = vunpack.c.l.b16 %v2763
      %v3112 = vunpack.c.l.b16 %v2764
      %v3113 = vunpack.c.l.b16 %v2765
      %v3114 = vunpack.c.l.b16 %v2766
      %v3115 = vunpack.c.l.b16 %v2767
      %v3116 = vunpack.c.l.b16 %v2768
      %v3117 = vunpack.c.l.b16 %v2769
      %v3118 = vunpack.c.l.b16 %v2770
      %v3119 = vunpack.c.l.b16 %v2771
      %v3120 = vunpack.c.l.b16 %v2772
      %v3121 = vunpack.c.l.b16 %v2773
      %v3122 = vunpack.c.l.b16 %v2774
      %v3123 = vunpack.c.l.b16 %v2775
      %v3124 = vunpack.c.l.b16 %v2776
      %v3125 = vunpack.c.l.b16 %v2777
      %v3126 = vunpack.c.l.b16 %v2778
      %v3127 = vpack.c.b16 %v3112, %v3111
      %v3128 = vpack.c.b16 %v3114, %v3113
      %v3129 = vpack.c.b16 %v3116, %v3115
      %v3130 = vpack.c.b16 %v3118, %v3117
      %v3131 = vpack.c.b16 %v3120, %v3119
      %v3132 = vpack.c.b16 %v3122, %v3121
      %v3133 = vpack.c.b16 %v3124, %v3123
      %v3134 = vpack.c.b16 %v3126, %v3125
      %3143 = vmatpush.bf16.msra.mxu0 %v3134
      %3144 = vmatpush.bf16.msra.mxu0 %v3133
      %3145 = vmatpush.bf16.msra.mxu0 %v3132
      %3146 = vmatpush.bf16.msra.mxu0 %v3131
      %3147 = vmatpush.bf16.msra.mxu0 %v3130
      %3148 = vmatpush.bf16.msra.mxu0 %v3129
      %3149 = vmatpush.bf16.msra.mxu0 %v3128
      %3150 = vmatpush.bf16.msra.mxu0 %v3127
      %3151 = vmatmul.bf16.gmra.mxu0 %v3039
      %v3152 = vpop.f32.mrf.mxu0
      %v3153 = vadd.f32 %v2965, %v3152
      %v3154 = vpop.f32.mrf.mxu0
      %v3155 = vadd.f32 %v2967, %v3154
      %3156 = vmatmul.bf16.gmra.mxu0 %v3056
      %v3157 = vpop.f32.mrf.mxu0
      %v3158 = vadd.f32 %v2970, %v3157
      %v3159 = vpop.f32.mrf.mxu0
      %v3160 = vadd.f32 %v2972, %v3159
      %3161 = vmatmul.bf16.gmra.mxu0 %v3073
      %v3162 = vpop.f32.mrf.mxu0
      %v3163 = vadd.f32 %v2975, %v3162
      %v3164 = vpop.f32.mrf.mxu0
      %v3165 = vadd.f32 %v2977, %v3164
      %3166 = vmatmul.bf16.gmra.mxu0 %v3090
      %v3167 = vpop.f32.mrf.mxu0
      %v3168 = vadd.f32 %v2980, %v3167
      %v3169 = vpop.f32.mrf.mxu0
      %v3170 = vadd.f32 %v2982, %v3169
      %3171 = vdwg.mxu0
      %s3172 = scalar_lea.vmem %s5, 128
      %v3173 = vld [vmem:[%s3172] sm:$0xf]
      %v3174 = vld [vmem:[%s3172 + $0x4] sm:$0xf]
      %v3175 = vld [vmem:[%s3172 + $0x8] sm:$0xf]
      %v3176 = vld [vmem:[%s3172 + $0xc] sm:$0xf]
      %v3177 = vld [vmem:[%s3172 + $0x10] sm:$0xf]
      %v3178 = vld [vmem:[%s3172 + $0x14] sm:$0xf]
      %v3179 = vld [vmem:[%s3172 + $0x18] sm:$0xf]
      %v3180 = vld [vmem:[%s3172 + $0x1c] sm:$0xf]
      %v3181 = vld [vmem:[%s3172 + $0x20] sm:$0xf]
      %v3182 = vld [vmem:[%s3172 + $0x24] sm:$0xf]
      %v3183 = vld [vmem:[%s3172 + $0x28] sm:$0xf]
      %v3184 = vld [vmem:[%s3172 + $0x2c] sm:$0xf]
      %v3185 = vld [vmem:[%s3172 + $0x30] sm:$0xf]
      %v3186 = vld [vmem:[%s3172 + $0x34] sm:$0xf]
      %v3187 = vld [vmem:[%s3172 + $0x38] sm:$0xf]
      %v3188 = vld [vmem:[%s3172 + $0x3c] sm:$0xf]
      %v3189 = vpack.i.b16 %v2476, %v2475
      %v3190 = vpack.i.b16 %v2478, %v2477
      %v3191 = vpack.i.b16 %v2480, %v2479
      %v3192 = vpack.i.b16 %v2482, %v2481
      %v3193 = vpack.i.b16 %v2485, %v2484
      %v3194 = vpack.i.b16 %v2487, %v2486
      %v3195 = vpack.i.b16 %v2489, %v2488
      %v3196 = vpack.i.b16 %v2491, %v2490
      %v3197 = vpack.i.b16 %v2494, %v2493
      %v3198 = vpack.i.b16 %v2496, %v2495
      %v3199 = vpack.i.b16 %v2498, %v2497
      %v3200 = vpack.i.b16 %v2500, %v2499
      %v3201 = vpack.i.b16 %v2503, %v2502
      %v3202 = vpack.i.b16 %v2505, %v2504
      %v3203 = vpack.i.b16 %v2507, %v2506
      %v3204 = vpack.i.b16 %v2509, %v2508
      %v3205 = vpack.i.b16 %v2512, %v2511
      %v3206 = vpack.i.b16 %v2514, %v2513
      %v3207 = vpack.i.b16 %v2516, %v2515
      %v3208 = vpack.i.b16 %v2518, %v2517
      %v3209 = vpack.i.b16 %v2521, %v2520
      %v3210 = vpack.i.b16 %v2523, %v2522
      %v3211 = vpack.i.b16 %v2525, %v2524
      %v3212 = vpack.i.b16 %v2527, %v2526
      %v3213 = vpack.i.b16 %v2530, %v2529
      %v3214 = vpack.i.b16 %v2532, %v2531
      %v3215 = vpack.i.b16 %v2534, %v2533
      %v3216 = vpack.i.b16 %v2536, %v2535
      %v3217 = vpack.i.b16 %v2539, %v2538
      %v3218 = vpack.i.b16 %v2541, %v2540
      %v3219 = vpack.i.b16 %v2543, %v2542
      %v3220 = vpack.i.b16 %v2545, %v2544
      %3222 = vst [vmem:[#allocation1] ss:$9 sm:$0xff] %v3189
      %s3224 = scalar_lea.vmem [#allocation1], 1
      %3225 = vst [vmem:[%s3224] ss:$9 sm:$0xff] %v3190
      %s3227 = scalar_lea.vmem [#allocation1], 2
      %3228 = vst [vmem:[%s3227] ss:$9 sm:$0xff] %v3191
      %s3230 = scalar_lea.vmem [#allocation1], 3
      %3231 = vst [vmem:[%s3230] ss:$9 sm:$0xff] %v3192
      %s3233 = scalar_lea.vmem [#allocation1], 4
      %3234 = vst [vmem:[%s3233] ss:$9 sm:$0xff] %v3193
      %s3236 = scalar_lea.vmem [#allocation1], 5
      %3237 = vst [vmem:[%s3236] ss:$9 sm:$0xff] %v3194
      %s3239 = scalar_lea.vmem [#allocation1], 6
      %3240 = vst [vmem:[%s3239] ss:$9 sm:$0xff] %v3195
      %s3242 = scalar_lea.vmem [#allocation1], 7
      %3243 = vst [vmem:[%s3242] ss:$9 sm:$0xff] %v3196
      %v3244 = vld [vmem:[#allocation1] sm:$0xff]
      %3246 = vst [vmem:[#allocation1] ss:$9 sm:$0xff] %v3197
      %3248 = vst [vmem:[%s3224] ss:$9 sm:$0xff] %v3198
      %3250 = vst [vmem:[%s3227] ss:$9 sm:$0xff] %v3199
      %3252 = vst [vmem:[%s3230] ss:$9 sm:$0xff] %v3200
      %3254 = vst [vmem:[%s3233] ss:$9 sm:$0xff] %v3201
      %3256 = vst [vmem:[%s3236] ss:$9 sm:$0xff] %v3202
      %3258 = vst [vmem:[%s3239] ss:$9 sm:$0xff] %v3203
      %3260 = vst [vmem:[%s3242] ss:$9 sm:$0xff] %v3204
      %v3261 = vld [vmem:[#allocation1] sm:$0xff]
      %3263 = vst [vmem:[#allocation1] ss:$9 sm:$0xff] %v3205
      %3265 = vst [vmem:[%s3224] ss:$9 sm:$0xff] %v3206
      %3267 = vst [vmem:[%s3227] ss:$9 sm:$0xff] %v3207
      %3269 = vst [vmem:[%s3230] ss:$9 sm:$0xff] %v3208
      %3271 = vst [vmem:[%s3233] ss:$9 sm:$0xff] %v3209
      %3273 = vst [vmem:[%s3236] ss:$9 sm:$0xff] %v3210
      %3275 = vst [vmem:[%s3239] ss:$9 sm:$0xff] %v3211
      %3277 = vst [vmem:[%s3242] ss:$9 sm:$0xff] %v3212
      %v3278 = vld [vmem:[#allocation1] sm:$0xff]
      %3280 = vst [vmem:[#allocation1] ss:$9 sm:$0xff] %v3213
      %3282 = vst [vmem:[%s3224] ss:$9 sm:$0xff] %v3214
      %3284 = vst [vmem:[%s3227] ss:$9 sm:$0xff] %v3215
      %3286 = vst [vmem:[%s3230] ss:$9 sm:$0xff] %v3216
      %3288 = vst [vmem:[%s3233] ss:$9 sm:$0xff] %v3217
      %3290 = vst [vmem:[%s3236] ss:$9 sm:$0xff] %v3218
      %3292 = vst [vmem:[%s3239] ss:$9 sm:$0xff] %v3219
      %3294 = vst [vmem:[%s3242] ss:$9 sm:$0xff] %v3220
      %v3295 = vld [vmem:[#allocation1] sm:$0xff]
      %v3316 = vunpack.c.l.b16 %v3173
      %v3317 = vunpack.c.l.b16 %v3174
      %v3318 = vunpack.c.l.b16 %v3175
      %v3319 = vunpack.c.l.b16 %v3176
      %v3320 = vunpack.c.l.b16 %v3177
      %v3321 = vunpack.c.l.b16 %v3178
      %v3322 = vunpack.c.l.b16 %v3179
      %v3323 = vunpack.c.l.b16 %v3180
      %v3324 = vunpack.c.l.b16 %v3181
      %v3325 = vunpack.c.l.b16 %v3182
      %v3326 = vunpack.c.l.b16 %v3183
      %v3327 = vunpack.c.l.b16 %v3184
      %v3328 = vunpack.c.l.b16 %v3185
      %v3329 = vunpack.c.l.b16 %v3186
      %v3330 = vunpack.c.l.b16 %v3187
      %v3331 = vunpack.c.l.b16 %v3188
      %v3332 = vpack.c.b16 %v3317, %v3316
      %v3333 = vpack.c.b16 %v3319, %v3318
      %v3334 = vpack.c.b16 %v3321, %v3320
      %v3335 = vpack.c.b16 %v3323, %v3322
      %v3336 = vpack.c.b16 %v3325, %v3324
      %v3337 = vpack.c.b16 %v3327, %v3326
      %v3338 = vpack.c.b16 %v3329, %v3328
      %v3339 = vpack.c.b16 %v3331, %v3330
      %3348 = vmatpush.bf16.msra.mxu0 %v3339
      %3349 = vmatpush.bf16.msra.mxu0 %v3338
      %3350 = vmatpush.bf16.msra.mxu0 %v3337
      %3351 = vmatpush.bf16.msra.mxu0 %v3336
      %3352 = vmatpush.bf16.msra.mxu0 %v3335
      %3353 = vmatpush.bf16.msra.mxu0 %v3334
      %3354 = vmatpush.bf16.msra.mxu0 %v3333
      %3355 = vmatpush.bf16.msra.mxu0 %v3332
      %3356 = vmatmul.bf16.gmra.mxu0 %v3244
      %v3357 = vpop.f32.mrf.mxu0
      %v3358 = vadd.f32 0.0, %v3357
      %v3359 = vpop.f32.mrf.mxu0
      %v3360 = vadd.f32 0.0, %v3359
      %3361 = vmatmul.bf16.gmra.mxu0 %v3261
      %v3362 = vpop.f32.mrf.mxu0
      %v3363 = vadd.f32 0.0, %v3362
      %v3364 = vpop.f32.mrf.mxu0
      %v3365 = vadd.f32 0.0, %v3364
      %3366 = vmatmul.bf16.gmra.mxu0 %v3278
      %v3367 = vpop.f32.mrf.mxu0
      %v3368 = vadd.f32 0.0, %v3367
      %v3369 = vpop.f32.mrf.mxu0
      %v3370 = vadd.f32 0.0, %v3369
      %3371 = vmatmul.bf16.gmra.mxu0 %v3295
      %v3372 = vpop.f32.mrf.mxu0
      %v3373 = vadd.f32 0.0, %v3372
      %v3374 = vpop.f32.mrf.mxu0
      %v3375 = vadd.f32 0.0, %v3374
      %3376 = vdwg.mxu0
      %v3377 = vadd.f32 %v3153, %v3358
      %v3378 = vadd.f32 %v3155, %v3360
      %v3379 = vadd.f32 %v3158, %v3363
      %v3380 = vadd.f32 %v3160, %v3365
      %v3381 = vadd.f32 %v3163, %v3368
      %v3382 = vadd.f32 %v3165, %v3370
      %v3383 = vadd.f32 %v3168, %v3373
      %v3384 = vadd.f32 %v3170, %v3375
      %s3385 = scalar_lea.vmem %s5, 192
      %v3386 = vld [vmem:[%s3385] sm:$0xf]
      %v3387 = vld [vmem:[%s3385 + $0x4] sm:$0xf]
      %v3388 = vld [vmem:[%s3385 + $0x8] sm:$0xf]
      %v3389 = vld [vmem:[%s3385 + $0xc] sm:$0xf]
      %v3390 = vld [vmem:[%s3385 + $0x10] sm:$0xf]
      %v3391 = vld [vmem:[%s3385 + $0x14] sm:$0xf]
      %v3392 = vld [vmem:[%s3385 + $0x18] sm:$0xf]
      %v3393 = vld [vmem:[%s3385 + $0x1c] sm:$0xf]
      %v3394 = vld [vmem:[%s3385 + $0x20] sm:$0xf]
      %v3395 = vld [vmem:[%s3385 + $0x24] sm:$0xf]
      %v3396 = vld [vmem:[%s3385 + $0x28] sm:$0xf]
      %v3397 = vld [vmem:[%s3385 + $0x2c] sm:$0xf]
      %v3398 = vld [vmem:[%s3385 + $0x30] sm:$0xf]
      %v3399 = vld [vmem:[%s3385 + $0x34] sm:$0xf]
      %v3400 = vld [vmem:[%s3385 + $0x38] sm:$0xf]
      %v3401 = vld [vmem:[%s3385 + $0x3c] sm:$0xf]
      %v3402 = vpack.i.b16 %v2628, %v2627
      %v3403 = vpack.i.b16 %v2630, %v2629
      %v3404 = vpack.i.b16 %v2632, %v2631
      %v3405 = vpack.i.b16 %v2634, %v2633
      %v3406 = vpack.i.b16 %v2637, %v2636
      %v3407 = vpack.i.b16 %v2639, %v2638
      %v3408 = vpack.i.b16 %v2641, %v2640
      %v3409 = vpack.i.b16 %v2643, %v2642
      %v3410 = vpack.i.b16 %v2646, %v2645
      %v3411 = vpack.i.b16 %v2648, %v2647
      %v3412 = vpack.i.b16 %v2650, %v2649
      %v3413 = vpack.i.b16 %v2652, %v2651
      %v3414 = vpack.i.b16 %v2655, %v2654
      %v3415 = vpack.i.b16 %v2657, %v2656
      %v3416 = vpack.i.b16 %v2659, %v2658
      %v3417 = vpack.i.b16 %v2661, %v2660
      %v3418 = vpack.i.b16 %v2664, %v2663
      %v3419 = vpack.i.b16 %v2666, %v2665
      %v3420 = vpack.i.b16 %v2668, %v2667
      %v3421 = vpack.i.b16 %v2670, %v2669
      %v3422 = vpack.i.b16 %v2673, %v2672
      %v3423 = vpack.i.b16 %v2675, %v2674
      %v3424 = vpack.i.b16 %v2677, %v2676
      %v3425 = vpack.i.b16 %v2679, %v2678
      %v3426 = vpack.i.b16 %v2682, %v2681
      %v3427 = vpack.i.b16 %v2684, %v2683
      %v3428 = vpack.i.b16 %v2686, %v2685
      %v3429 = vpack.i.b16 %v2688, %v2687
      %v3430 = vpack.i.b16 %v2691, %v2690
      %v3431 = vpack.i.b16 %v2693, %v2692
      %v3432 = vpack.i.b16 %v2695, %v2694
      %v3433 = vpack.i.b16 %v2697, %v2696
      %3435 = vst [vmem:[#allocation1] ss:$9 sm:$0xff] %v3402
      %s3437 = scalar_lea.vmem [#allocation1], 1
      %3438 = vst [vmem:[%s3437] ss:$9 sm:$0xff] %v3403
      %s3440 = scalar_lea.vmem [#allocation1], 2
      %3441 = vst [vmem:[%s3440] ss:$9 sm:$0xff] %v3404
      %s3443 = scalar_lea.vmem [#allocation1], 3
      %3444 = vst [vmem:[%s3443] ss:$9 sm:$0xff] %v3405
      %s3446 = scalar_lea.vmem [#allocation1], 4
      %3447 = vst [vmem:[%s3446] ss:$9 sm:$0xff] %v3406
      %s3449 = scalar_lea.vmem [#allocation1], 5
      %3450 = vst [vmem:[%s3449] ss:$9 sm:$0xff] %v3407
      %s3452 = scalar_lea.vmem [#allocation1], 6
      %3453 = vst [vmem:[%s3452] ss:$9 sm:$0xff] %v3408
      %s3455 = scalar_lea.vmem [#allocation1], 7
      %3456 = vst [vmem:[%s3455] ss:$9 sm:$0xff] %v3409
      %v3457 = vld [vmem:[#allocation1] sm:$0xff]
      %3459 = vst [vmem:[#allocation1] ss:$9 sm:$0xff] %v3410
      %3461 = vst [vmem:[%s3437] ss:$9 sm:$0xff] %v3411
      %3463 = vst [vmem:[%s3440] ss:$9 sm:$0xff] %v3412
      %3465 = vst [vmem:[%s3443] ss:$9 sm:$0xff] %v3413
      %3467 = vst [vmem:[%s3446] ss:$9 sm:$0xff] %v3414
      %3469 = vst [vmem:[%s3449] ss:$9 sm:$0xff] %v3415
      %3471 = vst [vmem:[%s3452] ss:$9 sm:$0xff] %v3416
      %3473 = vst [vmem:[%s3455] ss:$9 sm:$0xff] %v3417
      %v3474 = vld [vmem:[#allocation1] sm:$0xff]
      %3476 = vst [vmem:[#allocation1] ss:$9 sm:$0xff] %v3418
      %3478 = vst [vmem:[%s3437] ss:$9 sm:$0xff] %v3419
      %3480 = vst [vmem:[%s3440] ss:$9 sm:$0xff] %v3420
      %3482 = vst [vmem:[%s3443] ss:$9 sm:$0xff] %v3421
      %3484 = vst [vmem:[%s3446] ss:$9 sm:$0xff] %v3422
      %3486 = vst [vmem:[%s3449] ss:$9 sm:$0xff] %v3423
      %3488 = vst [vmem:[%s3452] ss:$9 sm:$0xff] %v3424
      %3490 = vst [vmem:[%s3455] ss:$9 sm:$0xff] %v3425
      %v3491 = vld [vmem:[#allocation1] sm:$0xff]
      %3493 = vst [vmem:[#allocation1] ss:$9 sm:$0xff] %v3426
      %3495 = vst [vmem:[%s3437] ss:$9 sm:$0xff] %v3427
      %3497 = vst [vmem:[%s3440] ss:$9 sm:$0xff] %v3428
      %3499 = vst [vmem:[%s3443] ss:$9 sm:$0xff] %v3429
      %3501 = vst [vmem:[%s3446] ss:$9 sm:$0xff] %v3430
      %3503 = vst [vmem:[%s3449] ss:$9 sm:$0xff] %v3431
      %3505 = vst [vmem:[%s3452] ss:$9 sm:$0xff] %v3432
      %3507 = vst [vmem:[%s3455] ss:$9 sm:$0xff] %v3433
      %v3508 = vld [vmem:[#allocation1] sm:$0xff]
      %v3529 = vunpack.c.l.b16 %v3386
      %v3530 = vunpack.c.l.b16 %v3387
      %v3531 = vunpack.c.l.b16 %v3388
      %v3532 = vunpack.c.l.b16 %v3389
      %v3533 = vunpack.c.l.b16 %v3390
      %v3534 = vunpack.c.l.b16 %v3391
      %v3535 = vunpack.c.l.b16 %v3392
      %v3536 = vunpack.c.l.b16 %v3393
      %v3537 = vunpack.c.l.b16 %v3394
      %v3538 = vunpack.c.l.b16 %v3395
      %v3539 = vunpack.c.l.b16 %v3396
      %v3540 = vunpack.c.l.b16 %v3397
      %v3541 = vunpack.c.l.b16 %v3398
      %v3542 = vunpack.c.l.b16 %v3399
      %v3543 = vunpack.c.l.b16 %v3400
      %v3544 = vunpack.c.l.b16 %v3401
      %v3545 = vpack.c.b16 %v3530, %v3529
      %v3546 = vpack.c.b16 %v3532, %v3531
      %v3547 = vpack.c.b16 %v3534, %v3533
      %v3548 = vpack.c.b16 %v3536, %v3535
      %v3549 = vpack.c.b16 %v3538, %v3537
      %v3550 = vpack.c.b16 %v3540, %v3539
      %v3551 = vpack.c.b16 %v3542, %v3541
      %v3552 = vpack.c.b16 %v3544, %v3543
      %3561 = vmatpush.bf16.msra.mxu0 %v3552
      %3562 = vmatpush.bf16.msra.mxu0 %v3551
      %3563 = vmatpush.bf16.msra.mxu0 %v3550
      %3564 = vmatpush.bf16.msra.mxu0 %v3549
      %3565 = vmatpush.bf16.msra.mxu0 %v3548
      %3566 = vmatpush.bf16.msra.mxu0 %v3547
      %3567 = vmatpush.bf16.msra.mxu0 %v3546
      %3568 = vmatpush.bf16.msra.mxu0 %v3545
      %3569 = vmatmul.bf16.gmra.mxu0 %v3457
      %v3570 = vpop.f32.mrf.mxu0
      %v3571 = vadd.f32 0.0, %v3570
      %v3572 = vpop.f32.mrf.mxu0
      %v3573 = vadd.f32 0.0, %v3572
      %3574 = vmatmul.bf16.gmra.mxu0 %v3474
      %v3575 = vpop.f32.mrf.mxu0
      %v3576 = vadd.f32 0.0, %v3575
      %v3577 = vpop.f32.mrf.mxu0
      %v3578 = vadd.f32 0.0, %v3577
      %3579 = vmatmul.bf16.gmra.mxu0 %v3491
      %v3580 = vpop.f32.mrf.mxu0
      %v3581 = vadd.f32 0.0, %v3580
      %v3582 = vpop.f32.mrf.mxu0
      %v3583 = vadd.f32 0.0, %v3582
      %3584 = vmatmul.bf16.gmra.mxu0 %v3508
      %v3585 = vpop.f32.mrf.mxu0
      %v3586 = vadd.f32 0.0, %v3585
      %v3587 = vpop.f32.mrf.mxu0
      %v3588 = vadd.f32 0.0, %v3587
      %3589 = vdwg.mxu0
      %v3590 = vadd.f32 %v3377, %v3571
      %v3591 = vadd.f32 %v3378, %v3573
      %v3592 = vadd.f32 %v3379, %v3576
      %v3593 = vadd.f32 %v3380, %v3578
      %v3594 = vadd.f32 %v3381, %v3581
      %v3595 = vadd.f32 %v3382, %v3583
      %v3596 = vadd.f32 %v3383, %v3586
      %v3597 = vadd.f32 %v3384, %v3588
      %s3598 = scalar_lea.vmem %s5, 256
      %v3599 = vld [vmem:[%s3598] sm:$0xf]
      %v3600 = vld [vmem:[%s3598 + $0x4] sm:$0xf]
      %v3601 = vld [vmem:[%s3598 + $0x8] sm:$0xf]
      %v3602 = vld [vmem:[%s3598 + $0xc] sm:$0xf]
      %v3603 = vld [vmem:[%s3598 + $0x10] sm:$0xf]
      %v3604 = vld [vmem:[%s3598 + $0x14] sm:$0xf]
      %v3605 = vld [vmem:[%s3598 + $0x18] sm:$0xf]
      %v3606 = vld [vmem:[%s3598 + $0x1c] sm:$0xf]
      %v3607 = vld [vmem:[%s3598 + $0x20] sm:$0xf]
      %v3608 = vld [vmem:[%s3598 + $0x24] sm:$0xf]
      %v3609 = vld [vmem:[%s3598 + $0x28] sm:$0xf]
      %v3610 = vld [vmem:[%s3598 + $0x2c] sm:$0xf]
      %v3611 = vld [vmem:[%s3598 + $0x30] sm:$0xf]
      %v3612 = vld [vmem:[%s3598 + $0x34] sm:$0xf]
      %v3613 = vld [vmem:[%s3598 + $0x38] sm:$0xf]
      %v3614 = vld [vmem:[%s3598 + $0x3c] sm:$0xf]
      %v3615 = vpack.i.b16 %v2700, %v2699
      %v3616 = vpack.i.b16 %v2702, %v2701
      %v3617 = vpack.i.b16 %v2704, %v2703
      %v3618 = vpack.i.b16 %v2706, %v2705
      %v3619 = vpack.i.b16 %v2708, %v2707
      %v3620 = vpack.i.b16 %v2710, %v2709
      %v3621 = vpack.i.b16 %v2712, %v2711
      %v3622 = vpack.i.b16 %v2714, %v2713
      %v3623 = vpack.i.b16 %v2716, %v2715
      %v3624 = vpack.i.b16 %v2718, %v2717
      %v3625 = vpack.i.b16 %v2720, %v2719
      %v3626 = vpack.i.b16 %v2722, %v2721
      %v3627 = vpack.i.b16 %v2724, %v2723
      %v3628 = vpack.i.b16 %v2726, %v2725
      %v3629 = vpack.i.b16 %v2728, %v2727
      %v3630 = vpack.i.b16 %v2730, %v2729
      %v3631 = vpack.i.b16 %v2732, %v2731
      %v3632 = vpack.i.b16 %v2734, %v2733
      %v3633 = vpack.i.b16 %v2736, %v2735
      %v3634 = vpack.i.b16 %v2738, %v2737
      %v3635 = vpack.i.b16 %v2740, %v2739
      %v3636 = vpack.i.b16 %v2742, %v2741
      %v3637 = vpack.i.b16 %v2744, %v2743
      %v3638 = vpack.i.b16 %v2746, %v2745
      %v3639 = vpack.i.b16 %v2748, %v2747
      %v3640 = vpack.i.b16 %v2750, %v2749
      %v3641 = vpack.i.b16 %v2752, %v2751
      %v3642 = vpack.i.b16 %v2754, %v2753
      %v3643 = vpack.i.b16 %v2756, %v2755
      %v3644 = vpack.i.b16 %v2758, %v2757
      %v3645 = vpack.i.b16 %v2760, %v2759
      %v3646 = vpack.i.b16 %v2762, %v2761
      %3648 = vst [vmem:[#allocation1] ss:$9 sm:$0xff] %v3615
      %s3650 = scalar_lea.vmem [#allocation1], 1
      %3651 = vst [vmem:[%s3650] ss:$9 sm:$0xff] %v3616
      %s3653 = scalar_lea.vmem [#allocation1], 2
      %3654 = vst [vmem:[%s3653] ss:$9 sm:$0xff] %v3617
      %s3656 = scalar_lea.vmem [#allocation1], 3
      %3657 = vst [vmem:[%s3656] ss:$9 sm:$0xff] %v3618
      %s3659 = scalar_lea.vmem [#allocation1], 4
      %3660 = vst [vmem:[%s3659] ss:$9 sm:$0xff] %v3619
      %s3662 = scalar_lea.vmem [#allocation1], 5
      %3663 = vst [vmem:[%s3662] ss:$9 sm:$0xff] %v3620
      %s3665 = scalar_lea.vmem [#allocation1], 6
      %3666 = vst [vmem:[%s3665] ss:$9 sm:$0xff] %v3621
      %s3668 = scalar_lea.vmem [#allocation1], 7
      %3669 = vst [vmem:[%s3668] ss:$9 sm:$0xff] %v3622
      %v3670 = vld [vmem:[#allocation1] sm:$0xff]
      %3672 = vst [vmem:[#allocation1] ss:$9 sm:$0xff] %v3623
      %3674 = vst [vmem:[%s3650] ss:$9 sm:$0xff] %v3624
      %3676 = vst [vmem:[%s3653] ss:$9 sm:$0xff] %v3625
      %3678 = vst [vmem:[%s3656] ss:$9 sm:$0xff] %v3626
      %3680 = vst [vmem:[%s3659] ss:$9 sm:$0xff] %v3627
      %3682 = vst [vmem:[%s3662] ss:$9 sm:$0xff] %v3628
      %3684 = vst [vmem:[%s3665] ss:$9 sm:$0xff] %v3629
      %3686 = vst [vmem:[%s3668] ss:$9 sm:$0xff] %v3630
      %v3687 = vld [vmem:[#allocation1] sm:$0xff]
      %3689 = vst [vmem:[#allocation1] ss:$9 sm:$0xff] %v3631
      %3691 = vst [vmem:[%s3650] ss:$9 sm:$0xff] %v3632
      %3693 = vst [vmem:[%s3653] ss:$9 sm:$0xff] %v3633
      %3695 = vst [vmem:[%s3656] ss:$9 sm:$0xff] %v3634
      %3697 = vst [vmem:[%s3659] ss:$9 sm:$0xff] %v3635
      %3699 = vst [vmem:[%s3662] ss:$9 sm:$0xff] %v3636
      %3701 = vst [vmem:[%s3665] ss:$9 sm:$0xff] %v3637
      %3703 = vst [vmem:[%s3668] ss:$9 sm:$0xff] %v3638
      %v3704 = vld [vmem:[#allocation1] sm:$0xff]
      %3706 = vst [vmem:[#allocation1] ss:$9 sm:$0xff] %v3639
      %3708 = vst [vmem:[%s3650] ss:$9 sm:$0xff] %v3640
      %3710 = vst [vmem:[%s3653] ss:$9 sm:$0xff] %v3641
      %3712 = vst [vmem:[%s3656] ss:$9 sm:$0xff] %v3642
      %3714 = vst [vmem:[%s3659] ss:$9 sm:$0xff] %v3643
      %3716 = vst [vmem:[%s3662] ss:$9 sm:$0xff] %v3644
      %3718 = vst [vmem:[%s3665] ss:$9 sm:$0xff] %v3645
      %3720 = vst [vmem:[%s3668] ss:$9 sm:$0xff] %v3646
      %v3721 = vld [vmem:[#allocation1] sm:$0xff]
      %v3742 = vunpack.c.l.b16 %v3599
      %v3743 = vunpack.c.l.b16 %v3600
      %v3744 = vunpack.c.l.b16 %v3601
      %v3745 = vunpack.c.l.b16 %v3602
      %v3746 = vunpack.c.l.b16 %v3603
      %v3747 = vunpack.c.l.b16 %v3604
      %v3748 = vunpack.c.l.b16 %v3605
      %v3749 = vunpack.c.l.b16 %v3606
      %v3750 = vunpack.c.l.b16 %v3607
      %v3751 = vunpack.c.l.b16 %v3608
      %v3752 = vunpack.c.l.b16 %v3609
      %v3753 = vunpack.c.l.b16 %v3610
      %v3754 = vunpack.c.l.b16 %v3611
      %v3755 = vunpack.c.l.b16 %v3612
      %v3756 = vunpack.c.l.b16 %v3613
      %v3757 = vunpack.c.l.b16 %v3614
      %v3758 = vpack.c.b16 %v3743, %v3742
      %v3759 = vpack.c.b16 %v3745, %v3744
      %v3760 = vpack.c.b16 %v3747, %v3746
      %v3761 = vpack.c.b16 %v3749, %v3748
      %v3762 = vpack.c.b16 %v3751, %v3750
      %v3763 = vpack.c.b16 %v3753, %v3752
      %v3764 = vpack.c.b16 %v3755, %v3754
      %v3765 = vpack.c.b16 %v3757, %v3756
      %3774 = vmatpush.bf16.msra.mxu0 %v3765
      %3775 = vmatpush.bf16.msra.mxu0 %v3764
      %3776 = vmatpush.bf16.msra.mxu0 %v3763
      %3777 = vmatpush.bf16.msra.mxu0 %v3762
      %3778 = vmatpush.bf16.msra.mxu0 %v3761
      %3779 = vmatpush.bf16.msra.mxu0 %v3760
      %3780 = vmatpush.bf16.msra.mxu0 %v3759
      %3781 = vmatpush.bf16.msra.mxu0 %v3758
      %3782 = vmatmul.bf16.gmra.mxu0 %v3670
      %v3783 = vpop.f32.mrf.mxu0
      %v3784 = vadd.f32 0.0, %v3783
      %v3785 = vpop.f32.mrf.mxu0
      %v3786 = vadd.f32 0.0, %v3785
      %3787 = vmatmul.bf16.gmra.mxu0 %v3687
      %v3788 = vpop.f32.mrf.mxu0
      %v3789 = vadd.f32 0.0, %v3788
      %v3790 = vpop.f32.mrf.mxu0
      %v3791 = vadd.f32 0.0, %v3790
      %3792 = vmatmul.bf16.gmra.mxu0 %v3704
      %v3793 = vpop.f32.mrf.mxu0
      %v3794 = vadd.f32 0.0, %v3793
      %v3795 = vpop.f32.mrf.mxu0
      %v3796 = vadd.f32 0.0, %v3795
      %3797 = vmatmul.bf16.gmra.mxu0 %v3721
      %v3798 = vpop.f32.mrf.mxu0
      %v3799 = vadd.f32 0.0, %v3798
      %v3800 = vpop.f32.mrf.mxu0
      %v3801 = vadd.f32 0.0, %v3800
      %3802 = vdwg.mxu0
      %v3803 = vadd.f32 %v3590, %v3784
      %v3804 = vadd.f32 %v3591, %v3786
      %v3805 = vadd.f32 %v3592, %v3789
      %v3806 = vadd.f32 %v3593, %v3791
      %v3807 = vadd.f32 %v3594, %v3794
      %v3808 = vadd.f32 %v3595, %v3796
      %v3809 = vadd.f32 %v3596, %v3799
      %v3810 = vadd.f32 %v3597, %v3801
      %s3811 = scalar_lea.vmem %s5, 320
      %v3812 = vld [vmem:[%s3811] sm:$0xf]
      %v3813 = vld [vmem:[%s3811 + $0x4] sm:$0xf]
      %v3814 = vld [vmem:[%s3811 + $0x8] sm:$0xf]
      %v3815 = vld [vmem:[%s3811 + $0xc] sm:$0xf]
      %v3816 = vld [vmem:[%s3811 + $0x10] sm:$0xf]
      %v3817 = vld [vmem:[%s3811 + $0x14] sm:$0xf]
      %v3818 = vld [vmem:[%s3811 + $0x18] sm:$0xf]
      %v3819 = vld [vmem:[%s3811 + $0x1c] sm:$0xf]
      %v3820 = vld [vmem:[%s3811 + $0x20] sm:$0xf]
      %v3821 = vld [vmem:[%s3811 + $0x24] sm:$0xf]
      %v3822 = vld [vmem:[%s3811 + $0x28] sm:$0xf]
      %v3823 = vld [vmem:[%s3811 + $0x2c] sm:$0xf]
      %v3824 = vld [vmem:[%s3811 + $0x30] sm:$0xf]
      %v3825 = vld [vmem:[%s3811 + $0x34] sm:$0xf]
      %v3826 = vld [vmem:[%s3811 + $0x38] sm:$0xf]
      %v3827 = vld [vmem:[%s3811 + $0x3c] sm:$0xf]
      %v3828 = vpack.i.b16 %v2629, %v2628
      %v3829 = vpack.i.b16 %v2631, %v2630
      %v3830 = vpack.i.b16 %v2633, %v2632
      %v3831 = vpack.i.b16 %v2635, %v2634
      %v3832 = vpack.i.b16 %v2638, %v2637
      %v3833 = vpack.i.b16 %v2640, %v2639
      %v3834 = vpack.i.b16 %v2642, %v2641
      %v3835 = vpack.i.b16 %v2644, %v2643
      %v3836 = vpack.i.b16 %v2647, %v2646
      %v3837 = vpack.i.b16 %v2649, %v2648
      %v3838 = vpack.i.b16 %v2651, %v2650
      %v3839 = vpack.i.b16 %v2653, %v2652
      %v3840 = vpack.i.b16 %v2656, %v2655
      %v3841 = vpack.i.b16 %v2658, %v2657
      %v3842 = vpack.i.b16 %v2660, %v2659
      %v3843 = vpack.i.b16 %v2662, %v2661
      %v3844 = vpack.i.b16 %v2665, %v2664
      %v3845 = vpack.i.b16 %v2667, %v2666
      %v3846 = vpack.i.b16 %v2669, %v2668
      %v3847 = vpack.i.b16 %v2671, %v2670
      %v3848 = vpack.i.b16 %v2674, %v2673
      %v3849 = vpack.i.b16 %v2676, %v2675
      %v3850 = vpack.i.b16 %v2678, %v2677
      %v3851 = vpack.i.b16 %v2680, %v2679
      %v3852 = vpack.i.b16 %v2683, %v2682
      %v3853 = vpack.i.b16 %v2685, %v2684
      %v3854 = vpack.i.b16 %v2687, %v2686
      %v3855 = vpack.i.b16 %v2689, %v2688
      %v3856 = vpack.i.b16 %v2692, %v2691
      %v3857 = vpack.i.b16 %v2694, %v2693
      %v3858 = vpack.i.b16 %v2696, %v2695
      %v3859 = vpack.i.b16 %v2698, %v2697
      %3861 = vst [vmem:[#allocation1] ss:$9 sm:$0xff] %v3828
      %s3863 = scalar_lea.vmem [#allocation1], 1
      %3864 = vst [vmem:[%s3863] ss:$9 sm:$0xff] %v3829
      %s3866 = scalar_lea.vmem [#allocation1], 2
      %3867 = vst [vmem:[%s3866] ss:$9 sm:$0xff] %v3830
      %s3869 = scalar_lea.vmem [#allocation1], 3
      %3870 = vst [vmem:[%s3869] ss:$9 sm:$0xff] %v3831
      %s3872 = scalar_lea.vmem [#allocation1], 4
      %3873 = vst [vmem:[%s3872] ss:$9 sm:$0xff] %v3832
      %s3875 = scalar_lea.vmem [#allocation1], 5
      %3876 = vst [vmem:[%s3875] ss:$9 sm:$0xff] %v3833
      %s3878 = scalar_lea.vmem [#allocation1], 6
      %3879 = vst [vmem:[%s3878] ss:$9 sm:$0xff] %v3834
      %s3881 = scalar_lea.vmem [#allocation1], 7
      %3882 = vst [vmem:[%s3881] ss:$9 sm:$0xff] %v3835
      %v3883 = vld [vmem:[#allocation1] sm:$0xff]
      %3885 = vst [vmem:[#allocation1] ss:$9 sm:$0xff] %v3836
      %3887 = vst [vmem:[%s3863] ss:$9 sm:$0xff] %v3837
      %3889 = vst [vmem:[%s3866] ss:$9 sm:$0xff] %v3838
      %3891 = vst [vmem:[%s3869] ss:$9 sm:$0xff] %v3839
      %3893 = vst [vmem:[%s3872] ss:$9 sm:$0xff] %v3840
      %3895 = vst [vmem:[%s3875] ss:$9 sm:$0xff] %v3841
      %3897 = vst [vmem:[%s3878] ss:$9 sm:$0xff] %v3842
      %3899 = vst [vmem:[%s3881] ss:$9 sm:$0xff] %v3843
      %v3900 = vld [vmem:[#allocation1] sm:$0xff]
      %3902 = vst [vmem:[#allocation1] ss:$9 sm:$0xff] %v3844
      %3904 = vst [vmem:[%s3863] ss:$9 sm:$0xff] %v3845
      %3906 = vst [vmem:[%s3866] ss:$9 sm:$0xff] %v3846
      %3908 = vst [vmem:[%s3869] ss:$9 sm:$0xff] %v3847
      %3910 = vst [vmem:[%s3872] ss:$9 sm:$0xff] %v3848
      %3912 = vst [vmem:[%s3875] ss:$9 sm:$0xff] %v3849
      %3914 = vst [vmem:[%s3878] ss:$9 sm:$0xff] %v3850
      %3916 = vst [vmem:[%s3881] ss:$9 sm:$0xff] %v3851
      %v3917 = vld [vmem:[#allocation1] sm:$0xff]
      %3919 = vst [vmem:[#allocation1] ss:$9 sm:$0xff] %v3852
      %3921 = vst [vmem:[%s3863] ss:$9 sm:$0xff] %v3853
      %3923 = vst [vmem:[%s3866] ss:$9 sm:$0xff] %v3854
      %3925 = vst [vmem:[%s3869] ss:$9 sm:$0xff] %v3855
      %3927 = vst [vmem:[%s3872] ss:$9 sm:$0xff] %v3856
      %3929 = vst [vmem:[%s3875] ss:$9 sm:$0xff] %v3857
      %3931 = vst [vmem:[%s3878] ss:$9 sm:$0xff] %v3858
      %3933 = vst [vmem:[%s3881] ss:$9 sm:$0xff] %v3859
      %v3934 = vld [vmem:[#allocation1] sm:$0xff]
      %v3955 = vunpack.c.l.b16 %v3812
      %v3956 = vunpack.c.l.b16 %v3813
      %v3957 = vunpack.c.l.b16 %v3814
      %v3958 = vunpack.c.l.b16 %v3815
      %v3959 = vunpack.c.l.b16 %v3816
      %v3960 = vunpack.c.l.b16 %v3817
      %v3961 = vunpack.c.l.b16 %v3818
      %v3962 = vunpack.c.l.b16 %v3819
      %v3963 = vunpack.c.l.b16 %v3820
      %v3964 = vunpack.c.l.b16 %v3821
      %v3965 = vunpack.c.l.b16 %v3822
      %v3966 = vunpack.c.l.b16 %v3823
      %v3967 = vunpack.c.l.b16 %v3824
      %v3968 = vunpack.c.l.b16 %v3825
      %v3969 = vunpack.c.l.b16 %v3826
      %v3970 = vunpack.c.l.b16 %v3827
      %v3971 = vpack.c.b16 %v3956, %v3955
      %v3972 = vpack.c.b16 %v3958, %v3957
      %v3973 = vpack.c.b16 %v3960, %v3959
      %v3974 = vpack.c.b16 %v3962, %v3961
      %v3975 = vpack.c.b16 %v3964, %v3963
      %v3976 = vpack.c.b16 %v3966, %v3965
      %v3977 = vpack.c.b16 %v3968, %v3967
      %v3978 = vpack.c.b16 %v3970, %v3969
      %3987 = vmatpush.bf16.msra.mxu0 %v3978
      %3988 = vmatpush.bf16.msra.mxu0 %v3977
      %3989 = vmatpush.bf16.msra.mxu0 %v3976
      %3990 = vmatpush.bf16.msra.mxu0 %v3975
      %3991 = vmatpush.bf16.msra.mxu0 %v3974
      %3992 = vmatpush.bf16.msra.mxu0 %v3973
      %3993 = vmatpush.bf16.msra.mxu0 %v3972
      %3994 = vmatpush.bf16.msra.mxu0 %v3971
      %3995 = vmatmul.bf16.gmra.mxu0 %v3883
      %v3996 = vpop.f32.mrf.mxu0
      %v3997 = vadd.f32 0.0, %v3996
      %v3998 = vpop.f32.mrf.mxu0
      %v3999 = vadd.f32 0.0, %v3998
      %4000 = vmatmul.bf16.gmra.mxu0 %v3900
      %v4001 = vpop.f32.mrf.mxu0
      %v4002 = vadd.f32 0.0, %v4001
      %v4003 = vpop.f32.mrf.mxu0
      %v4004 = vadd.f32 0.0, %v4003
      %4005 = vmatmul.bf16.gmra.mxu0 %v3917
      %v4006 = vpop.f32.mrf.mxu0
      %v4007 = vadd.f32 0.0, %v4006
      %v4008 = vpop.f32.mrf.mxu0
      %v4009 = vadd.f32 0.0, %v4008
      %4010 = vmatmul.bf16.gmra.mxu0 %v3934
      %v4011 = vpop.f32.mrf.mxu0
      %v4012 = vadd.f32 0.0, %v4011
      %v4013 = vpop.f32.mrf.mxu0
      %v4014 = vadd.f32 0.0, %v4013
      %4015 = vdwg.mxu0
      %v4016 = vadd.f32 %v3803, %v3997
      %v4017 = vadd.f32 %v3804, %v3999
      %v4018 = vadd.f32 %v3805, %v4002
      %v4019 = vadd.f32 %v3806, %v4004
      %v4020 = vadd.f32 %v3807, %v4007
      %v4021 = vadd.f32 %v3808, %v4009
      %v4022 = vadd.f32 %v3809, %v4012
      %v4023 = vadd.f32 %v3810, %v4014
      %s4024 = scalar_lea.vmem %s5, 384
      %v4025 = vld [vmem:[%s4024] sm:$0xf]
      %v4026 = vld [vmem:[%s4024 + $0x4] sm:$0xf]
      %v4027 = vld [vmem:[%s4024 + $0x8] sm:$0xf]
      %v4028 = vld [vmem:[%s4024 + $0xc] sm:$0xf]
      %v4029 = vld [vmem:[%s4024 + $0x10] sm:$0xf]
      %v4030 = vld [vmem:[%s4024 + $0x14] sm:$0xf]
      %v4031 = vld [vmem:[%s4024 + $0x18] sm:$0xf]
      %v4032 = vld [vmem:[%s4024 + $0x1c] sm:$0xf]
      %v4033 = vld [vmem:[%s4024 + $0x20] sm:$0xf]
      %v4034 = vld [vmem:[%s4024 + $0x24] sm:$0xf]
      %v4035 = vld [vmem:[%s4024 + $0x28] sm:$0xf]
      %v4036 = vld [vmem:[%s4024 + $0x2c] sm:$0xf]
      %v4037 = vld [vmem:[%s4024 + $0x30] sm:$0xf]
      %v4038 = vld [vmem:[%s4024 + $0x34] sm:$0xf]
      %v4039 = vld [vmem:[%s4024 + $0x38] sm:$0xf]
      %v4040 = vld [vmem:[%s4024 + $0x3c] sm:$0xf]
      %v4041 = vpack.i.b16 %v2547, %v2546
      %v4042 = vpack.i.b16 %v2549, %v2548
      %v4043 = vpack.i.b16 %v2551, %v2550
      %v4044 = vpack.i.b16 %v2553, %v2552
      %4045 = vst [vmem:[#allocation1] ss:$9 sm:$0xff] %v2988
      %s4046 = scalar_lea.vmem [#allocation1], 1
      %4047 = vst [vmem:[%s4046] ss:$9 sm:$0xff] %v2989
      %s4048 = scalar_lea.vmem [#allocation1], 2
      %4049 = vst [vmem:[%s4048] ss:$9 sm:$0xff] %v2990
      %s4050 = scalar_lea.vmem [#allocation1], 3
      %4051 = vst [vmem:[%s4050] ss:$9 sm:$0xff] %v2991
      %s4052 = scalar_lea.vmem [#allocation1], 4
      %4053 = vst [vmem:[%s4052] ss:$9 sm:$0xff] %v2992
      %s4054 = scalar_lea.vmem [#allocation1], 5
      %4055 = vst [vmem:[%s4054] ss:$9 sm:$0xff] %v2993
      %s4056 = scalar_lea.vmem [#allocation1], 6
      %4057 = vst [vmem:[%s4056] ss:$9 sm:$0xff] %v2994
      %s4058 = scalar_lea.vmem [#allocation1], 7
      %4059 = vst [vmem:[%s4058] ss:$9 sm:$0xff] %v2995
      %v4060 = vld [vmem:[#allocation1] sm:$0xff]
      %4061 = vst [vmem:[#allocation1] ss:$9 sm:$0xff] %v2996
      %4062 = vst [vmem:[%s4046] ss:$9 sm:$0xff] %v2997
      %4063 = vst [vmem:[%s4048] ss:$9 sm:$0xff] %v2998
      %4064 = vst [vmem:[%s4050] ss:$9 sm:$0xff] %v2999
      %4065 = vst [vmem:[%s4052] ss:$9 sm:$0xff] %v3000
      %4066 = vst [vmem:[%s4054] ss:$9 sm:$0xff] %v3001
      %4067 = vst [vmem:[%s4056] ss:$9 sm:$0xff] %v3002
      %4068 = vst [vmem:[%s4058] ss:$9 sm:$0xff] %v3003
      %v4069 = vld [vmem:[#allocation1] sm:$0xff]
      %4070 = vst [vmem:[#allocation1] ss:$9 sm:$0xff] %v3004
      %4071 = vst [vmem:[%s4046] ss:$9 sm:$0xff] %v3005
      %4072 = vst [vmem:[%s4048] ss:$9 sm:$0xff] %v3006
      %4073 = vst [vmem:[%s4050] ss:$9 sm:$0xff] %v3007
      %4074 = vst [vmem:[%s4052] ss:$9 sm:$0xff] %v3008
      %4075 = vst [vmem:[%s4054] ss:$9 sm:$0xff] %v3009
      %4076 = vst [vmem:[%s4056] ss:$9 sm:$0xff] %v3010
      %4077 = vst [vmem:[%s4058] ss:$9 sm:$0xff] %v3011
      %v4078 = vld [vmem:[#allocation1] sm:$0xff]
      %4079 = vst [vmem:[#allocation1] ss:$9 sm:$0xff] %v3012
      %4080 = vst [vmem:[%s4046] ss:$9 sm:$0xff] %v3013
      %4081 = vst [vmem:[%s4048] ss:$9 sm:$0xff] %v3014
      %4082 = vst [vmem:[%s4050] ss:$9 sm:$0xff] %v3015
      %4084 = vst [vmem:[%s4052] ss:$9 sm:$0xff] %v4041
      %4086 = vst [vmem:[%s4054] ss:$9 sm:$0xff] %v4042
      %4088 = vst [vmem:[%s4056] ss:$9 sm:$0xff] %v4043
      %4090 = vst [vmem:[%s4058] ss:$9 sm:$0xff] %v4044
      %v4091 = vld [vmem:[#allocation1] sm:$0xff]
      %v4112 = vunpack.c.l.b16 %v4025
      %v4113 = vunpack.c.l.b16 %v4026
      %v4114 = vunpack.c.l.b16 %v4027
      %v4115 = vunpack.c.l.b16 %v4028
      %v4116 = vunpack.c.l.b16 %v4029
      %v4117 = vunpack.c.l.b16 %v4030
      %v4118 = vunpack.c.l.b16 %v4031
      %v4119 = vunpack.c.l.b16 %v4032
      %v4120 = vunpack.c.l.b16 %v4033
      %v4121 = vunpack.c.l.b16 %v4034
      %v4122 = vunpack.c.l.b16 %v4035
      %v4123 = vunpack.c.l.b16 %v4036
      %v4124 = vunpack.c.l.b16 %v4037
      %v4125 = vunpack.c.l.b16 %v4038
      %v4126 = vunpack.c.l.b16 %v4039
      %v4127 = vunpack.c.l.b16 %v4040
      %v4128 = vpack.c.b16 %v4113, %v4112
      %v4129 = vpack.c.b16 %v4115, %v4114
      %v4130 = vpack.c.b16 %v4117, %v4116
      %v4131 = vpack.c.b16 %v4119, %v4118
      %v4132 = vpack.c.b16 %v4121, %v4120
      %v4133 = vpack.c.b16 %v4123, %v4122
      %v4134 = vpack.c.b16 %v4125, %v4124
      %v4135 = vpack.c.b16 %v4127, %v4126
      %4144 = vmatpush.bf16.msra.mxu0 %v4135
      %4145 = vmatpush.bf16.msra.mxu0 %v4134
      %4146 = vmatpush.bf16.msra.mxu0 %v4133
      %4147 = vmatpush.bf16.msra.mxu0 %v4132
      %4148 = vmatpush.bf16.msra.mxu0 %v4131
      %4149 = vmatpush.bf16.msra.mxu0 %v4130
      %4150 = vmatpush.bf16.msra.mxu0 %v4129
      %4151 = vmatpush.bf16.msra.mxu0 %v4128
      %4152 = vmatmul.bf16.gmra.mxu0 %v4060
      %v4153 = vpop.f32.mrf.mxu0
      %v4154 = vadd.f32 0.0, %v4153
      %v4155 = vpop.f32.mrf.mxu0
      %v4156 = vadd.f32 0.0, %v4155
      %4157 = vmatmul.bf16.gmra.mxu0 %v4069
      %v4158 = vpop.f32.mrf.mxu0
      %v4159 = vadd.f32 0.0, %v4158
      %v4160 = vpop.f32.mrf.mxu0
      %v4161 = vadd.f32 0.0, %v4160
      %4162 = vmatmul.bf16.gmra.mxu0 %v4078
      %v4163 = vpop.f32.mrf.mxu0
      %v4164 = vadd.f32 0.0, %v4163
      %v4165 = vpop.f32.mrf.mxu0
      %v4166 = vadd.f32 0.0, %v4165
      %4167 = vmatmul.bf16.gmra.mxu0 %v4091
      %v4168 = vpop.f32.mrf.mxu0
      %v4169 = vadd.f32 0.0, %v4168
      %v4170 = vpop.f32.mrf.mxu0
      %v4171 = vadd.f32 0.0, %v4170
      %4172 = vdwg.mxu0
      %v4173 = vadd.f32 %v4016, %v4154
      %v4174 = vadd.f32 %v4017, %v4156
      %v4175 = vadd.f32 %v4018, %v4159
      %v4176 = vadd.f32 %v4019, %v4161
      %v4177 = vadd.f32 %v4020, %v4164
      %v4178 = vadd.f32 %v4021, %v4166
      %v4179 = vadd.f32 %v4022, %v4169
      %v4180 = vadd.f32 %v4023, %v4171
      %s4181 = scalar_lea.vmem %s5, 448
      %v4182 = vld [vmem:[%s4181] sm:$0xf]
      %v4183 = vld [vmem:[%s4181 + $0x4] sm:$0xf]
      %v4184 = vld [vmem:[%s4181 + $0x8] sm:$0xf]
      %v4185 = vld [vmem:[%s4181 + $0xc] sm:$0xf]
      %v4186 = vld [vmem:[%s4181 + $0x10] sm:$0xf]
      %v4187 = vld [vmem:[%s4181 + $0x14] sm:$0xf]
      %v4188 = vld [vmem:[%s4181 + $0x18] sm:$0xf]
      %v4189 = vld [vmem:[%s4181 + $0x1c] sm:$0xf]
      %v4190 = vld [vmem:[%s4181 + $0x20] sm:$0xf]
      %v4191 = vld [vmem:[%s4181 + $0x24] sm:$0xf]
      %v4192 = vld [vmem:[%s4181 + $0x28] sm:$0xf]
      %v4193 = vld [vmem:[%s4181 + $0x2c] sm:$0xf]
      %v4194 = vld [vmem:[%s4181 + $0x30] sm:$0xf]
      %v4195 = vld [vmem:[%s4181 + $0x34] sm:$0xf]
      %v4196 = vld [vmem:[%s4181 + $0x38] sm:$0xf]
      %v4197 = vld [vmem:[%s4181 + $0x3c] sm:$0xf]
      %v4198 = vpack.i.b16 %v2620, %v2619
      %v4199 = vpack.i.b16 %v2622, %v2621
      %v4200 = vpack.i.b16 %v2624, %v2623
      %v4201 = vpack.i.b16 %v2626, %v2625
      %4202 = vst [vmem:[#allocation1] ss:$9 sm:$0xff] %v2800
      %s4203 = scalar_lea.vmem [#allocation1], 1
      %4204 = vst [vmem:[%s4203] ss:$9 sm:$0xff] %v2801
      %s4205 = scalar_lea.vmem [#allocation1], 2
      %4206 = vst [vmem:[%s4205] ss:$9 sm:$0xff] %v2802
      %s4207 = scalar_lea.vmem [#allocation1], 3
      %4208 = vst [vmem:[%s4207] ss:$9 sm:$0xff] %v2803
      %s4209 = scalar_lea.vmem [#allocation1], 4
      %4210 = vst [vmem:[%s4209] ss:$9 sm:$0xff] %v2804
      %s4211 = scalar_lea.vmem [#allocation1], 5
      %4212 = vst [vmem:[%s4211] ss:$9 sm:$0xff] %v2805
      %s4213 = scalar_lea.vmem [#allocation1], 6
      %4214 = vst [vmem:[%s4213] ss:$9 sm:$0xff] %v2806
      %s4215 = scalar_lea.vmem [#allocation1], 7
      %4216 = vst [vmem:[%s4215] ss:$9 sm:$0xff] %v2807
      %v4217 = vld [vmem:[#allocation1] sm:$0xff]
      %4218 = vst [vmem:[#allocation1] ss:$9 sm:$0xff] %v2808
      %4219 = vst [vmem:[%s4203] ss:$9 sm:$0xff] %v2809
      %4220 = vst [vmem:[%s4205] ss:$9 sm:$0xff] %v2810
      %4221 = vst [vmem:[%s4207] ss:$9 sm:$0xff] %v2811
      %4222 = vst [vmem:[%s4209] ss:$9 sm:$0xff] %v2812
      %4223 = vst [vmem:[%s4211] ss:$9 sm:$0xff] %v2813
      %4224 = vst [vmem:[%s4213] ss:$9 sm:$0xff] %v2814
      %4225 = vst [vmem:[%s4215] ss:$9 sm:$0xff] %v2815
      %v4226 = vld [vmem:[#allocation1] sm:$0xff]
      %4227 = vst [vmem:[#allocation1] ss:$9 sm:$0xff] %v2816
      %4228 = vst [vmem:[%s4203] ss:$9 sm:$0xff] %v2817
      %4229 = vst [vmem:[%s4205] ss:$9 sm:$0xff] %v2818
      %4230 = vst [vmem:[%s4207] ss:$9 sm:$0xff] %v2819
      %4231 = vst [vmem:[%s4209] ss:$9 sm:$0xff] %v2820
      %4232 = vst [vmem:[%s4211] ss:$9 sm:$0xff] %v2821
      %4233 = vst [vmem:[%s4213] ss:$9 sm:$0xff] %v2822
      %4234 = vst [vmem:[%s4215] ss:$9 sm:$0xff] %v2823
      %v4235 = vld [vmem:[#allocation1] sm:$0xff]
      %4236 = vst [vmem:[#allocation1] ss:$9 sm:$0xff] %v2824
      %4237 = vst [vmem:[%s4203] ss:$9 sm:$0xff] %v2825
      %4238 = vst [vmem:[%s4205] ss:$9 sm:$0xff] %v2826
      %4239 = vst [vmem:[%s4207] ss:$9 sm:$0xff] %v2827
      %4241 = vst [vmem:[%s4209] ss:$9 sm:$0xff] %v4198
      %4243 = vst [vmem:[%s4211] ss:$9 sm:$0xff] %v4199
      %4245 = vst [vmem:[%s4213] ss:$9 sm:$0xff] %v4200
      %4247 = vst [vmem:[%s4215] ss:$9 sm:$0xff] %v4201
      %v4248 = vld [vmem:[#allocation1] sm:$0xff]
      %v4269 = vunpack.c.l.b16 %v4182
      %v4270 = vunpack.c.l.b16 %v4183
      %v4271 = vunpack.c.l.b16 %v4184
      %v4272 = vunpack.c.l.b16 %v4185
      %v4273 = vunpack.c.l.b16 %v4186
      %v4274 = vunpack.c.l.b16 %v4187
      %v4275 = vunpack.c.l.b16 %v4188
      %v4276 = vunpack.c.l.b16 %v4189
      %v4277 = vunpack.c.l.b16 %v4190
      %v4278 = vunpack.c.l.b16 %v4191
      %v4279 = vunpack.c.l.b16 %v4192
      %v4280 = vunpack.c.l.b16 %v4193
      %v4281 = vunpack.c.l.b16 %v4194
      %v4282 = vunpack.c.l.b16 %v4195
      %v4283 = vunpack.c.l.b16 %v4196
      %v4284 = vunpack.c.l.b16 %v4197
      %v4285 = vpack.c.b16 %v4270, %v4269
      %v4286 = vpack.c.b16 %v4272, %v4271
      %v4287 = vpack.c.b16 %v4274, %v4273
      %v4288 = vpack.c.b16 %v4276, %v4275
      %v4289 = vpack.c.b16 %v4278, %v4277
      %v4290 = vpack.c.b16 %v4280, %v4279
      %v4291 = vpack.c.b16 %v4282, %v4281
      %v4292 = vpack.c.b16 %v4284, %v4283
      %4301 = vmatpush.bf16.msra.mxu0 %v4292
      %4302 = vmatpush.bf16.msra.mxu0 %v4291
      %4303 = vmatpush.bf16.msra.mxu0 %v4290
      %4304 = vmatpush.bf16.msra.mxu0 %v4289
      %4305 = vmatpush.bf16.msra.mxu0 %v4288
      %4306 = vmatpush.bf16.msra.mxu0 %v4287
      %4307 = vmatpush.bf16.msra.mxu0 %v4286
      %4308 = vmatpush.bf16.msra.mxu0 %v4285
      %4309 = vmatmul.bf16.gmra.mxu0 %v4217
      %v4310 = vpop.f32.mrf.mxu0
      %v4311 = vadd.f32 0.0, %v4310
      %v4312 = vpop.f32.mrf.mxu0
      %v4313 = vadd.f32 0.0, %v4312
      %4314 = vmatmul.bf16.gmra.mxu0 %v4226
      %v4315 = vpop.f32.mrf.mxu0
      %v4316 = vadd.f32 0.0, %v4315
      %v4317 = vpop.f32.mrf.mxu0
      %v4318 = vadd.f32 0.0, %v4317
      %4319 = vmatmul.bf16.gmra.mxu0 %v4235
      %v4320 = vpop.f32.mrf.mxu0
      %v4321 = vadd.f32 0.0, %v4320
      %v4322 = vpop.f32.mrf.mxu0
      %v4323 = vadd.f32 0.0, %v4322
      %4324 = vmatmul.bf16.gmra.mxu0 %v4248
      %v4325 = vpop.f32.mrf.mxu0
      %v4326 = vadd.f32 0.0, %v4325
      %v4327 = vpop.f32.mrf.mxu0
      %v4328 = vadd.f32 0.0, %v4327
      %4329 = vdwg.mxu0
      %v4330 = vadd.f32 %v4173, %v4311
      %v4331 = vadd.f32 %v4174, %v4313
      %v4332 = vadd.f32 %v4175, %v4316
      %v4333 = vadd.f32 %v4176, %v4318
      %v4334 = vadd.f32 %v4177, %v4321
      %v4335 = vadd.f32 %v4178, %v4323
      %v4336 = vadd.f32 %v4179, %v4326
      %v4337 = vadd.f32 %v4180, %v4328
      %s4338 = scalar_lea.vmem %s5, 512
      %v4339 = vld [vmem:[%s4338] sm:$0xf]
      %v4340 = vld [vmem:[%s4338 + $0x4] sm:$0xf]
      %v4341 = vld [vmem:[%s4338 + $0x8] sm:$0xf]
      %v4342 = vld [vmem:[%s4338 + $0xc] sm:$0xf]
      %v4343 = vld [vmem:[%s4338 + $0x10] sm:$0xf]
      %v4344 = vld [vmem:[%s4338 + $0x14] sm:$0xf]
      %v4345 = vld [vmem:[%s4338 + $0x18] sm:$0xf]
      %v4346 = vld [vmem:[%s4338 + $0x1c] sm:$0xf]
      %v4347 = vld [vmem:[%s4338 + $0x20] sm:$0xf]
      %v4348 = vld [vmem:[%s4338 + $0x24] sm:$0xf]
      %v4349 = vld [vmem:[%s4338 + $0x28] sm:$0xf]
      %v4350 = vld [vmem:[%s4338 + $0x2c] sm:$0xf]
      %v4351 = vld [vmem:[%s4338 + $0x30] sm:$0xf]
      %v4352 = vld [vmem:[%s4338 + $0x34] sm:$0xf]
      %v4353 = vld [vmem:[%s4338 + $0x38] sm:$0xf]
      %v4354 = vld [vmem:[%s4338 + $0x3c] sm:$0xf]
      %v4355 = vpack.i.b16 %v2548, %v2547
      %v4356 = vpack.i.b16 %v2550, %v2549
      %v4357 = vpack.i.b16 %v2552, %v2551
      %v4358 = vpack.i.b16 %v2554, %v2553
      %4359 = vst [vmem:[#allocation1] ss:$9 sm:$0xff] %v3193
      %s4360 = scalar_lea.vmem [#allocation1], 1
      %4361 = vst [vmem:[%s4360] ss:$9 sm:$0xff] %v3194
      %s4362 = scalar_lea.vmem [#allocation1], 2
      %4363 = vst [vmem:[%s4362] ss:$9 sm:$0xff] %v3195
      %s4364 = scalar_lea.vmem [#allocation1], 3
      %4365 = vst [vmem:[%s4364] ss:$9 sm:$0xff] %v3196
      %s4366 = scalar_lea.vmem [#allocation1], 4
      %4367 = vst [vmem:[%s4366] ss:$9 sm:$0xff] %v3197
      %s4368 = scalar_lea.vmem [#allocation1], 5
      %4369 = vst [vmem:[%s4368] ss:$9 sm:$0xff] %v3198
      %s4370 = scalar_lea.vmem [#allocation1], 6
      %4371 = vst [vmem:[%s4370] ss:$9 sm:$0xff] %v3199
      %s4372 = scalar_lea.vmem [#allocation1], 7
      %4373 = vst [vmem:[%s4372] ss:$9 sm:$0xff] %v3200
      %v4374 = vld [vmem:[#allocation1] sm:$0xff]
      %4375 = vst [vmem:[#allocation1] ss:$9 sm:$0xff] %v3201
      %4376 = vst [vmem:[%s4360] ss:$9 sm:$0xff] %v3202
      %4377 = vst [vmem:[%s4362] ss:$9 sm:$0xff] %v3203
      %4378 = vst [vmem:[%s4364] ss:$9 sm:$0xff] %v3204
      %4379 = vst [vmem:[%s4366] ss:$9 sm:$0xff] %v3205
      %4380 = vst [vmem:[%s4368] ss:$9 sm:$0xff] %v3206
      %4381 = vst [vmem:[%s4370] ss:$9 sm:$0xff] %v3207
      %4382 = vst [vmem:[%s4372] ss:$9 sm:$0xff] %v3208
      %v4383 = vld [vmem:[#allocation1] sm:$0xff]
      %4384 = vst [vmem:[#allocation1] ss:$9 sm:$0xff] %v3209
      %4385 = vst [vmem:[%s4360] ss:$9 sm:$0xff] %v3210
      %4386 = vst [vmem:[%s4362] ss:$9 sm:$0xff] %v3211
      %4387 = vst [vmem:[%s4364] ss:$9 sm:$0xff] %v3212
      %4388 = vst [vmem:[%s4366] ss:$9 sm:$0xff] %v3213
      %4389 = vst [vmem:[%s4368] ss:$9 sm:$0xff] %v3214
      %4390 = vst [vmem:[%s4370] ss:$9 sm:$0xff] %v3215
      %4391 = vst [vmem:[%s4372] ss:$9 sm:$0xff] %v3216
      %v4392 = vld [vmem:[#allocation1] sm:$0xff]
      %4393 = vst [vmem:[#allocation1] ss:$9 sm:$0xff] %v3217
      %4394 = vst [vmem:[%s4360] ss:$9 sm:$0xff] %v3218
      %4395 = vst [vmem:[%s4362] ss:$9 sm:$0xff] %v3219
      %4396 = vst [vmem:[%s4364] ss:$9 sm:$0xff] %v3220
      %4398 = vst [vmem:[%s4366] ss:$9 sm:$0xff] %v4355
      %4400 = vst [vmem:[%s4368] ss:$9 sm:$0xff] %v4356
      %4402 = vst [vmem:[%s4370] ss:$9 sm:$0xff] %v4357
      %4404 = vst [vmem:[%s4372] ss:$9 sm:$0xff] %v4358
      %v4405 = vld [vmem:[#allocation1] sm:$0xff]
      %v4426 = vunpack.c.l.b16 %v4339
      %v4427 = vunpack.c.l.b16 %v4340
      %v4428 = vunpack.c.l.b16 %v4341
      %v4429 = vunpack.c.l.b16 %v4342
      %v4430 = vunpack.c.l.b16 %v4343
      %v4431 = vunpack.c.l.b16 %v4344
      %v4432 = vunpack.c.l.b16 %v4345
      %v4433 = vunpack.c.l.b16 %v4346
      %v4434 = vunpack.c.l.b16 %v4347
      %v4435 = vunpack.c.l.b16 %v4348
      %v4436 = vunpack.c.l.b16 %v4349
      %v4437 = vunpack.c.l.b16 %v4350
      %v4438 = vunpack.c.l.b16 %v4351
      %v4439 = vunpack.c.l.b16 %v4352
      %v4440 = vunpack.c.l.b16 %v4353
      %v4441 = vunpack.c.l.b16 %v4354
      %v4442 = vpack.c.b16 %v4427, %v4426
      %v4443 = vpack.c.b16 %v4429, %v4428
      %v4444 = vpack.c.b16 %v4431, %v4430
      %v4445 = vpack.c.b16 %v4433, %v4432
      %v4446 = vpack.c.b16 %v4435, %v4434
      %v4447 = vpack.c.b16 %v4437, %v4436
      %v4448 = vpack.c.b16 %v4439, %v4438
      %v4449 = vpack.c.b16 %v4441, %v4440
      %4458 = vmatpush.bf16.msra.mxu0 %v4449
      %4459 = vmatpush.bf16.msra.mxu0 %v4448
      %4460 = vmatpush.bf16.msra.mxu0 %v4447
      %4461 = vmatpush.bf16.msra.mxu0 %v4446
      %4462 = vmatpush.bf16.msra.mxu0 %v4445
      %4463 = vmatpush.bf16.msra.mxu0 %v4444
      %4464 = vmatpush.bf16.msra.mxu0 %v4443
      %4465 = vmatpush.bf16.msra.mxu0 %v4442
      %4466 = vmatmul.bf16.gmra.mxu0 %v4374
      %v4467 = vpop.f32.mrf.mxu0
      %v4468 = vadd.f32 0.0, %v4467
      %v4469 = vpop.f32.mrf.mxu0
      %v4470 = vadd.f32 0.0, %v4469
      %4471 = vmatmul.bf16.gmra.mxu0 %v4383
      %v4472 = vpop.f32.mrf.mxu0
      %v4473 = vadd.f32 0.0, %v4472
      %v4474 = vpop.f32.mrf.mxu0
      %v4475 = vadd.f32 0.0, %v4474
      %4476 = vmatmul.bf16.gmra.mxu0 %v4392
      %v4477 = vpop.f32.mrf.mxu0
      %v4478 = vadd.f32 0.0, %v4477
      %v4479 = vpop.f32.mrf.mxu0
      %v4480 = vadd.f32 0.0, %v4479
      %4481 = vmatmul.bf16.gmra.mxu0 %v4405
      %v4482 = vpop.f32.mrf.mxu0
      %v4483 = vadd.f32 0.0, %v4482
      %v4484 = vpop.f32.mrf.mxu0
      %v4485 = vadd.f32 0.0, %v4484
      %4486 = vdwg.mxu0
      %v4487 = vadd.f32 %v4330, %v4468
      %v4488 = vadd.f32 %v4331, %v4470
      %v4489 = vadd.f32 %v4332, %v4473
      %v4490 = vadd.f32 %v4333, %v4475
      %v4491 = vadd.f32 %v4334, %v4478
      %v4492 = vadd.f32 %v4335, %v4480
      %v4493 = vadd.f32 %v4336, %v4483
      %v4494 = vadd.f32 %v4337, %v4485
      %v4495 = vld [vmem:[%s6] sm:$0x1]
      %v4497 = vperm.slane %v4495, 0
      %v4499 = vmul.f32 %v4487, %v4497
      %v4500 = vmul.f32 %v4488, %v4497
      %v4501 = vmul.f32 %v4489, %v4497
      %v4502 = vmul.f32 %v4490, %v4497
      %v4503 = vmul.f32 %v4491, %v4497
      %v4504 = vmul.f32 %v4492, %v4497
      %v4505 = vmul.f32 %v4493, %v4497
      %v4506 = vmul.f32 %v4494, %v4497
      %v4507 = vld [vmem:[%s7] sm:$0x1]
      %v4509 = vperm.slane %v4507, 0
      %v4511 = vadd.f32 %v4499, %v4509
      %v4512 = vadd.f32 %v4500, %v4509
      %v4513 = vadd.f32 %v4501, %v4509
      %v4514 = vadd.f32 %v4502, %v4509
      %v4515 = vadd.f32 %v4503, %v4509
      %v4516 = vadd.f32 %v4504, %v4509
      %v4517 = vadd.f32 %v4505, %v4509
      %v4518 = vadd.f32 %v4506, %v4509
      %v4519 = vmax.f32 %v4511, 0.0
      %v4520 = vmax.f32 %v4512, 0.0
      %v4521 = vmax.f32 %v4513, 0.0
      %v4522 = vmax.f32 %v4514, 0.0
      %v4523 = vmax.f32 %v4515, 0.0
      %v4524 = vmax.f32 %v4516, 0.0
      %v4525 = vmax.f32 %v4517, 0.0
      %v4526 = vmax.f32 %v4518, 0.0
      %v4527 = vadd.f32 %v4519, %v4520
      %v4528 = vadd.f32 %v4527, %v4521
      %v4529 = vadd.f32 %v4528, %v4522
      %v4530 = vadd.f32 %v4529, %v4523
      %v4531 = vadd.f32 %v4530, %v4524
      %v4532 = vadd.f32 %v4531, %v4525
      %v4533 = vadd.f32 %v4532, %v4526
      %v4534 = vrot.slane %v4533, 4
      %v4535 = vadd.f32 %v4533, %v4534
      %v4536 = vrot.slane %v4535, 2
      %v4537 = vadd.f32 %v4535, %v4536
      %v4538 = vrot.slane %v4537, 1
      %v4539 = vadd.f32 %v4537, %v4538
      %v4540 = vrcp.pop 64.0
      %v4541 = vmul.f32 64.0, %v4540
      %v4542 = vsub.f32 1.0, %v4541
      %v4543 = vmul.f32 %v4540, %v4542
      %v4544 = vadd.f32 %v4540, %v4543
      %vm4545 = vweird.f32 %v4540
      %v4546 = vsel %vm4545, %v4540, %v4544
      %v4547 = vmul.f32 %v4539, %v4546
      %v4548 = vld [vmem:[%s8] sm:$0xff]
      %v4549 = vld [vmem:[%s8 + $0x8] sm:$0xff]
      %v4550 = vld [vmem:[%s8 + $0x10] sm:$0xff]
      %v4551 = vld [vmem:[%s8 + $0x18] sm:$0xff]
      %v4552 = vld [vmem:[%s8 + $0x20] sm:$0xff]
      %v4553 = vld [vmem:[%s8 + $0x28] sm:$0xff]
      %v4554 = vld [vmem:[%s8 + $0x30] sm:$0xff]
      %v4555 = vld [vmem:[%s8 + $0x38] sm:$0xff]
      %v4556 = vld [vmem:[%s8 + $0x40] sm:$0xff]
      %v4557 = vld [vmem:[%s8 + $0x48] sm:$0xff]
      %v4558 = vld [vmem:[%s8 + $0x50] sm:$0xff]
      %v4559 = vld [vmem:[%s8 + $0x58] sm:$0xff]
      %v4560 = vld [vmem:[%s8 + $0x60] sm:$0xff]
      %v4561 = vld [vmem:[%s8 + $0x68] sm:$0xff]
      %v4562 = vld [vmem:[%s8 + $0x70] sm:$0xff]
      %v4563 = vld [vmem:[%s8 + $0x78] sm:$0xff]
      %v4564 = vld [vmem:[%s9] sm:$0x1]
      %4565 = vmatpush.msra.mxu0 %v4563
      %4566 = vmatpush.msra.mxu0 %v4562
      %4567 = vmatpush.msra.mxu0 %v4561
      %4568 = vmatpush.msra.mxu0 %v4560
      %4569 = vmatpush.msra.mxu0 %v4559
      %4570 = vmatpush.msra.mxu0 %v4558
      %4571 = vmatpush.msra.mxu0 %v4557
      %4572 = vmatpush.msra.mxu0 %v4556
      %4573 = vmatpush.msra.mxu0 %v4555
      %4574 = vmatpush.msra.mxu0 %v4554
      %4575 = vmatpush.msra.mxu0 %v4553
      %4576 = vmatpush.msra.mxu0 %v4552
      %4577 = vmatpush.msra.mxu0 %v4551
      %4578 = vmatpush.msra.mxu0 %v4550
      %4579 = vmatpush.msra.mxu0 %v4549
      %4580 = vmatpush.msra.mxu0 %v4548
      %4581 = vmatmul.f32.gmra.mxu0 %v4547
      %v4582 = vpop.f32.mrf.mxu0
      %v4583 = vadd.f32 %v4564, %v4582
      %4584 = vdwg.mxu0
      %v4585 = vmax.f32 %v4583, 0.0
      %v4586 = vld [vmem:[%s10] sm:$0xff]
      %v4587 = vld [vmem:[%s11] sm:$0x1]
      %vm4588 = vcmask 64512
      %v4590 = vsel %vm4588, %v4585, 0
      %4592 = vmatpush.msra.mxu0 0.0
      %4593 = vmatpush.msra.mxu0 0.0
      %4594 = vmatpush.msra.mxu0 0.0
      %4595 = vmatpush.msra.mxu0 0.0
      %4596 = vmatpush.msra.mxu0 0.0
      %4597 = vmatpush.msra.mxu0 0.0
      %4598 = vmatpush.msra.mxu0 0.0
      %4599 = vmatpush.msra.mxu0 0.0
      %4600 = vmatpush.msra.mxu0 0.0
      %4601 = vmatpush.msra.mxu0 0.0
      %4602 = vmatpush.msra.mxu0 0.0
      %4603 = vmatpush.msra.mxu0 0.0
      %4604 = vmatpush.msra.mxu0 0.0
      %4605 = vmatpush.msra.mxu0 0.0
      %4606 = vmatpush.msra.mxu0 0.0
      %4607 = vmatpush.msra.mxu0 %v4586
      %4608 = vmatmul.f32.gmra.mxu0 %v4590
      %v4609 = vpop.f32.mrf.mxu0
      %v4610 = vadd.f32 %v4587, %v4609
      %4611 = vdwg.mxu0
      %v4612 = vxor.u32 %v4610, 2147483648
      %v4613 = vmul.f32 %v4612, 1.442695
      %v4614 = vpow.pop %v4613
      %v4615 = vadd.f32 %v4614, 1.0
      %v4616 = vrcp.pop %v4615
      %v4617 = vmul.f32 %v4615, %v4616
      %v4618 = vsub.f32 1.0, %v4617
      %v4619 = vmul.f32 %v4616, %v4618
      %v4620 = vadd.f32 %v4616, %v4619
      %vm4621 = vweird.f32 %v4615
      %vm4622 = vweird.f32 %v4616
      %vm4623 = vmor %vm4621, %vm4622
      %v4624 = vsel %vm4623, %v4616, %v4620
      %v4625 = vand.u32 2147483647, %v4615
      %vm4626 = vcmp.eq.f32.partialorder %v4625, 8.507059e+37
      %v4627 = vand.u32 %v4615, 2147483648
      %v4628 = vor.u32 1.1754944e-38, %v4627
      %v4629 = vsel %vm4626, %v4628, %v4624
      %v4630 = vmul.f32 1.0, %v4629
      %v4631 = vperm.slane %v4630, 0
      %v4632 = vmul.f32 %v4519, %v4631
      %v4633 = vmul.f32 %v4520, %v4631
      %v4634 = vmul.f32 %v4521, %v4631
      %v4635 = vmul.f32 %v4522, %v4631
      %v4636 = vmul.f32 %v4523, %v4631
      %v4637 = vmul.f32 %v4524, %v4631
      %v4638 = vmul.f32 %v4525, %v4631
      %v4639 = vmul.f32 %v4526, %v4631
      %v4640 = vpack.c.bf16 %v4632, %v4632
      %v4641 = vpack.c.bf16 %v4633, %v4633
      %v4642 = vpack.c.bf16 %v4634, %v4634
      %v4643 = vpack.c.bf16 %v4635, %v4635
      %v4644 = vpack.c.bf16 %v4636, %v4636
      %v4645 = vpack.c.bf16 %v4637, %v4637
      %v4646 = vpack.c.bf16 %v4638, %v4638
      %v4647 = vpack.c.bf16 %v4639, %v4639
      %4648 = vst [vmem:[%s418] sm:$0xf] %v4640
      %4649 = vst [vmem:[%s418 + $0x4] sm:$0xf] %v4641
      %4650 = vst [vmem:[%s418 + $0x8] sm:$0xf] %v4642
      %4651 = vst [vmem:[%s418 + $0xc] sm:$0xf] %v4643
      %4652 = vst [vmem:[%s418 + $0x10] sm:$0xf] %v4644
      %4653 = vst [vmem:[%s418 + $0x14] sm:$0xf] %v4645
      %4654 = vst [vmem:[%s418 + $0x18] sm:$0xf] %v4646
      %4655 = vst [vmem:[%s418 + $0x1c] sm:$0xf] %v4647
      %p4656 = scmp.lt.s32.totalorder %s23, 1
      %s4657 = scalar_select %p4656, %s23, 1
      %s4658 = smul.addr %s4657, 8
      %s4659 = smul.addr %s4658, 4
      %s4660 = scalar_lea.vmem %s12, %s4659
      // Predicated region
      $region69: #{res_bottleneck_block.2} parent=67 // pred_check
        %p4661 = pneg %p298
      $region70: #{res_bottleneck_block.2} parent=67 // pred_check_branch
        %4663 = sbr.rel (%p4661) target = $region72
      $region71: #{res_bottleneck_block.2} parent=67 // pred_region
        _
      $region72: #{res_bottleneck_block.2} parent=67 // pred_fallthru
        _
    $region68: #{res_bottleneck_block.2} parent=5 // pred_fallthru
      _
    %p4664 = scmp.le.s32.totalorder 2, %s18
    // Predicated region
    $region73: #{res_bottleneck_block.2} parent=5 // pred_check
      %p4665 = pneg %p4664
    $region74: #{res_bottleneck_block.2} parent=5 // pred_check_branch
      %4667 = sbr.rel (%p4665) target = $region76
    $region75: #{res_bottleneck_block.2} parent=5 // pred_region
      %s4668 = ssub.s32 %s18, 2
      // Predicated region
      $region77: #{res_bottleneck_block.2} parent=75 // pred_check
        %p4669 = pneg %p304
      $region78: #{res_bottleneck_block.2} parent=75 // pred_check_branch
        %4671 = sbr.rel (%p4669) target = $region80
      $region79: #{res_bottleneck_block.2} parent=75 // pred_region
        %p4672 = scmp.lt.s32.totalorder %s24, 1
        %s4673 = scalar_select %p4672, %s24, 1
        %s4674 = smul.addr %s4673, 8
        %s4675 = smul.addr %s4674, 4
        %s4676 = scalar_lea.vmem %s12, %s4675
      $region80: #{res_bottleneck_block.2} parent=75 // pred_fallthru
        _
    $region76: #{res_bottleneck_block.2} parent=5 // pred_fallthru
      _
  $region6: #{res_bottleneck_block.2} parent=0 // loop_footer
    %s22 = sadd.s32 1, %s18
  $region7: #{res_bottleneck_block.2} parent=0 // loop_footer_branch
    %17 = sbr.rel target = $region3
  $region8: #{res_bottleneck_block.2} parent=0 // loop_exit
    _

</llo_original>
